<compile_context>
chip_gen: v6e
topology: v6e:2x2x1
jax: 0.10.0
libtpu: 0.0.40
codegen_flags: <defaults>
</compile_context>

<pallas_src>
import functools

import jax
import jax.numpy as jnp
from jax.experimental import pallas as pl
from jax.experimental.pallas import tpu as pltpu


def charlm_kernel(ids_ref, embproj_ref, whh0_ref, b0_ref,
                  wih1_ref, whh1_ref, b1_ref,
                  wout_ref, bout_ref,
                  out_ref,
                  flat1_ref, *, T):
    B = out_ref.shape[0]            # padded batch
    V = embproj_ref.shape[0]
    H = whh0_ref.shape[0]
    f32 = jnp.float32
    bf16 = jnp.bfloat16

    # bf16 weights used directly from their refs: single-pass bf16 MXU with f32
    # accumulation (preferred_element_type), no f32 upcast copies in VMEM.
    whh0 = whh0_ref[...]            # (H, 4H)  bf16
    wih1 = wih1_ref[...]            # (H, 4H)  bf16
    whh1 = whh1_ref[...]            # (H, 4H)  bf16
    b1 = b1_ref[...]                # (1, 4H)  f32

    # ---- Embedding fused with layer-0 input projection: one-hot @ (emb @ W_ih0^T) ----
    # ids arrive pre-flattened time-major as (T*B, 1); the one-hot is built directly
    # in 2-D (no relayout).  One-hot is exact in bf16, so this matmul is exact.
    onehot = (ids_ref[...] ==
              jax.lax.broadcasted_iota(jnp.int32, (T * B, V), 1)).astype(bf16)
    # TODO(synk): for a large vocab, replace the one-hot matmul with a scalar-prefetched
    # row gather of emb_proj (PrefetchScalarGridSpec + pl.Element index_map).
    gin0 = (jnp.dot(onehot, embproj_ref[...], preferred_element_type=f32)
            + b0_ref[...])                                    # (T*B, 4H), bias hoisted

    def lstm_gates(g, c):
        # H == 128 -> each gate slice is exactly one 128-lane vreg (no cross-lane work).
        i_g = jax.nn.sigmoid(g[:, 0 * H:1 * H])
        f_g = jax.nn.sigmoid(g[:, 1 * H:2 * H])
        g_g = jnp.tanh(g[:, 2 * H:3 * H])
        o_g = jax.nn.sigmoid(g[:, 3 * H:4 * H])
        c = f_g * c + i_g * g_g
        h = o_g * jnp.tanh(c)
        return h, c

    # ---- Wavefront over the two LSTM layers: a single unrolled time loop ----
    # Layer-1 step t consumes layer-0's h0_t immediately, so the dependent chain is
    # ~T+1 steps (not 2T) and layer-1's input projection overlaps layer-0 gate math.
    # TODO(synk): if word_len grows beyond ~16, switch to lax.fori_loop(..., unroll=...)
    # with (h0, c0, h1, c1) carries to bound vreg live ranges.
    # TODO(synk): if the recurrence remains MXU-latency-bound, hold whh0/whh1 stationary
    # across the loop via pltpu.matmul_push_rhs / matmul_acc_lhs / matmul_pop.
    h0 = jnp.zeros((B, H), f32)
    c0 = jnp.zeros((B, H), f32)
    h1 = jnp.zeros((B, H), f32)
    c1 = jnp.zeros((B, H), f32)
    for t in range(T):                                        # static T, unrolled
        g0 = gin0[t * B:(t + 1) * B] + jnp.dot(h0.astype(bf16), whh0,
                                               preferred_element_type=f32)
        h0, c0 = lstm_gates(g0, c0)
        g1 = (jnp.dot(h0.astype(bf16), wih1, preferred_element_type=f32) + b1
              + jnp.dot(h1.astype(bf16), whh1, preferred_element_type=f32))
        h1, c1 = lstm_gates(g1, c1)
        flat1_ref[:, t * H:(t + 1) * H] = h1.astype(bf16)     # == torch out.view(B, T*H)

    # ---- Output linear; lane-dense (B, V*T) store, reshape happens in the wrapper ----
    out_ref[...] = (jnp.dot(flat1_ref[...], wout_ref[...], preferred_element_type=f32)
                    + bout_ref[...])


def prepare_params(p, weight_dtype=jnp.bfloat16):
    """One-time host-side prep: fuse emb into W_ih0, pre-transpose, bf16 weight storage."""
    f32 = jnp.float32
    emb_proj = jnp.dot(p["emb"].astype(f32), p["wih0"].astype(f32).T)   # (V, 4H)
    return {
        "emb_proj": emb_proj.astype(weight_dtype),        # (V, 4H)
        "whh0_t":  p["whh0"].T.astype(weight_dtype),      # (H, 4H)
        "b0":      p["b0"].astype(f32),                   # (1, 4H) = b_ih0 + b_hh0
        "wih1_t":  p["wih1"].T.astype(weight_dtype),      # (H, 4H)
        "whh1_t":  p["whh1"].T.astype(weight_dtype),      # (H, 4H)
        "b1":      p["b1"].astype(f32),                   # (1, 4H) = b_ih1 + b_hh1
        "wout_t":  p["wout"].T.astype(weight_dtype),      # (T*H, V*T)
        "bout":    p["bout"].astype(f32),                 # (1, V*T)
    }


def charlm_forward(ids, kp):
    """ids: (B, T) int32; kp: prepare_params(...) output.  Returns (B, T, V) f32 logits."""
    B, T = ids.shape
    H = kp["whh0_t"].shape[0]
    VT = kp["bout"].shape[1]
    V = VT // T

    # Pad batch to a multiple of 16: a bf16 LHS vreg packs 16 sublanes and extra MXU rows
    # are latency-free.  For production, batch many words per call instead of padding.
    Bp = max(16, ((B + 15) // 16) * 16)
    if Bp != B:
        ids = jnp.pad(ids, ((0, Bp - B), (0, 0)))
    # Time-major, pre-flattened to (T*Bp, 1): row = t*Bp + b.  Lets the kernel build the
    # one-hot directly as a 2-D (T*Bp, V) array with no in-kernel reshape/relayout.
    ids_2d = ids.T.reshape(T * Bp, 1)

    vmem = pl.BlockSpec(memory_space=pltpu.MemorySpace.VMEM)
    args = (ids_2d, kp["emb_proj"], kp["whh0_t"], kp["b0"],
            kp["wih1_t"], kp["whh1_t"], kp["b1"],
            kp["wout_t"], kp["bout"])
    # TODO(synk): at production batch sizes, add a grid over batch tiles with
    # dimension_semantics=("parallel",) so both v7x TensorCores are used.
    # TODO(synk): at production vocab*word_len, tile the output linear over the V*T axis
    # (BlockSpec on wout_t / out) and set vmem_limit_bytes via pltpu.CompilerParams so
    # wout is not fully VMEM-resident (v7x: 64 MiB physical; v5e: 16 MiB default scoped).
    out = pl.pallas_call(
        functools.partial(charlm_kernel, T=T),
        out_shape=jax.ShapeDtypeStruct((Bp, VT), jnp.float32),   # lane-dense slab
        in_specs=[vmem] * len(args),
        out_specs=vmem,
        scratch_shapes=[pltpu.VMEM((Bp, T * H), jnp.bfloat16)],  # layer-1 flat output
    )(*args)
    return out[:B].reshape(B, T, V)


# ----------------------------- references ----------------------------------


def charlm_ref(ids, p):
    """Pure-JAX translation of the PyTorch CharLM.forward (full f32 weights)."""
    x = p["emb"][ids]                                      # (B, T, E)

    def layer(x, wih, whh, b):
        B, T, _ = x.shape
        H = whh.shape[1]
        h = jnp.zeros((B, H), jnp.float32)
        c = jnp.zeros((B, H), jnp.float32)
        outs = []
        for t in range(T):
            g = x[:, t] @ wih.T + h @ whh.T + b[0]
            i = jax.nn.sigmoid(g[:, :H])
            f = jax.nn.sigmoid(g[:, H:2 * H])
            gg = jnp.tanh(g[:, 2 * H:3 * H])
            o = jax.nn.sigmoid(g[:, 3 * H:])
            c = f * c + i * gg
            h = o * jnp.tanh(c)
            outs.append(h)
        return jnp.stack(outs, axis=1)                     # (B, T, H)

    out0 = layer(x, p["wih0"], p["whh0"], p["b0"])
    out1 = layer(out0, p["wih1"], p["whh1"], p["b1"])
    B, T, H = out1.shape
    flat = out1.reshape(B, T * H)
    logits = flat @ p["wout"].T + p["bout"][0]
    V = p["emb"].shape[0]
    return logits.reshape(B, T, V)


def charlm_prepared_ref(ids, kp):
    """Same math & precision as the kernel (bf16 matmuls, f32 accum/gates), plain JAX."""
    f32 = jnp.float32
    bf16 = jnp.bfloat16
    B, T = ids.shape
    H = kp["whh0_t"].shape[0]
    V = kp["bout"].shape[1] // T

    whh0 = kp["whh0_t"]                                    # bf16
    wih1 = kp["wih1_t"]                                    # bf16
    whh1 = kp["whh1_t"]                                    # bf16
    b1 = kp["b1"][0]

    def gates(g, c):
        i = jax.nn.sigmoid(g[:, :H])
        f = jax.nn.sigmoid(g[:, H:2 * H])
        gg = jnp.tanh(g[:, 2 * H:3 * H])
        o = jax.nn.sigmoid(g[:, 3 * H:])
        c = f * c + i * gg
        return o * jnp.tanh(c), c

    # one-hot @ emb_proj in the kernel is exactly a row gather of emb_proj (f32 upcast).
    gin0 = kp["emb_proj"].astype(f32)[ids] + kp["b0"][0]   # (B, T, 4H)

    h0 = jnp.zeros((B, H), f32)
    c0 = jnp.zeros((B, H), f32)
    h1 = jnp.zeros((B, H), f32)
    c1 = jnp.zeros((B, H), f32)
    outs = []
    for t in range(T):
        g0 = gin0[:, t] + jnp.dot(h0.astype(bf16), whh0, preferred_element_type=f32)
        h0, c0 = gates(g0, c0)
        g1 = (jnp.dot(h0.astype(bf16), wih1, preferred_element_type=f32) + b1
              + jnp.dot(h1.astype(bf16), whh1, preferred_element_type=f32))
        h1, c1 = gates(g1, c1)
        outs.append(h1.astype(bf16))
    flat = jnp.concatenate(outs, axis=1)                   # (B, T*H) bf16
    logits = jnp.dot(flat, kp["wout_t"], preferred_element_type=f32) + kp["bout"][0]
    return logits.reshape(B, T, V)


if __name__ == "__main__":
    # Small shapes consistent with the module: hidden_size=128 (module default), 2 layers.
    B = 2          # batch (padded inside the wrapper)
    V = 32         # vocab_size
    E = 16         # emb_dim
    H = 128        # hidden_size (module default; keeps gate slices lane-aligned)
    T = 8          # word_len (sequence length)

    key = jax.random.PRNGKey(0)
    ks = jax.random.split(key, 10)
    scale = 0.1
    params = {
        "emb":  (scale * jax.random.normal(ks[0], (V, E))).astype(jnp.float32),
        "wih0": (scale * jax.random.normal(ks[1], (4 * H, E))).astype(jnp.float32),
        "whh0": (scale * jax.random.normal(ks[2], (4 * H, H))).astype(jnp.float32),
        "b0":   (scale * jax.random.normal(ks[3], (1, 4 * H))).astype(jnp.float32),
        "wih1": (scale * jax.random.normal(ks[4], (4 * H, H))).astype(jnp.float32),
        "whh1": (scale * jax.random.normal(ks[5], (4 * H, H))).astype(jnp.float32),
        "b1":   (scale * jax.random.normal(ks[6], (1, 4 * H))).astype(jnp.float32),
        "wout": (scale * jax.random.normal(ks[7], (V * T, T * H))).astype(jnp.float32),
        "bout": (scale * jax.random.normal(ks[8], (1, V * T))).astype(jnp.float32),
    }
    input_word = jax.random.randint(ks[9], (B, T), 0, V, dtype=jnp.int32)

    kp = prepare_params(params)                 # fused emb, pre-transposed, bf16 storage
    out = jax.block_until_ready(charlm_forward(input_word, kp))
    assert out.shape == (B, T, V)

    # Tight check: kernel vs identical-precision JAX math on the same bf16-stored weights.
    ref_q = charlm_prepared_ref(input_word, kp)
    err_q = float(jnp.max(jnp.abs(out - ref_q)))
    assert jnp.allclose(out, ref_q, atol=2e-3, rtol=2e-3), f"kernel vs prepared ref: {err_q}"

    # Module-fidelity check vs the full-f32 PyTorch-semantics reference
    # (deviation is bf16 quantization of the stored weights and bf16 LHS activations).
    ref = charlm_ref(input_word, params)
    err = float(jnp.max(jnp.abs(out - ref)))
    assert jnp.allclose(out, ref, atol=5e-2, rtol=5e-2), f"kernel vs f32 module ref: {err}"

    print("KERNEL_OK")
</pallas_src>

<mosaic_0001>
module attributes {stable_mosaic.version = 11 : i64} {
  func.func @charlm_kernel(%arg0: memref<128x1xi32, #tpu.memory_space<vmem>>, %arg1: memref<32x512xbf16, #tpu.memory_space<vmem>>, %arg2: memref<128x512xbf16, #tpu.memory_space<vmem>>, %arg3: memref<1x512xf32, #tpu.memory_space<vmem>>, %arg4: memref<128x512xbf16, #tpu.memory_space<vmem>>, %arg5: memref<128x512xbf16, #tpu.memory_space<vmem>>, %arg6: memref<1x512xf32, #tpu.memory_space<vmem>>, %arg7: memref<1024x256xbf16, #tpu.memory_space<vmem>>, %arg8: memref<1x256xf32, #tpu.memory_space<vmem>>, %arg9: memref<16x256xf32, #tpu.memory_space<vmem>>, %arg10: memref<16x1024xbf16, #tpu.memory_space<vmem>>) attributes {dimension_semantics = [], scalar_prefetch = 0 : i64, scratch_operands = 1 : i64, tpu.core_type = #tpu.core_type<tc>} {
    %c0 = arith.constant 0 : index
    %c0_0 = arith.constant 0 : index
    %0 = vector.load %arg2[%c0, %c0_0] : memref<128x512xbf16, #tpu.memory_space<vmem>>, vector<128x512xbf16>
    %c0_1 = arith.constant 0 : index
    %c0_2 = arith.constant 0 : index
    %1 = vector.load %arg4[%c0_1, %c0_2] : memref<128x512xbf16, #tpu.memory_space<vmem>>, vector<128x512xbf16>
    %c0_3 = arith.constant 0 : index
    %c0_4 = arith.constant 0 : index
    %2 = vector.load %arg5[%c0_3, %c0_4] : memref<128x512xbf16, #tpu.memory_space<vmem>>, vector<128x512xbf16>
    %c0_5 = arith.constant 0 : index
    %c0_6 = arith.constant 0 : index
    %3 = vector.load %arg6[%c0_5, %c0_6] : memref<1x512xf32, #tpu.memory_space<vmem>>, vector<1x512xf32>
    %c0_7 = arith.constant 0 : index
    %c0_8 = arith.constant 0 : index
    %4 = vector.load %arg0[%c0_7, %c0_8] : memref<128x1xi32, #tpu.memory_space<vmem>>, vector<128x1xi32>
    %5 = tpu.iota {dimensions = array<i32: 1>} : vector<128x32xi32>
    %6 = vector.broadcast %4 : vector<128x1xi32> to vector<128x32xi32>
    %7 = arith.cmpi eq, %6, %5 : vector<128x32xi32>
    %8 = arith.extui %7 : vector<128x32xi1> to vector<128x32xi32>
    %9 = arith.sitofp %8 : vector<128x32xi32> to vector<128x32xf32>
    %10 = arith.truncf %9 : vector<128x32xf32> to vector<128x32xbf16>
    %c0_9 = arith.constant 0 : index
    %c0_10 = arith.constant 0 : index
    %11 = vector.load %arg1[%c0_9, %c0_10] : memref<32x512xbf16, #tpu.memory_space<vmem>>, vector<32x512xbf16>
    %cst = arith.constant dense<0.000000e+00> : vector<128x512xf32>
    %12 = tpu.matmul %10, %11, %cst {dimension_numbers = #tpu.dot_dimension_numbers<[1], [0], [0], [1], [0, 0, 1, 1], [], []>} : vector<128x32xbf16>, vector<32x512xbf16>, vector<128x512xf32> -> vector<128x512xf32>
    %c0_11 = arith.constant 0 : index
    %c0_12 = arith.constant 0 : index
    %13 = vector.load %arg3[%c0_11, %c0_12] : memref<1x512xf32, #tpu.memory_space<vmem>>, vector<1x512xf32>
    %14 = vector.broadcast %13 : vector<1x512xf32> to vector<128x512xf32>
    %15 = arith.addf %12, %14 : vector<128x512xf32>
    %cst_13 = arith.constant 0.000000e+00 : f32
    %16 = vector.broadcast %cst_13 : f32 to vector<16x128xf32>
    %cst_14 = arith.constant 0.000000e+00 : f32
    %17 = vector.broadcast %cst_14 : f32 to vector<16x128xf32>
    %cst_15 = arith.constant 0.000000e+00 : f32
    %18 = vector.broadcast %cst_15 : f32 to vector<16x128xf32>
    %cst_16 = arith.constant 0.000000e+00 : f32
    %19 = vector.broadcast %cst_16 : f32 to vector<16x128xf32>
    %20 = vector.extract_strided_slice %15 {offsets = [0, 0], sizes = [16, 512], strides = [1, 1]} : vector<128x512xf32> to vector<16x512xf32>
    %21 = arith.truncf %16 : vector<16x128xf32> to vector<16x128xbf16>
    %cst_17 = arith.constant dense<0.000000e+00> : vector<16x512xf32>
    %22 = tpu.matmul %21, %0, %cst_17 {dimension_numbers = #tpu.dot_dimension_numbers<[1], [0], [0], [1], [0, 0, 1, 1], [], []>} : vector<16x128xbf16>, vector<128x512xbf16>, vector<16x512xf32> -> vector<16x512xf32>
    %23 = arith.addf %20, %22 : vector<16x512xf32>
    %24 = vector.extract_strided_slice %23 {offsets = [0, 0], sizes = [16, 128], strides = [1, 1]} : vector<16x512xf32> to vector<16x128xf32>
    %25 = arith.negf %24 : vector<16x128xf32>
    %26 = math.exp %25 : vector<16x128xf32>
    %cst_18 = arith.constant 1.000000e+00 : f32
    %27 = vector.broadcast %cst_18 : f32 to vector<16x128xf32>
    %28 = arith.addf %27, %26 : vector<16x128xf32>
    %29 = arith.divf %27, %28 : vector<16x128xf32>
    %30 = vector.extract_strided_slice %23 {offsets = [0, 128], sizes = [16, 128], strides = [1, 1]} : vector<16x512xf32> to vector<16x128xf32>
    %31 = arith.negf %30 : vector<16x128xf32>
    %32 = math.exp %31 : vector<16x128xf32>
    %cst_19 = arith.constant 1.000000e+00 : f32
    %33 = vector.broadcast %cst_19 : f32 to vector<16x128xf32>
    %34 = arith.addf %33, %32 : vector<16x128xf32>
    %35 = arith.divf %33, %34 : vector<16x128xf32>
    %36 = vector.extract_strided_slice %23 {offsets = [0, 256], sizes = [16, 128], strides = [1, 1]} : vector<16x512xf32> to vector<16x128xf32>
    %37 = math.tanh %36 : vector<16x128xf32>
    %38 = vector.extract_strided_slice %23 {offsets = [0, 384], sizes = [16, 128], strides = [1, 1]} : vector<16x512xf32> to vector<16x128xf32>
    %39 = arith.negf %38 : vector<16x128xf32>
    %40 = math.exp %39 : vector<16x128xf32>
    %cst_20 = arith.constant 1.000000e+00 : f32
    %41 = vector.broadcast %cst_20 : f32 to vector<16x128xf32>
    %42 = arith.addf %41, %40 : vector<16x128xf32>
    %43 = arith.divf %41, %42 : vector<16x128xf32>
    %44 = arith.mulf %35, %17 : vector<16x128xf32>
    %45 = arith.mulf %29, %37 : vector<16x128xf32>
    %46 = arith.addf %44, %45 : vector<16x128xf32>
    %47 = math.tanh %46 : vector<16x128xf32>
    %48 = arith.mulf %43, %47 : vector<16x128xf32>
    %49 = arith.truncf %48 : vector<16x128xf32> to vector<16x128xbf16>
    %cst_21 = arith.constant dense<0.000000e+00> : vector<16x512xf32>
    %50 = tpu.matmul %49, %1, %cst_21 {dimension_numbers = #tpu.dot_dimension_numbers<[1], [0], [0], [1], [0, 0, 1, 1], [], []>} : vector<16x128xbf16>, vector<128x512xbf16>, vector<16x512xf32> -> vector<16x512xf32>
    %51 = vector.broadcast %3 : vector<1x512xf32> to vector<16x512xf32>
    %52 = arith.addf %50, %51 : vector<16x512xf32>
    %53 = arith.truncf %18 : vector<16x128xf32> to vector<16x128xbf16>
    %cst_22 = arith.constant dense<0.000000e+00> : vector<16x512xf32>
    %54 = tpu.matmul %53, %2, %cst_22 {dimension_numbers = #tpu.dot_dimension_numbers<[1], [0], [0], [1], [0, 0, 1, 1], [], []>} : vector<16x128xbf16>, vector<128x512xbf16>, vector<16x512xf32> -> vector<16x512xf32>
    %55 = arith.addf %52, %54 : vector<16x512xf32>
    %56 = vector.extract_strided_slice %55 {offsets = [0, 0], sizes = [16, 128], strides = [1, 1]} : vector<16x512xf32> to vector<16x128xf32>
    %57 = arith.negf %56 : vector<16x128xf32>
    %58 = math.exp %57 : vector<16x128xf32>
    %cst_23 = arith.constant 1.000000e+00 : f32
    %59 = vector.broadcast %cst_23 : f32 to vector<16x128xf32>
    %60 = arith.addf %59, %58 : vector<16x128xf32>
    %61 = arith.divf %59, %60 : vector<16x128xf32>
    %62 = vector.extract_strided_slice %55 {offsets = [0, 128], sizes = [16, 128], strides = [1, 1]} : vector<16x512xf32> to vector<16x128xf32>
    %63 = arith.negf %62 : vector<16x128xf32>
    %64 = math.exp %63 : vector<16x128xf32>
    %cst_24 = arith.constant 1.000000e+00 : f32
    %65 = vector.broadcast %cst_24 : f32 to vector<16x128xf32>
    %66 = arith.addf %65, %64 : vector<16x128xf32>
    %67 = arith.divf %65, %66 : vector<16x128xf32>
    %68 = vector.extract_strided_slice %55 {offsets = [0, 256], sizes = [16, 128], strides = [1, 1]} : vector<16x512xf32> to vector<16x128xf32>
    %69 = math.tanh %68 : vector<16x128xf32>
    %70 = vector.extract_strided_slice %55 {offsets = [0, 384], sizes = [16, 128], strides = [1, 1]} : vector<16x512xf32> to vector<16x128xf32>
    %71 = arith.negf %70 : vector<16x128xf32>
    %72 = math.exp %71 : vector<16x128xf32>
    %cst_25 = arith.constant 1.000000e+00 : f32
    %73 = vector.broadcast %cst_25 : f32 to vector<16x128xf32>
    %74 = arith.addf %73, %72 : vector<16x128xf32>
    %75 = arith.divf %73, %74 : vector<16x128xf32>
    %76 = arith.mulf %67, %19 : vector<16x128xf32>
    %77 = arith.mulf %61, %69 : vector<16x128xf32>
    %78 = arith.addf %76, %77 : vector<16x128xf32>
    %79 = math.tanh %78 : vector<16x128xf32>
    %80 = arith.mulf %75, %79 : vector<16x128xf32>
    %81 = arith.truncf %80 : vector<16x128xf32> to vector<16x128xbf16>
    %c0_26 = arith.constant 0 : index
    %c0_27 = arith.constant 0 : index
    %82 = vector.load %arg10[%c0_26, %c0_27] : memref<16x1024xbf16, #tpu.memory_space<vmem>>, vector<16x128xbf16>
    tpu.vector_store %arg10[%c0_26, %c0_27], %81 {strides = array<i32>} : memref<16x1024xbf16, #tpu.memory_space<vmem>>, vector<16x128xbf16>,
    %83 = vector.extract_strided_slice %15 {offsets = [16, 0], sizes = [16, 512], strides = [1, 1]} : vector<128x512xf32> to vector<16x512xf32>
    %84 = arith.truncf %48 : vector<16x128xf32> to vector<16x128xbf16>
    %cst_28 = arith.constant dense<0.000000e+00> : vector<16x512xf32>
    %85 = tpu.matmul %84, %0, %cst_28 {dimension_numbers = #tpu.dot_dimension_numbers<[1], [0], [0], [1], [0, 0, 1, 1], [], []>} : vector<16x128xbf16>, vector<128x512xbf16>, vector<16x512xf32> -> vector<16x512xf32>
    %86 = arith.addf %83, %85 : vector<16x512xf32>
    %87 = vector.extract_strided_slice %86 {offsets = [0, 0], sizes = [16, 128], strides = [1, 1]} : vector<16x512xf32> to vector<16x128xf32>
    %88 = arith.negf %87 : vector<16x128xf32>
    %89 = math.exp %88 : vector<16x128xf32>
    %cst_29 = arith.constant 1.000000e+00 : f32
    %90 = vector.broadcast %cst_29 : f32 to vector<16x128xf32>
    %91 = arith.addf %90, %89 : vector<16x128xf32>
    %92 = arith.divf %90, %91 : vector<16x128xf32>
    %93 = vector.extract_strided_slice %86 {offsets = [0, 128], sizes = [16, 128], strides = [1, 1]} : vector<16x512xf32> to vector<16x128xf32>
    %94 = arith.negf %93 : vector<16x128xf32>
    %95 = math.exp %94 : vector<16x128xf32>
    %cst_30 = arith.constant 1.000000e+00 : f32
    %96 = vector.broadcast %cst_30 : f32 to vector<16x128xf32>
    %97 = arith.addf %96, %95 : vector<16x128xf32>
    %98 = arith.divf %96, %97 : vector<16x128xf32>
    %99 = vector.extract_strided_slice %86 {offsets = [0, 256], sizes = [16, 128], strides = [1, 1]} : vector<16x512xf32> to vector<16x128xf32>
    %100 = math.tanh %99 : vector<16x128xf32>
    %101 = vector.extract_strided_slice %86 {offsets = [0, 384], sizes = [16, 128], strides = [1, 1]} : vector<16x512xf32> to vector<16x128xf32>
    %102 = arith.negf %101 : vector<16x128xf32>
    %103 = math.exp %102 : vector<16x128xf32>
    %cst_31 = arith.constant 1.000000e+00 : f32
    %104 = vector.broadcast %cst_31 : f32 to vector<16x128xf32>
    %105 = arith.addf %104, %103 : vector<16x128xf32>
    %106 = arith.divf %104, %105 : vector<16x128xf32>
    %107 = arith.mulf %98, %46 : vector<16x128xf32>
    %108 = arith.mulf %92, %100 : vector<16x128xf32>
    %109 = arith.addf %107, %108 : vector<16x128xf32>
    %110 = math.tanh %109 : vector<16x128xf32>
    %111 = arith.mulf %106, %110 : vector<16x128xf32>
    %112 = arith.truncf %111 : vector<16x128xf32> to vector<16x128xbf16>
    %cst_32 = arith.constant dense<0.000000e+00> : vector<16x512xf32>
    %113 = tpu.matmul %112, %1, %cst_32 {dimension_numbers = #tpu.dot_dimension_numbers<[1], [0], [0], [1], [0, 0, 1, 1], [], []>} : vector<16x128xbf16>, vector<128x512xbf16>, vector<16x512xf32> -> vector<16x512xf32>
    %114 = vector.broadcast %3 : vector<1x512xf32> to vector<16x512xf32>
    %115 = arith.addf %113, %114 : vector<16x512xf32>
    %116 = arith.truncf %80 : vector<16x128xf32> to vector<16x128xbf16>
    %cst_33 = arith.constant dense<0.000000e+00> : vector<16x512xf32>
    %117 = tpu.matmul %116, %2, %cst_33 {dimension_numbers = #tpu.dot_dimension_numbers<[1], [0], [0], [1], [0, 0, 1, 1], [], []>} : vector<16x128xbf16>, vector<128x512xbf16>, vector<16x512xf32> -> vector<16x512xf32>
    %118 = arith.addf %115, %117 : vector<16x512xf32>
    %119 = vector.extract_strided_slice %118 {offsets = [0, 0], sizes = [16, 128], strides = [1, 1]} : vector<16x512xf32> to vector<16x128xf32>
    %120 = arith.negf %119 : vector<16x128xf32>
    %121 = math.exp %120 : vector<16x128xf32>
    %cst_34 = arith.constant 1.000000e+00 : f32
    %122 = vector.broadcast %cst_34 : f32 to vector<16x128xf32>
    %123 = arith.addf %122, %121 : vector<16x128xf32>
    %124 = arith.divf %122, %123 : vector<16x128xf32>
    %125 = vector.extract_strided_slice %118 {offsets = [0, 128], sizes = [16, 128], strides = [1, 1]} : vector<16x512xf32> to vector<16x128xf32>
    %126 = arith.negf %125 : vector<16x128xf32>
    %127 = math.exp %126 : vector<16x128xf32>
    %cst_35 = arith.constant 1.000000e+00 : f32
    %128 = vector.broadcast %cst_35 : f32 to vector<16x128xf32>
    %129 = arith.addf %128, %127 : vector<16x128xf32>
    %130 = arith.divf %128, %129 : vector<16x128xf32>
    %131 = vector.extract_strided_slice %118 {offsets = [0, 256], sizes = [16, 128], strides = [1, 1]} : vector<16x512xf32> to vector<16x128xf32>
    %132 = math.tanh %131 : vector<16x128xf32>
    %133 = vector.extract_strided_slice %118 {offsets = [0, 384], sizes = [16, 128], strides = [1, 1]} : vector<16x512xf32> to vector<16x128xf32>
    %134 = arith.negf %133 : vector<16x128xf32>
    %135 = math.exp %134 : vector<16x128xf32>
    %cst_36 = arith.constant 1.000000e+00 : f32
    %136 = vector.broadcast %cst_36 : f32 to vector<16x128xf32>
    %137 = arith.addf %136, %135 : vector<16x128xf32>
    %138 = arith.divf %136, %137 : vector<16x128xf32>
    %139 = arith.mulf %130, %78 : vector<16x128xf32>
    %140 = arith.mulf %124, %132 : vector<16x128xf32>
    %141 = arith.addf %139, %140 : vector<16x128xf32>
    %142 = math.tanh %141 : vector<16x128xf32>
    %143 = arith.mulf %138, %142 : vector<16x128xf32>
    %144 = arith.truncf %143 : vector<16x128xf32> to vector<16x128xbf16>
    %c0_37 = arith.constant 0 : index
    %c128 = arith.constant 128 : index
    %145 = vector.load %arg10[%c0_37, %c128] : memref<16x1024xbf16, #tpu.memory_space<vmem>>, vector<16x128xbf16>
    tpu.vector_store %arg10[%c0_37, %c128], %144 {strides = array<i32>} : memref<16x1024xbf16, #tpu.memory_space<vmem>>, vector<16x128xbf16>,
    %146 = vector.extract_strided_slice %15 {offsets = [32, 0], sizes = [16, 512], strides = [1, 1]} : vector<128x512xf32> to vector<16x512xf32>
    %147 = arith.truncf %111 : vector<16x128xf32> to vector<16x128xbf16>
    %cst_38 = arith.constant dense<0.000000e+00> : vector<16x512xf32>
    %148 = tpu.matmul %147, %0, %cst_38 {dimension_numbers = #tpu.dot_dimension_numbers<[1], [0], [0], [1], [0, 0, 1, 1], [], []>} : vector<16x128xbf16>, vector<128x512xbf16>, vector<16x512xf32> -> vector<16x512xf32>
    %149 = arith.addf %146, %148 : vector<16x512xf32>
    %150 = vector.extract_strided_slice %149 {offsets = [0, 0], sizes = [16, 128], strides = [1, 1]} : vector<16x512xf32> to vector<16x128xf32>
    %151 = arith.negf %150 : vector<16x128xf32>
    %152 = math.exp %151 : vector<16x128xf32>
    %cst_39 = arith.constant 1.000000e+00 : f32
    %153 = vector.broadcast %cst_39 : f32 to vector<16x128xf32>
    %154 = arith.addf %153, %152 : vector<16x128xf32>
    %155 = arith.divf %153, %154 : vector<16x128xf32>
    %156 = vector.extract_strided_slice %149 {offsets = [0, 128], sizes = [16, 128], strides = [1, 1]} : vector<16x512xf32> to vector<16x128xf32>
    %157 = arith.negf %156 : vector<16x128xf32>
    %158 = math.exp %157 : vector<16x128xf32>
    %cst_40 = arith.constant 1.000000e+00 : f32
    %159 = vector.broadcast %cst_40 : f32 to vector<16x128xf32>
    %160 = arith.addf %159, %158 : vector<16x128xf32>
    %161 = arith.divf %159, %160 : vector<16x128xf32>
    %162 = vector.extract_strided_slice %149 {offsets = [0, 256], sizes = [16, 128], strides = [1, 1]} : vector<16x512xf32> to vector<16x128xf32>
    %163 = math.tanh %162 : vector<16x128xf32>
    %164 = vector.extract_strided_slice %149 {offsets = [0, 384], sizes = [16, 128], strides = [1, 1]} : vector<16x512xf32> to vector<16x128xf32>
    %165 = arith.negf %164 : vector<16x128xf32>
    %166 = math.exp %165 : vector<16x128xf32>
    %cst_41 = arith.constant 1.000000e+00 : f32
    %167 = vector.broadcast %cst_41 : f32 to vector<16x128xf32>
    %168 = arith.addf %167, %166 : vector<16x128xf32>
    %169 = arith.divf %167, %168 : vector<16x128xf32>
    %170 = arith.mulf %161, %109 : vector<16x128xf32>
    %171 = arith.mulf %155, %163 : vector<16x128xf32>
    %172 = arith.addf %170, %171 : vector<16x128xf32>
    %173 = math.tanh %172 : vector<16x128xf32>
    %174 = arith.mulf %169, %173 : vector<16x128xf32>
    %175 = arith.truncf %174 : vector<16x128xf32> to vector<16x128xbf16>
    %cst_42 = arith.constant dense<0.000000e+00> : vector<16x512xf32>
    %176 = tpu.matmul %175, %1, %cst_42 {dimension_numbers = #tpu.dot_dimension_numbers<[1], [0], [0], [1], [0, 0, 1, 1], [], []>} : vector<16x128xbf16>, vector<128x512xbf16>, vector<16x512xf32> -> vector<16x512xf32>
    %177 = vector.broadcast %3 : vector<1x512xf32> to vector<16x512xf32>
    %178 = arith.addf %176, %177 : vector<16x512xf32>
    %179 = arith.truncf %143 : vector<16x128xf32> to vector<16x128xbf16>
    %cst_43 = arith.constant dense<0.000000e+00> : vector<16x512xf32>
    %180 = tpu.matmul %179, %2, %cst_43 {dimension_numbers = #tpu.dot_dimension_numbers<[1], [0], [0], [1], [0, 0, 1, 1], [], []>} : vector<16x128xbf16>, vector<128x512xbf16>, vector<16x512xf32> -> vector<16x512xf32>
    %181 = arith.addf %178, %180 : vector<16x512xf32>
    %182 = vector.extract_strided_slice %181 {offsets = [0, 0], sizes = [16, 128], strides = [1, 1]} : vector<16x512xf32> to vector<16x128xf32>
    %183 = arith.negf %182 : vector<16x128xf32>
    %184 = math.exp %183 : vector<16x128xf32>
    %cst_44 = arith.constant 1.000000e+00 : f32
    %185 = vector.broadcast %cst_44 : f32 to vector<16x128xf32>
    %186 = arith.addf %185, %184 : vector<16x128xf32>
    %187 = arith.divf %185, %186 : vector<16x128xf32>
    %188 = vector.extract_strided_slice %181 {offsets = [0, 128], sizes = [16, 128], strides = [1, 1]} : vector<16x512xf32> to vector<16x128xf32>
    %189 = arith.negf %188 : vector<16x128xf32>
    %190 = math.exp %189 : vector<16x128xf32>
    %cst_45 = arith.constant 1.000000e+00 : f32
    %191 = vector.broadcast %cst_45 : f32 to vector<16x128xf32>
    %192 = arith.addf %191, %190 : vector<16x128xf32>
    %193 = arith.divf %191, %192 : vector<16x128xf32>
    %194 = vector.extract_strided_slice %181 {offsets = [0, 256], sizes = [16, 128], strides = [1, 1]} : vector<16x512xf32> to vector<16x128xf32>
    %195 = math.tanh %194 : vector<16x128xf32>
    %196 = vector.extract_strided_slice %181 {offsets = [0, 384], sizes = [16, 128], strides = [1, 1]} : vector<16x512xf32> to vector<16x128xf32>
    %197 = arith.negf %196 : vector<16x128xf32>
    %198 = math.exp %197 : vector<16x128xf32>
    %cst_46 = arith.constant 1.000000e+00 : f32
    %199 = vector.broadcast %cst_46 : f32 to vector<16x128xf32>
    %200 = arith.addf %199, %198 : vector<16x128xf32>
    %201 = arith.divf %199, %200 : vector<16x128xf32>
    %202 = arith.mulf %193, %141 : vector<16x128xf32>
    %203 = arith.mulf %187, %195 : vector<16x128xf32>
    %204 = arith.addf %202, %203 : vector<16x128xf32>
    %205 = math.tanh %204 : vector<16x128xf32>
    %206 = arith.mulf %201, %205 : vector<16x128xf32>
    %207 = arith.truncf %206 : vector<16x128xf32> to vector<16x128xbf16>
    %c0_47 = arith.constant 0 : index
    %c256 = arith.constant 256 : index
    %208 = vector.load %arg10[%c0_47, %c256] : memref<16x1024xbf16, #tpu.memory_space<vmem>>, vector<16x128xbf16>
    tpu.vector_store %arg10[%c0_47, %c256], %207 {strides = array<i32>} : memref<16x1024xbf16, #tpu.memory_space<vmem>>, vector<16x128xbf16>,
    %209 = vector.extract_strided_slice %15 {offsets = [48, 0], sizes = [16, 512], strides = [1, 1]} : vector<128x512xf32> to vector<16x512xf32>
    %210 = arith.truncf %174 : vector<16x128xf32> to vector<16x128xbf16>
    %cst_48 = arith.constant dense<0.000000e+00> : vector<16x512xf32>
    %211 = tpu.matmul %210, %0, %cst_48 {dimension_numbers = #tpu.dot_dimension_numbers<[1], [0], [0], [1], [0, 0, 1, 1], [], []>} : vector<16x128xbf16>, vector<128x512xbf16>, vector<16x512xf32> -> vector<16x512xf32>
    %212 = arith.addf %209, %211 : vector<16x512xf32>
    %213 = vector.extract_strided_slice %212 {offsets = [0, 0], sizes = [16, 128], strides = [1, 1]} : vector<16x512xf32> to vector<16x128xf32>
    %214 = arith.negf %213 : vector<16x128xf32>
    %215 = math.exp %214 : vector<16x128xf32>
    %cst_49 = arith.constant 1.000000e+00 : f32
    %216 = vector.broadcast %cst_49 : f32 to vector<16x128xf32>
    %217 = arith.addf %216, %215 : vector<16x128xf32>
    %218 = arith.divf %216, %217 : vector<16x128xf32>
    %219 = vector.extract_strided_slice %212 {offsets = [0, 128], sizes = [16, 128], strides = [1, 1]} : vector<16x512xf32> to vector<16x128xf32>
    %220 = arith.negf %219 : vector<16x128xf32>
    %221 = math.exp %220 : vector<16x128xf32>
    %cst_50 = arith.constant 1.000000e+00 : f32
    %222 = vector.broadcast %cst_50 : f32 to vector<16x128xf32>
    %223 = arith.addf %222, %221 : vector<16x128xf32>
    %224 = arith.divf %222, %223 : vector<16x128xf32>
    %225 = vector.extract_strided_slice %212 {offsets = [0, 256], sizes = [16, 128], strides = [1, 1]} : vector<16x512xf32> to vector<16x128xf32>
    %226 = math.tanh %225 : vector<16x128xf32>
    %227 = vector.extract_strided_slice %212 {offsets = [0, 384], sizes = [16, 128], strides = [1, 1]} : vector<16x512xf32> to vector<16x128xf32>
    %228 = arith.negf %227 : vector<16x128xf32>
    %229 = math.exp %228 : vector<16x128xf32>
    %cst_51 = arith.constant 1.000000e+00 : f32
    %230 = vector.broadcast %cst_51 : f32 to vector<16x128xf32>
    %231 = arith.addf %230, %229 : vector<16x128xf32>
    %232 = arith.divf %230, %231 : vector<16x128xf32>
    %233 = arith.mulf %224, %172 : vector<16x128xf32>
    %234 = arith.mulf %218, %226 : vector<16x128xf32>
    %235 = arith.addf %233, %234 : vector<16x128xf32>
    %236 = math.tanh %235 : vector<16x128xf32>
    %237 = arith.mulf %232, %236 : vector<16x128xf32>
    %238 = arith.truncf %237 : vector<16x128xf32> to vector<16x128xbf16>
    %cst_52 = arith.constant dense<0.000000e+00> : vector<16x512xf32>
    %239 = tpu.matmul %238, %1, %cst_52 {dimension_numbers = #tpu.dot_dimension_numbers<[1], [0], [0], [1], [0, 0, 1, 1], [], []>} : vector<16x128xbf16>, vector<128x512xbf16>, vector<16x512xf32> -> vector<16x512xf32>
    %240 = vector.broadcast %3 : vector<1x512xf32> to vector<16x512xf32>
    %241 = arith.addf %239, %240 : vector<16x512xf32>
    %242 = arith.truncf %206 : vector<16x128xf32> to vector<16x128xbf16>
    %cst_53 = arith.constant dense<0.000000e+00> : vector<16x512xf32>
    %243 = tpu.matmul %242, %2, %cst_53 {dimension_numbers = #tpu.dot_dimension_numbers<[1], [0], [0], [1], [0, 0, 1, 1], [], []>} : vector<16x128xbf16>, vector<128x512xbf16>, vector<16x512xf32> -> vector<16x512xf32>
    %244 = arith.addf %241, %243 : vector<16x512xf32>
    %245 = vector.extract_strided_slice %244 {offsets = [0, 0], sizes = [16, 128], strides = [1, 1]} : vector<16x512xf32> to vector<16x128xf32>
    %246 = arith.negf %245 : vector<16x128xf32>
    %247 = math.exp %246 : vector<16x128xf32>
    %cst_54 = arith.constant 1.000000e+00 : f32
    %248 = vector.broadcast %cst_54 : f32 to vector<16x128xf32>
    %249 = arith.addf %248, %247 : vector<16x128xf32>
    %250 = arith.divf %248, %249 : vector<16x128xf32>
    %251 = vector.extract_strided_slice %244 {offsets = [0, 128], sizes = [16, 128], strides = [1, 1]} : vector<16x512xf32> to vector<16x128xf32>
    %252 = arith.negf %251 : vector<16x128xf32>
    %253 = math.exp %252 : vector<16x128xf32>
    %cst_55 = arith.constant 1.000000e+00 : f32
    %254 = vector.broadcast %cst_55 : f32 to vector<16x128xf32>
    %255 = arith.addf %254, %253 : vector<16x128xf32>
    %256 = arith.divf %254, %255 : vector<16x128xf32>
    %257 = vector.extract_strided_slice %244 {offsets = [0, 256], sizes = [16, 128], strides = [1, 1]} : vector<16x512xf32> to vector<16x128xf32>
    %258 = math.tanh %257 : vector<16x128xf32>
    %259 = vector.extract_strided_slice %244 {offsets = [0, 384], sizes = [16, 128], strides = [1, 1]} : vector<16x512xf32> to vector<16x128xf32>
    %260 = arith.negf %259 : vector<16x128xf32>
    %261 = math.exp %260 : vector<16x128xf32>
    %cst_56 = arith.constant 1.000000e+00 : f32
    %262 = vector.broadcast %cst_56 : f32 to vector<16x128xf32>
    %263 = arith.addf %262, %261 : vector<16x128xf32>
    %264 = arith.divf %262, %263 : vector<16x128xf32>
    %265 = arith.mulf %256, %204 : vector<16x128xf32>
    %266 = arith.mulf %250, %258 : vector<16x128xf32>
    %267 = arith.addf %265, %266 : vector<16x128xf32>
    %268 = math.tanh %267 : vector<16x128xf32>
    %269 = arith.mulf %264, %268 : vector<16x128xf32>
    %270 = arith.truncf %269 : vector<16x128xf32> to vector<16x128xbf16>
    %c0_57 = arith.constant 0 : index
    %c384 = arith.constant 384 : index
    %271 = vector.load %arg10[%c0_57, %c384] : memref<16x1024xbf16, #tpu.memory_space<vmem>>, vector<16x128xbf16>
    tpu.vector_store %arg10[%c0_57, %c384], %270 {strides = array<i32>} : memref<16x1024xbf16, #tpu.memory_space<vmem>>, vector<16x128xbf16>,
    %272 = vector.extract_strided_slice %15 {offsets = [64, 0], sizes = [16, 512], strides = [1, 1]} : vector<128x512xf32> to vector<16x512xf32>
    %273 = arith.truncf %237 : vector<16x128xf32> to vector<16x128xbf16>
    %cst_58 = arith.constant dense<0.000000e+00> : vector<16x512xf32>
    %274 = tpu.matmul %273, %0, %cst_58 {dimension_numbers = #tpu.dot_dimension_numbers<[1], [0], [0], [1], [0, 0, 1, 1], [], []>} : vector<16x128xbf16>, vector<128x512xbf16>, vector<16x512xf32> -> vector<16x512xf32>
    %275 = arith.addf %272, %274 : vector<16x512xf32>
    %276 = vector.extract_strided_slice %275 {offsets = [0, 0], sizes = [16, 128], strides = [1, 1]} : vector<16x512xf32> to vector<16x128xf32>
    %277 = arith.negf %276 : vector<16x128xf32>
    %278 = math.exp %277 : vector<16x128xf32>
    %cst_59 = arith.constant 1.000000e+00 : f32
    %279 = vector.broadcast %cst_59 : f32 to vector<16x128xf32>
    %280 = arith.addf %279, %278 : vector<16x128xf32>
    %281 = arith.divf %279, %280 : vector<16x128xf32>
    %282 = vector.extract_strided_slice %275 {offsets = [0, 128], sizes = [16, 128], strides = [1, 1]} : vector<16x512xf32> to vector<16x128xf32>
    %283 = arith.negf %282 : vector<16x128xf32>
    %284 = math.exp %283 : vector<16x128xf32>
    %cst_60 = arith.constant 1.000000e+00 : f32
    %285 = vector.broadcast %cst_60 : f32 to vector<16x128xf32>
    %286 = arith.addf %285, %284 : vector<16x128xf32>
    %287 = arith.divf %285, %286 : vector<16x128xf32>
    %288 = vector.extract_strided_slice %275 {offsets = [0, 256], sizes = [16, 128], strides = [1, 1]} : vector<16x512xf32> to vector<16x128xf32>
    %289 = math.tanh %288 : vector<16x128xf32>
    %290 = vector.extract_strided_slice %275 {offsets = [0, 384], sizes = [16, 128], strides = [1, 1]} : vector<16x512xf32> to vector<16x128xf32>
    %291 = arith.negf %290 : vector<16x128xf32>
    %292 = math.exp %291 : vector<16x128xf32>
    %cst_61 = arith.constant 1.000000e+00 : f32
    %293 = vector.broadcast %cst_61 : f32 to vector<16x128xf32>
    %294 = arith.addf %293, %292 : vector<16x128xf32>
    %295 = arith.divf %293, %294 : vector<16x128xf32>
    %296 = arith.mulf %287, %235 : vector<16x128xf32>
    %297 = arith.mulf %281, %289 : vector<16x128xf32>
    %298 = arith.addf %296, %297 : vector<16x128xf32>
    %299 = math.tanh %298 : vector<16x128xf32>
    %300 = arith.mulf %295, %299 : vector<16x128xf32>
    %301 = arith.truncf %300 : vector<16x128xf32> to vector<16x128xbf16>
    %cst_62 = arith.constant dense<0.000000e+00> : vector<16x512xf32>
    %302 = tpu.matmul %301, %1, %cst_62 {dimension_numbers = #tpu.dot_dimension_numbers<[1], [0], [0], [1], [0, 0, 1, 1], [], []>} : vector<16x128xbf16>, vector<128x512xbf16>, vector<16x512xf32> -> vector<16x512xf32>
    %303 = vector.broadcast %3 : vector<1x512xf32> to vector<16x512xf32>
    %304 = arith.addf %302, %303 : vector<16x512xf32>
    %305 = arith.truncf %269 : vector<16x128xf32> to vector<16x128xbf16>
    %cst_63 = arith.constant dense<0.000000e+00> : vector<16x512xf32>
    %306 = tpu.matmul %305, %2, %cst_63 {dimension_numbers = #tpu.dot_dimension_numbers<[1], [0], [0], [1], [0, 0, 1, 1], [], []>} : vector<16x128xbf16>, vector<128x512xbf16>, vector<16x512xf32> -> vector<16x512xf32>
    %307 = arith.addf %304, %306 : vector<16x512xf32>
    %308 = vector.extract_strided_slice %307 {offsets = [0, 0], sizes = [16, 128], strides = [1, 1]} : vector<16x512xf32> to vector<16x128xf32>
    %309 = arith.negf %308 : vector<16x128xf32>
    %310 = math.exp %309 : vector<16x128xf32>
    %cst_64 = arith.constant 1.000000e+00 : f32
    %311 = vector.broadcast %cst_64 : f32 to vector<16x128xf32>
    %312 = arith.addf %311, %310 : vector<16x128xf32>
    %313 = arith.divf %311, %312 : vector<16x128xf32>
    %314 = vector.extract_strided_slice %307 {offsets = [0, 128], sizes = [16, 128], strides = [1, 1]} : vector<16x512xf32> to vector<16x128xf32>
    %315 = arith.negf %314 : vector<16x128xf32>
    %316 = math.exp %315 : vector<16x128xf32>
    %cst_65 = arith.constant 1.000000e+00 : f32
    %317 = vector.broadcast %cst_65 : f32 to vector<16x128xf32>
    %318 = arith.addf %317, %316 : vector<16x128xf32>
    %319 = arith.divf %317, %318 : vector<16x128xf32>
    %320 = vector.extract_strided_slice %307 {offsets = [0, 256], sizes = [16, 128], strides = [1, 1]} : vector<16x512xf32> to vector<16x128xf32>
    %321 = math.tanh %320 : vector<16x128xf32>
    %322 = vector.extract_strided_slice %307 {offsets = [0, 384], sizes = [16, 128], strides = [1, 1]} : vector<16x512xf32> to vector<16x128xf32>
    %323 = arith.negf %322 : vector<16x128xf32>
    %324 = math.exp %323 : vector<16x128xf32>
    %cst_66 = arith.constant 1.000000e+00 : f32
    %325 = vector.broadcast %cst_66 : f32 to vector<16x128xf32>
    %326 = arith.addf %325, %324 : vector<16x128xf32>
    %327 = arith.divf %325, %326 : vector<16x128xf32>
    %328 = arith.mulf %319, %267 : vector<16x128xf32>
    %329 = arith.mulf %313, %321 : vector<16x128xf32>
    %330 = arith.addf %328, %329 : vector<16x128xf32>
    %331 = math.tanh %330 : vector<16x128xf32>
    %332 = arith.mulf %327, %331 : vector<16x128xf32>
    %333 = arith.truncf %332 : vector<16x128xf32> to vector<16x128xbf16>
    %c0_67 = arith.constant 0 : index
    %c512 = arith.constant 512 : index
    %334 = vector.load %arg10[%c0_67, %c512] : memref<16x1024xbf16, #tpu.memory_space<vmem>>, vector<16x128xbf16>
    tpu.vector_store %arg10[%c0_67, %c512], %333 {strides = array<i32>} : memref<16x1024xbf16, #tpu.memory_space<vmem>>, vector<16x128xbf16>,
    %335 = vector.extract_strided_slice %15 {offsets = [80, 0], sizes = [16, 512], strides = [1, 1]} : vector<128x512xf32> to vector<16x512xf32>
    %336 = arith.truncf %300 : vector<16x128xf32> to vector<16x128xbf16>
    %cst_68 = arith.constant dense<0.000000e+00> : vector<16x512xf32>
    %337 = tpu.matmul %336, %0, %cst_68 {dimension_numbers = #tpu.dot_dimension_numbers<[1], [0], [0], [1], [0, 0, 1, 1], [], []>} : vector<16x128xbf16>, vector<128x512xbf16>, vector<16x512xf32> -> vector<16x512xf32>
    %338 = arith.addf %335, %337 : vector<16x512xf32>
    %339 = vector.extract_strided_slice %338 {offsets = [0, 0], sizes = [16, 128], strides = [1, 1]} : vector<16x512xf32> to vector<16x128xf32>
    %340 = arith.negf %339 : vector<16x128xf32>
    %341 = math.exp %340 : vector<16x128xf32>
    %cst_69 = arith.constant 1.000000e+00 : f32
    %342 = vector.broadcast %cst_69 : f32 to vector<16x128xf32>
    %343 = arith.addf %342, %341 : vector<16x128xf32>
    %344 = arith.divf %342, %343 : vector<16x128xf32>
    %345 = vector.extract_strided_slice %338 {offsets = [0, 128], sizes = [16, 128], strides = [1, 1]} : vector<16x512xf32> to vector<16x128xf32>
    %346 = arith.negf %345 : vector<16x128xf32>
    %347 = math.exp %346 : vector<16x128xf32>
    %cst_70 = arith.constant 1.000000e+00 : f32
    %348 = vector.broadcast %cst_70 : f32 to vector<16x128xf32>
    %349 = arith.addf %348, %347 : vector<16x128xf32>
    %350 = arith.divf %348, %349 : vector<16x128xf32>
    %351 = vector.extract_strided_slice %338 {offsets = [0, 256], sizes = [16, 128], strides = [1, 1]} : vector<16x512xf32> to vector<16x128xf32>
    %352 = math.tanh %351 : vector<16x128xf32>
    %353 = vector.extract_strided_slice %338 {offsets = [0, 384], sizes = [16, 128], strides = [1, 1]} : vector<16x512xf32> to vector<16x128xf32>
    %354 = arith.negf %353 : vector<16x128xf32>
    %355 = math.exp %354 : vector<16x128xf32>
    %cst_71 = arith.constant 1.000000e+00 : f32
    %356 = vector.broadcast %cst_71 : f32 to vector<16x128xf32>
    %357 = arith.addf %356, %355 : vector<16x128xf32>
    %358 = arith.divf %356, %357 : vector<16x128xf32>
    %359 = arith.mulf %350, %298 : vector<16x128xf32>
    %360 = arith.mulf %344, %352 : vector<16x128xf32>
    %361 = arith.addf %359, %360 : vector<16x128xf32>
    %362 = math.tanh %361 : vector<16x128xf32>
    %363 = arith.mulf %358, %362 : vector<16x128xf32>
    %364 = arith.truncf %363 : vector<16x128xf32> to vector<16x128xbf16>
    %cst_72 = arith.constant dense<0.000000e+00> : vector<16x512xf32>
    %365 = tpu.matmul %364, %1, %cst_72 {dimension_numbers = #tpu.dot_dimension_numbers<[1], [0], [0], [1], [0, 0, 1, 1], [], []>} : vector<16x128xbf16>, vector<128x512xbf16>, vector<16x512xf32> -> vector<16x512xf32>
    %366 = vector.broadcast %3 : vector<1x512xf32> to vector<16x512xf32>
    %367 = arith.addf %365, %366 : vector<16x512xf32>
    %368 = arith.truncf %332 : vector<16x128xf32> to vector<16x128xbf16>
    %cst_73 = arith.constant dense<0.000000e+00> : vector<16x512xf32>
    %369 = tpu.matmul %368, %2, %cst_73 {dimension_numbers = #tpu.dot_dimension_numbers<[1], [0], [0], [1], [0, 0, 1, 1], [], []>} : vector<16x128xbf16>, vector<128x512xbf16>, vector<16x512xf32> -> vector<16x512xf32>
    %370 = arith.addf %367, %369 : vector<16x512xf32>
    %371 = vector.extract_strided_slice %370 {offsets = [0, 0], sizes = [16, 128], strides = [1, 1]} : vector<16x512xf32> to vector<16x128xf32>
    %372 = arith.negf %371 : vector<16x128xf32>
    %373 = math.exp %372 : vector<16x128xf32>
    %cst_74 = arith.constant 1.000000e+00 : f32
    %374 = vector.broadcast %cst_74 : f32 to vector<16x128xf32>
    %375 = arith.addf %374, %373 : vector<16x128xf32>
    %376 = arith.divf %374, %375 : vector<16x128xf32>
    %377 = vector.extract_strided_slice %370 {offsets = [0, 128], sizes = [16, 128], strides = [1, 1]} : vector<16x512xf32> to vector<16x128xf32>
    %378 = arith.negf %377 : vector<16x128xf32>
    %379 = math.exp %378 : vector<16x128xf32>
    %cst_75 = arith.constant 1.000000e+00 : f32
    %380 = vector.broadcast %cst_75 : f32 to vector<16x128xf32>
    %381 = arith.addf %380, %379 : vector<16x128xf32>
    %382 = arith.divf %380, %381 : vector<16x128xf32>
    %383 = vector.extract_strided_slice %370 {offsets = [0, 256], sizes = [16, 128], strides = [1, 1]} : vector<16x512xf32> to vector<16x128xf32>
    %384 = math.tanh %383 : vector<16x128xf32>
    %385 = vector.extract_strided_slice %370 {offsets = [0, 384], sizes = [16, 128], strides = [1, 1]} : vector<16x512xf32> to vector<16x128xf32>
    %386 = arith.negf %385 : vector<16x128xf32>
    %387 = math.exp %386 : vector<16x128xf32>
    %cst_76 = arith.constant 1.000000e+00 : f32
    %388 = vector.broadcast %cst_76 : f32 to vector<16x128xf32>
    %389 = arith.addf %388, %387 : vector<16x128xf32>
    %390 = arith.divf %388, %389 : vector<16x128xf32>
    %391 = arith.mulf %382, %330 : vector<16x128xf32>
    %392 = arith.mulf %376, %384 : vector<16x128xf32>
    %393 = arith.addf %391, %392 : vector<16x128xf32>
    %394 = math.tanh %393 : vector<16x128xf32>
    %395 = arith.mulf %390, %394 : vector<16x128xf32>
    %396 = arith.truncf %395 : vector<16x128xf32> to vector<16x128xbf16>
    %c0_77 = arith.constant 0 : index
    %c640 = arith.constant 640 : index
    %397 = vector.load %arg10[%c0_77, %c640] : memref<16x1024xbf16, #tpu.memory_space<vmem>>, vector<16x128xbf16>
    tpu.vector_store %arg10[%c0_77, %c640], %396 {strides = array<i32>} : memref<16x1024xbf16, #tpu.memory_space<vmem>>, vector<16x128xbf16>,
    %398 = vector.extract_strided_slice %15 {offsets = [96, 0], sizes = [16, 512], strides = [1, 1]} : vector<128x512xf32> to vector<16x512xf32>
    %399 = arith.truncf %363 : vector<16x128xf32> to vector<16x128xbf16>
    %cst_78 = arith.constant dense<0.000000e+00> : vector<16x512xf32>
    %400 = tpu.matmul %399, %0, %cst_78 {dimension_numbers = #tpu.dot_dimension_numbers<[1], [0], [0], [1], [0, 0, 1, 1], [], []>} : vector<16x128xbf16>, vector<128x512xbf16>, vector<16x512xf32> -> vector<16x512xf32>
    %401 = arith.addf %398, %400 : vector<16x512xf32>
    %402 = vector.extract_strided_slice %401 {offsets = [0, 0], sizes = [16, 128], strides = [1, 1]} : vector<16x512xf32> to vector<16x128xf32>
    %403 = arith.negf %402 : vector<16x128xf32>
    %404 = math.exp %403 : vector<16x128xf32>
    %cst_79 = arith.constant 1.000000e+00 : f32
    %405 = vector.broadcast %cst_79 : f32 to vector<16x128xf32>
    %406 = arith.addf %405, %404 : vector<16x128xf32>
    %407 = arith.divf %405, %406 : vector<16x128xf32>
    %408 = vector.extract_strided_slice %401 {offsets = [0, 128], sizes = [16, 128], strides = [1, 1]} : vector<16x512xf32> to vector<16x128xf32>
    %409 = arith.negf %408 : vector<16x128xf32>
    %410 = math.exp %409 : vector<16x128xf32>
    %cst_80 = arith.constant 1.000000e+00 : f32
    %411 = vector.broadcast %cst_80 : f32 to vector<16x128xf32>
    %412 = arith.addf %411, %410 : vector<16x128xf32>
    %413 = arith.divf %411, %412 : vector<16x128xf32>
    %414 = vector.extract_strided_slice %401 {offsets = [0, 256], sizes = [16, 128], strides = [1, 1]} : vector<16x512xf32> to vector<16x128xf32>
    %415 = math.tanh %414 : vector<16x128xf32>
    %416 = vector.extract_strided_slice %401 {offsets = [0, 384], sizes = [16, 128], strides = [1, 1]} : vector<16x512xf32> to vector<16x128xf32>
    %417 = arith.negf %416 : vector<16x128xf32>
    %418 = math.exp %417 : vector<16x128xf32>
    %cst_81 = arith.constant 1.000000e+00 : f32
    %419 = vector.broadcast %cst_81 : f32 to vector<16x128xf32>
    %420 = arith.addf %419, %418 : vector<16x128xf32>
    %421 = arith.divf %419, %420 : vector<16x128xf32>
    %422 = arith.mulf %413, %361 : vector<16x128xf32>
    %423 = arith.mulf %407, %415 : vector<16x128xf32>
    %424 = arith.addf %422, %423 : vector<16x128xf32>
    %425 = math.tanh %424 : vector<16x128xf32>
    %426 = arith.mulf %421, %425 : vector<16x128xf32>
    %427 = arith.truncf %426 : vector<16x128xf32> to vector<16x128xbf16>
    %cst_82 = arith.constant dense<0.000000e+00> : vector<16x512xf32>
    %428 = tpu.matmul %427, %1, %cst_82 {dimension_numbers = #tpu.dot_dimension_numbers<[1], [0], [0], [1], [0, 0, 1, 1], [], []>} : vector<16x128xbf16>, vector<128x512xbf16>, vector<16x512xf32> -> vector<16x512xf32>
    %429 = vector.broadcast %3 : vector<1x512xf32> to vector<16x512xf32>
    %430 = arith.addf %428, %429 : vector<16x512xf32>
    %431 = arith.truncf %395 : vector<16x128xf32> to vector<16x128xbf16>
    %cst_83 = arith.constant dense<0.000000e+00> : vector<16x512xf32>
    %432 = tpu.matmul %431, %2, %cst_83 {dimension_numbers = #tpu.dot_dimension_numbers<[1], [0], [0], [1], [0, 0, 1, 1], [], []>} : vector<16x128xbf16>, vector<128x512xbf16>, vector<16x512xf32> -> vector<16x512xf32>
    %433 = arith.addf %430, %432 : vector<16x512xf32>
    %434 = vector.extract_strided_slice %433 {offsets = [0, 0], sizes = [16, 128], strides = [1, 1]} : vector<16x512xf32> to vector<16x128xf32>
    %435 = arith.negf %434 : vector<16x128xf32>
    %436 = math.exp %435 : vector<16x128xf32>
    %cst_84 = arith.constant 1.000000e+00 : f32
    %437 = vector.broadcast %cst_84 : f32 to vector<16x128xf32>
    %438 = arith.addf %437, %436 : vector<16x128xf32>
    %439 = arith.divf %437, %438 : vector<16x128xf32>
    %440 = vector.extract_strided_slice %433 {offsets = [0, 128], sizes = [16, 128], strides = [1, 1]} : vector<16x512xf32> to vector<16x128xf32>
    %441 = arith.negf %440 : vector<16x128xf32>
    %442 = math.exp %441 : vector<16x128xf32>
    %cst_85 = arith.constant 1.000000e+00 : f32
    %443 = vector.broadcast %cst_85 : f32 to vector<16x128xf32>
    %444 = arith.addf %443, %442 : vector<16x128xf32>
    %445 = arith.divf %443, %444 : vector<16x128xf32>
    %446 = vector.extract_strided_slice %433 {offsets = [0, 256], sizes = [16, 128], strides = [1, 1]} : vector<16x512xf32> to vector<16x128xf32>
    %447 = math.tanh %446 : vector<16x128xf32>
    %448 = vector.extract_strided_slice %433 {offsets = [0, 384], sizes = [16, 128], strides = [1, 1]} : vector<16x512xf32> to vector<16x128xf32>
    %449 = arith.negf %448 : vector<16x128xf32>
    %450 = math.exp %449 : vector<16x128xf32>
    %cst_86 = arith.constant 1.000000e+00 : f32
    %451 = vector.broadcast %cst_86 : f32 to vector<16x128xf32>
    %452 = arith.addf %451, %450 : vector<16x128xf32>
    %453 = arith.divf %451, %452 : vector<16x128xf32>
    %454 = arith.mulf %445, %393 : vector<16x128xf32>
    %455 = arith.mulf %439, %447 : vector<16x128xf32>
    %456 = arith.addf %454, %455 : vector<16x128xf32>
    %457 = math.tanh %456 : vector<16x128xf32>
    %458 = arith.mulf %453, %457 : vector<16x128xf32>
    %459 = arith.truncf %458 : vector<16x128xf32> to vector<16x128xbf16>
    %c0_87 = arith.constant 0 : index
    %c768 = arith.constant 768 : index
    %460 = vector.load %arg10[%c0_87, %c768] : memref<16x1024xbf16, #tpu.memory_space<vmem>>, vector<16x128xbf16>
    tpu.vector_store %arg10[%c0_87, %c768], %459 {strides = array<i32>} : memref<16x1024xbf16, #tpu.memory_space<vmem>>, vector<16x128xbf16>,
    %461 = vector.extract_strided_slice %15 {offsets = [112, 0], sizes = [16, 512], strides = [1, 1]} : vector<128x512xf32> to vector<16x512xf32>
    %462 = arith.truncf %426 : vector<16x128xf32> to vector<16x128xbf16>
    %cst_88 = arith.constant dense<0.000000e+00> : vector<16x512xf32>
    %463 = tpu.matmul %462, %0, %cst_88 {dimension_numbers = #tpu.dot_dimension_numbers<[1], [0], [0], [1], [0, 0, 1, 1], [], []>} : vector<16x128xbf16>, vector<128x512xbf16>, vector<16x512xf32> -> vector<16x512xf32>
    %464 = arith.addf %461, %463 : vector<16x512xf32>
    %465 = vector.extract_strided_slice %464 {offsets = [0, 0], sizes = [16, 128], strides = [1, 1]} : vector<16x512xf32> to vector<16x128xf32>
    %466 = arith.negf %465 : vector<16x128xf32>
    %467 = math.exp %466 : vector<16x128xf32>
    %cst_89 = arith.constant 1.000000e+00 : f32
    %468 = vector.broadcast %cst_89 : f32 to vector<16x128xf32>
    %469 = arith.addf %468, %467 : vector<16x128xf32>
    %470 = arith.divf %468, %469 : vector<16x128xf32>
    %471 = vector.extract_strided_slice %464 {offsets = [0, 128], sizes = [16, 128], strides = [1, 1]} : vector<16x512xf32> to vector<16x128xf32>
    %472 = arith.negf %471 : vector<16x128xf32>
    %473 = math.exp %472 : vector<16x128xf32>
    %cst_90 = arith.constant 1.000000e+00 : f32
    %474 = vector.broadcast %cst_90 : f32 to vector<16x128xf32>
    %475 = arith.addf %474, %473 : vector<16x128xf32>
    %476 = arith.divf %474, %475 : vector<16x128xf32>
    %477 = vector.extract_strided_slice %464 {offsets = [0, 256], sizes = [16, 128], strides = [1, 1]} : vector<16x512xf32> to vector<16x128xf32>
    %478 = math.tanh %477 : vector<16x128xf32>
    %479 = vector.extract_strided_slice %464 {offsets = [0, 384], sizes = [16, 128], strides = [1, 1]} : vector<16x512xf32> to vector<16x128xf32>
    %480 = arith.negf %479 : vector<16x128xf32>
    %481 = math.exp %480 : vector<16x128xf32>
    %cst_91 = arith.constant 1.000000e+00 : f32
    %482 = vector.broadcast %cst_91 : f32 to vector<16x128xf32>
    %483 = arith.addf %482, %481 : vector<16x128xf32>
    %484 = arith.divf %482, %483 : vector<16x128xf32>
    %485 = arith.mulf %476, %424 : vector<16x128xf32>
    %486 = arith.mulf %470, %478 : vector<16x128xf32>
    %487 = arith.addf %485, %486 : vector<16x128xf32>
    %488 = math.tanh %487 : vector<16x128xf32>
    %489 = arith.mulf %484, %488 : vector<16x128xf32>
    %490 = arith.truncf %489 : vector<16x128xf32> to vector<16x128xbf16>
    %cst_92 = arith.constant dense<0.000000e+00> : vector<16x512xf32>
    %491 = tpu.matmul %490, %1, %cst_92 {dimension_numbers = #tpu.dot_dimension_numbers<[1], [0], [0], [1], [0, 0, 1, 1], [], []>} : vector<16x128xbf16>, vector<128x512xbf16>, vector<16x512xf32> -> vector<16x512xf32>
    %492 = vector.broadcast %3 : vector<1x512xf32> to vector<16x512xf32>
    %493 = arith.addf %491, %492 : vector<16x512xf32>
    %494 = arith.truncf %458 : vector<16x128xf32> to vector<16x128xbf16>
    %cst_93 = arith.constant dense<0.000000e+00> : vector<16x512xf32>
    %495 = tpu.matmul %494, %2, %cst_93 {dimension_numbers = #tpu.dot_dimension_numbers<[1], [0], [0], [1], [0, 0, 1, 1], [], []>} : vector<16x128xbf16>, vector<128x512xbf16>, vector<16x512xf32> -> vector<16x512xf32>
    %496 = arith.addf %493, %495 : vector<16x512xf32>
    %497 = vector.extract_strided_slice %496 {offsets = [0, 0], sizes = [16, 128], strides = [1, 1]} : vector<16x512xf32> to vector<16x128xf32>
    %498 = arith.negf %497 : vector<16x128xf32>
    %499 = math.exp %498 : vector<16x128xf32>
    %cst_94 = arith.constant 1.000000e+00 : f32
    %500 = vector.broadcast %cst_94 : f32 to vector<16x128xf32>
    %501 = arith.addf %500, %499 : vector<16x128xf32>
    %502 = arith.divf %500, %501 : vector<16x128xf32>
    %503 = vector.extract_strided_slice %496 {offsets = [0, 128], sizes = [16, 128], strides = [1, 1]} : vector<16x512xf32> to vector<16x128xf32>
    %504 = arith.negf %503 : vector<16x128xf32>
    %505 = math.exp %504 : vector<16x128xf32>
    %cst_95 = arith.constant 1.000000e+00 : f32
    %506 = vector.broadcast %cst_95 : f32 to vector<16x128xf32>
    %507 = arith.addf %506, %505 : vector<16x128xf32>
    %508 = arith.divf %506, %507 : vector<16x128xf32>
    %509 = vector.extract_strided_slice %496 {offsets = [0, 256], sizes = [16, 128], strides = [1, 1]} : vector<16x512xf32> to vector<16x128xf32>
    %510 = math.tanh %509 : vector<16x128xf32>
    %511 = vector.extract_strided_slice %496 {offsets = [0, 384], sizes = [16, 128], strides = [1, 1]} : vector<16x512xf32> to vector<16x128xf32>
    %512 = arith.negf %511 : vector<16x128xf32>
    %513 = math.exp %512 : vector<16x128xf32>
    %cst_96 = arith.constant 1.000000e+00 : f32
    %514 = vector.broadcast %cst_96 : f32 to vector<16x128xf32>
    %515 = arith.addf %514, %513 : vector<16x128xf32>
    %516 = arith.divf %514, %515 : vector<16x128xf32>
    %517 = arith.mulf %508, %456 : vector<16x128xf32>
    %518 = arith.mulf %502, %510 : vector<16x128xf32>
    %519 = arith.addf %517, %518 : vector<16x128xf32>
    %520 = math.tanh %519 : vector<16x128xf32>
    %521 = arith.mulf %516, %520 : vector<16x128xf32>
    %522 = arith.truncf %521 : vector<16x128xf32> to vector<16x128xbf16>
    %c0_97 = arith.constant 0 : index
    %c896 = arith.constant 896 : index
    %523 = vector.load %arg10[%c0_97, %c896] : memref<16x1024xbf16, #tpu.memory_space<vmem>>, vector<16x128xbf16>
    tpu.vector_store %arg10[%c0_97, %c896], %522 {strides = array<i32>} : memref<16x1024xbf16, #tpu.memory_space<vmem>>, vector<16x128xbf16>,
    %c0_98 = arith.constant 0 : index
    %c0_99 = arith.constant 0 : index
    %524 = vector.load %arg10[%c0_98, %c0_99] : memref<16x1024xbf16, #tpu.memory_space<vmem>>, vector<16x1024xbf16>
    %c0_100 = arith.constant 0 : index
    %c0_101 = arith.constant 0 : index
    %525 = vector.load %arg7[%c0_100, %c0_101] : memref<1024x256xbf16, #tpu.memory_space<vmem>>, vector<1024x256xbf16>
    %cst_102 = arith.constant dense<0.000000e+00> : vector<16x256xf32>
    %526 = tpu.matmul %524, %525, %cst_102 {dimension_numbers = #tpu.dot_dimension_numbers<[1], [0], [0], [1], [0, 0, 1, 1], [], []>} : vector<16x1024xbf16>, vector<1024x256xbf16>, vector<16x256xf32> -> vector<16x256xf32>
    %c0_103 = arith.constant 0 : index
    %c0_104 = arith.constant 0 : index
    %527 = vector.load %arg8[%c0_103, %c0_104] : memref<1x256xf32, #tpu.memory_space<vmem>>, vector<1x256xf32>
    %528 = vector.broadcast %527 : vector<1x256xf32> to vector<16x256xf32>
    %529 = arith.addf %526, %528 : vector<16x256xf32>
    %c0_105 = arith.constant 0 : index
    %c0_106 = arith.constant 0 : index
    %530 = vector.load %arg9[%c0_105, %c0_106] : memref<16x256xf32, #tpu.memory_space<vmem>>, vector<16x256xf32>
    tpu.vector_store %arg9[%c0_105, %c0_106], %529 {strides = array<i32>} : memref<16x256xf32, #tpu.memory_space<vmem>>, vector<16x256xf32>,
    return
  }
}

</mosaic_0001>

<llo_original>
// kernel: tpu_custom_call.1
$region0: #{tpu_custom_call.1}
  #allocation0 [shape = 'u32[]', space=smem, size = 0x4, offset = 0x4, fixed_abs, tag = 'smem constant byte address 0x4 - core index']
  #allocation1 [shape = 'u32[144,128]{1,0:T(1,128)}', space=vmem, size = 0x12000, scoped, tag = 'internal scratch']
  #allocation2 [shape = 'bf16[16,1024]{1,0:T(8,128)(2,1)}', space=vmem, size = 0x8000, scoped, tag = 'scratch operand']
  %s0 = inlined_call_operand.vmem [shape: s32[128,1], index: 0, kind: input, shape index: {}]
  %s1 = inlined_call_operand.vmem [shape: bf16[32,512], index: 1, kind: input, shape index: {}]
  %s2 = inlined_call_operand.hbm [shape: bf16[128,512], index: 2, kind: input, shape index: {}]
  %s3 = inlined_call_operand.vmem [shape: f32[1,512], index: 3, kind: input, shape index: {}]
  %s4 = inlined_call_operand.hbm [shape: bf16[128,512], index: 4, kind: input, shape index: {}]
  %s5 = inlined_call_operand.hbm [shape: bf16[128,512], index: 5, kind: input, shape index: {}]
  %s6 = inlined_call_operand.vmem [shape: f32[1,512], index: 6, kind: input, shape index: {}]
  %s7 = inlined_call_operand.hbm [shape: bf16[1024,256], index: 7, kind: input, shape index: {}]
  %s8 = inlined_call_operand.vmem [shape: f32[1,256], index: 8, kind: input, shape index: {}]
  %s9 = inlined_call_operand.hbm [shape: f32[16,256], index: 9, kind: output, shape index: {}]
  %s10 = sld [smem:[#allocation0]]
  $region62: #{tpu_custom_call.1} parent=0
    _
  %s12 = ssub.s32 1, %s10
  %s13 = scalar_select 0, %s12, %s10
  $region1: #{tpu_custom_call.1} parent=0
    #allocation3 [shape = 'u8[131072]{0}', space=vmem, size = 0x20000, scoped, tag = 'input window, operand 2, single buffered']
    #allocation4 [shape = 's32[1]{0}', space=sflag, size = 0x4, scoped, tag = 'scoped memory for tpu_custom_call.1']
    #allocation5 [shape = 's32[1]{0}', space=sflag, size = 0x4, scoped, tag = 'scoped memory for tpu_custom_call.1']
    #allocation6 [shape = 'u8[131072]{0}', space=vmem, size = 0x20000, scoped, tag = 'input window, operand 4, single buffered']
    #allocation7 [shape = 's32[1]{0}', space=sflag, size = 0x4, scoped, tag = 'scoped memory for tpu_custom_call.1']
    #allocation8 [shape = 'u8[131072]{0}', space=vmem, size = 0x20000, scoped, tag = 'input window, operand 5, single buffered']
    #allocation9 [shape = 'u8[524288]{0}', space=vmem, size = 0x80000, scoped, tag = 'input window, operand 7, single buffered']
    #allocation10 [shape = 's32[1]{0}', space=sflag, size = 0x4, scoped, tag = 'scoped memory for tpu_custom_call.1']
    #allocation11 [shape = 'u8[16384]{0}', space=vmem, size = 0x4000, scoped, tag = 'output window, operand 0, single buffered']
    %14 = vsyncpa [#allocation4], 0
    %15 = vsyncpa [#allocation7], 0
    %16 = vsyncpa [#allocation10], 0
    %17 = vsyncpa [#allocation5], 0
    // Predicated region
    $region2: #{tpu_custom_call.1} parent=1 // pred_check
      _
    $region3: #{tpu_custom_call.1} parent=1 // pred_check_branch
      %19 = sbr.rel (0) target = $region5
    $region4: #{tpu_custom_call.1} parent=1 // pred_region
      _
    $region5: #{tpu_custom_call.1} parent=1 // pred_fallthru
      _
    // Predicated region
    $region6: #{tpu_custom_call.1} parent=1 // pred_check
      _
    $region7: #{tpu_custom_call.1} parent=1 // pred_check_branch
      %21 = sbr.rel (0) target = $region9
    $region8: #{tpu_custom_call.1} parent=1 // pred_region
      _
    $region9: #{tpu_custom_call.1} parent=1 // pred_fallthru
      _
    // Predicated region
    $region10: #{tpu_custom_call.1} parent=1 // pred_check
      _
    $region11: #{tpu_custom_call.1} parent=1 // pred_check_branch
      %23 = sbr.rel (0) target = $region13
    $region12: #{tpu_custom_call.1} parent=1 // pred_region
      %s25 = ssub.s32 4096, 4096
      %26 = vsyncadd [#allocation4], %s25
      %s27 = sshll.u32 [#allocation3], 4
      %s28 = int_to_ptr.vmem [resolvable:$true] %s27
      %33 = dma.hbm_to_vmem [thread:$0]  %s2, 4096, %s28, [#allocation4], 256, 256, 16
    $region13: #{tpu_custom_call.1} parent=1 // pred_fallthru
      _
    // Predicated region
    $region14: #{tpu_custom_call.1} parent=1 // pred_check
      _
    $region15: #{tpu_custom_call.1} parent=1 // pred_check_branch
      %35 = sbr.rel (0) target = $region17
    $region16: #{tpu_custom_call.1} parent=1 // pred_region
      _
    $region17: #{tpu_custom_call.1} parent=1 // pred_fallthru
      _
    // Predicated region
    $region18: #{tpu_custom_call.1} parent=1 // pred_check
      _
    $region19: #{tpu_custom_call.1} parent=1 // pred_check_branch
      %37 = sbr.rel (0) target = $region21
    $region20: #{tpu_custom_call.1} parent=1 // pred_region
      %s39 = ssub.s32 4096, 4096
      %40 = vsyncadd [#allocation7], %s39
      %s41 = sshll.u32 [#allocation6], 4
      %s42 = int_to_ptr.vmem [resolvable:$true] %s41
      %47 = dma.hbm_to_vmem [thread:$0]  %s4, 4096, %s42, [#allocation7], 256, 256, 16
    $region21: #{tpu_custom_call.1} parent=1 // pred_fallthru
      _
    // Predicated region
    $region22: #{tpu_custom_call.1} parent=1 // pred_check
      _
    $region23: #{tpu_custom_call.1} parent=1 // pred_check_branch
      %49 = sbr.rel (0) target = $region25
    $region24: #{tpu_custom_call.1} parent=1 // pred_region
      %s51 = ssub.s32 4096, 4096
      %52 = vsyncadd [#allocation7], %s51
      %s53 = sshll.u32 [#allocation8], 4
      %s54 = int_to_ptr.vmem [resolvable:$true] %s53
      %59 = dma.hbm_to_vmem [thread:$0]  %s5, 4096, %s54, [#allocation7], 256, 256, 16
    $region25: #{tpu_custom_call.1} parent=1 // pred_fallthru
      _
    // Predicated region
    $region26: #{tpu_custom_call.1} parent=1 // pred_check
      _
    $region27: #{tpu_custom_call.1} parent=1 // pred_check_branch
      %61 = sbr.rel (0) target = $region29
    $region28: #{tpu_custom_call.1} parent=1 // pred_region
      _
    $region29: #{tpu_custom_call.1} parent=1 // pred_fallthru
      _
    // Predicated region
    $region30: #{tpu_custom_call.1} parent=1 // pred_check
      _
    $region31: #{tpu_custom_call.1} parent=1 // pred_check_branch
      %63 = sbr.rel (0) target = $region33
    $region32: #{tpu_custom_call.1} parent=1 // pred_region
      %s65 = ssub.s32 16384, 16384
      %66 = vsyncadd [#allocation10], %s65
      %s67 = sshll.u32 [#allocation9], 4
      %s68 = int_to_ptr.vmem [resolvable:$true] %s67
      %73 = dma.hbm_to_vmem [thread:$0]  %s7, 16384, %s68, [#allocation10], 128, 128, 8
    $region33: #{tpu_custom_call.1} parent=1 // pred_fallthru
      _
    // Predicated region
    $region34: #{tpu_custom_call.1} parent=1 // pred_check
      _
    $region35: #{tpu_custom_call.1} parent=1 // pred_check_branch
      %75 = sbr.rel (0) target = $region37
    $region36: #{tpu_custom_call.1} parent=1 // pred_region
      _
    $region37: #{tpu_custom_call.1} parent=1 // pred_fallthru
      _
    // Predicated region
    $region38: #{tpu_custom_call.1} parent=1 // pred_check
      _
    $region39: #{tpu_custom_call.1} parent=1 // pred_check_branch
      %77 = sbr.rel (0) target = $region41
    $region40: #{tpu_custom_call.1} parent=1 // pred_region
      %78 = dma.done [#allocation4], 4096
    $region41: #{tpu_custom_call.1} parent=1 // pred_fallthru
      _
    // Predicated region
    $region42: #{tpu_custom_call.1} parent=1 // pred_check
      _
    $region43: #{tpu_custom_call.1} parent=1 // pred_check_branch
      %80 = sbr.rel (0) target = $region45
    $region44: #{tpu_custom_call.1} parent=1 // pred_region
      %81 = dma.done [#allocation7], 4096
    $region45: #{tpu_custom_call.1} parent=1 // pred_fallthru
      _
    // Predicated region
    $region46: #{tpu_custom_call.1} parent=1 // pred_check
      _
    $region47: #{tpu_custom_call.1} parent=1 // pred_check_branch
      %83 = sbr.rel (0) target = $region49
    $region48: #{tpu_custom_call.1} parent=1 // pred_region
      %84 = dma.done [#allocation7], 4096
    $region49: #{tpu_custom_call.1} parent=1 // pred_fallthru
      _
    // Predicated region
    $region50: #{tpu_custom_call.1} parent=1 // pred_check
      _
    $region51: #{tpu_custom_call.1} parent=1 // pred_check_branch
      %86 = sbr.rel (0) target = $region53
    $region52: #{tpu_custom_call.1} parent=1 // pred_region
      %87 = dma.done [#allocation10], 16384
    $region53: #{tpu_custom_call.1} parent=1 // pred_fallthru
      _
    %v89 = vld [vmem:[#allocation3] sm:$0xff]
    %v90 = vld [vmem:[#allocation3 + $0x8] sm:$0xff]
    %v91 = vld [vmem:[#allocation3 + $0x10] sm:$0xff]
    %v92 = vld [vmem:[#allocation3 + $0x18] sm:$0xff]
    %v93 = vld [vmem:[#allocation3 + $0x20] sm:$0xff]
    %v94 = vld [vmem:[#allocation3 + $0x28] sm:$0xff]
    %v95 = vld [vmem:[#allocation3 + $0x30] sm:$0xff]
    %v96 = vld [vmem:[#allocation3 + $0x38] sm:$0xff]
    %v97 = vld [vmem:[#allocation3 + $0x40] sm:$0xff]
    %v98 = vld [vmem:[#allocation3 + $0x48] sm:$0xff]
    %v99 = vld [vmem:[#allocation3 + $0x50] sm:$0xff]
    %v100 = vld [vmem:[#allocation3 + $0x58] sm:$0xff]
    %v101 = vld [vmem:[#allocation3 + $0x60] sm:$0xff]
    %v102 = vld [vmem:[#allocation3 + $0x68] sm:$0xff]
    %v103 = vld [vmem:[#allocation3 + $0x70] sm:$0xff]
    %v104 = vld [vmem:[#allocation3 + $0x78] sm:$0xff]
    %v105 = vld [vmem:[#allocation3 + $0x80] sm:$0xff]
    %v106 = vld [vmem:[#allocation3 + $0x88] sm:$0xff]
    %v107 = vld [vmem:[#allocation3 + $0x90] sm:$0xff]
    %v108 = vld [vmem:[#allocation3 + $0x98] sm:$0xff]
    %v109 = vld [vmem:[#allocation3 + $0xa0] sm:$0xff]
    %v110 = vld [vmem:[#allocation3 + $0xa8] sm:$0xff]
    %v111 = vld [vmem:[#allocation3 + $0xb0] sm:$0xff]
    %v112 = vld [vmem:[#allocation3 + $0xb8] sm:$0xff]
    %v113 = vld [vmem:[#allocation3 + $0xc0] sm:$0xff]
    %v114 = vld [vmem:[#allocation3 + $0xc8] sm:$0xff]
    %v115 = vld [vmem:[#allocation3 + $0xd0] sm:$0xff]
    %v116 = vld [vmem:[#allocation3 + $0xd8] sm:$0xff]
    %v117 = vld [vmem:[#allocation3 + $0xe0] sm:$0xff]
    %v118 = vld [vmem:[#allocation3 + $0xe8] sm:$0xff]
    %v119 = vld [vmem:[#allocation3 + $0xf0] sm:$0xff]
    %v120 = vld [vmem:[#allocation3 + $0xf8] sm:$0xff]
    %v121 = vld [vmem:[#allocation6] sm:$0xff]
    %v122 = vld [vmem:[#allocation6 + $0x8] sm:$0xff]
    %v123 = vld [vmem:[#allocation6 + $0x10] sm:$0xff]
    %v124 = vld [vmem:[#allocation6 + $0x18] sm:$0xff]
    %v125 = vld [vmem:[#allocation6 + $0x20] sm:$0xff]
    %v126 = vld [vmem:[#allocation6 + $0x28] sm:$0xff]
    %v127 = vld [vmem:[#allocation6 + $0x30] sm:$0xff]
    %v128 = vld [vmem:[#allocation6 + $0x38] sm:$0xff]
    %v129 = vld [vmem:[#allocation6 + $0x40] sm:$0xff]
    %v130 = vld [vmem:[#allocation6 + $0x48] sm:$0xff]
    %v131 = vld [vmem:[#allocation6 + $0x50] sm:$0xff]
    %v132 = vld [vmem:[#allocation6 + $0x58] sm:$0xff]
    %v133 = vld [vmem:[#allocation6 + $0x60] sm:$0xff]
    %v134 = vld [vmem:[#allocation6 + $0x68] sm:$0xff]
    %v135 = vld [vmem:[#allocation6 + $0x70] sm:$0xff]
    %v136 = vld [vmem:[#allocation6 + $0x78] sm:$0xff]
    %v137 = vld [vmem:[#allocation6 + $0x80] sm:$0xff]
    %v138 = vld [vmem:[#allocation6 + $0x88] sm:$0xff]
    %v139 = vld [vmem:[#allocation6 + $0x90] sm:$0xff]
    %v140 = vld [vmem:[#allocation6 + $0x98] sm:$0xff]
    %v141 = vld [vmem:[#allocation6 + $0xa0] sm:$0xff]
    %v142 = vld [vmem:[#allocation6 + $0xa8] sm:$0xff]
    %v143 = vld [vmem:[#allocation6 + $0xb0] sm:$0xff]
    %v144 = vld [vmem:[#allocation6 + $0xb8] sm:$0xff]
    %v145 = vld [vmem:[#allocation6 + $0xc0] sm:$0xff]
    %v146 = vld [vmem:[#allocation6 + $0xc8] sm:$0xff]
    %v147 = vld [vmem:[#allocation6 + $0xd0] sm:$0xff]
    %v148 = vld [vmem:[#allocation6 + $0xd8] sm:$0xff]
    %v149 = vld [vmem:[#allocation6 + $0xe0] sm:$0xff]
    %v150 = vld [vmem:[#allocation6 + $0xe8] sm:$0xff]
    %v151 = vld [vmem:[#allocation6 + $0xf0] sm:$0xff]
    %v152 = vld [vmem:[#allocation6 + $0xf8] sm:$0xff]
    %v153 = vld [vmem:[#allocation8] sm:$0xff]
    %v154 = vld [vmem:[#allocation8 + $0x8] sm:$0xff]
    %v155 = vld [vmem:[#allocation8 + $0x10] sm:$0xff]
    %v156 = vld [vmem:[#allocation8 + $0x18] sm:$0xff]
    %v157 = vld [vmem:[#allocation8 + $0x20] sm:$0xff]
    %v158 = vld [vmem:[#allocation8 + $0x28] sm:$0xff]
    %v159 = vld [vmem:[#allocation8 + $0x30] sm:$0xff]
    %v160 = vld [vmem:[#allocation8 + $0x38] sm:$0xff]
    %v161 = vld [vmem:[#allocation8 + $0x40] sm:$0xff]
    %v162 = vld [vmem:[#allocation8 + $0x48] sm:$0xff]
    %v163 = vld [vmem:[#allocation8 + $0x50] sm:$0xff]
    %v164 = vld [vmem:[#allocation8 + $0x58] sm:$0xff]
    %v165 = vld [vmem:[#allocation8 + $0x60] sm:$0xff]
    %v166 = vld [vmem:[#allocation8 + $0x68] sm:$0xff]
    %v167 = vld [vmem:[#allocation8 + $0x70] sm:$0xff]
    %v168 = vld [vmem:[#allocation8 + $0x78] sm:$0xff]
    %v169 = vld [vmem:[#allocation8 + $0x80] sm:$0xff]
    %v170 = vld [vmem:[#allocation8 + $0x88] sm:$0xff]
    %v171 = vld [vmem:[#allocation8 + $0x90] sm:$0xff]
    %v172 = vld [vmem:[#allocation8 + $0x98] sm:$0xff]
    %v173 = vld [vmem:[#allocation8 + $0xa0] sm:$0xff]
    %v174 = vld [vmem:[#allocation8 + $0xa8] sm:$0xff]
    %v175 = vld [vmem:[#allocation8 + $0xb0] sm:$0xff]
    %v176 = vld [vmem:[#allocation8 + $0xb8] sm:$0xff]
    %v177 = vld [vmem:[#allocation8 + $0xc0] sm:$0xff]
    %v178 = vld [vmem:[#allocation8 + $0xc8] sm:$0xff]
    %v179 = vld [vmem:[#allocation8 + $0xd0] sm:$0xff]
    %v180 = vld [vmem:[#allocation8 + $0xd8] sm:$0xff]
    %v181 = vld [vmem:[#allocation8 + $0xe0] sm:$0xff]
    %v182 = vld [vmem:[#allocation8 + $0xe8] sm:$0xff]
    %v183 = vld [vmem:[#allocation8 + $0xf0] sm:$0xff]
    %v184 = vld [vmem:[#allocation8 + $0xf8] sm:$0xff]
    %v185 = vld [vmem:[%s6] sm:$0xf]
    %v186 = vld [vmem:[%s0] sm:$0xff]
    %v187 = vld [vmem:[%s0 + $0x8] sm:$0xff]
    %v188 = vld [vmem:[%s0 + $0x10] sm:$0xff]
    %v189 = vld [vmem:[%s0 + $0x18] sm:$0xff]
    %v190 = vld [vmem:[%s0 + $0x20] sm:$0xff]
    %v191 = vld [vmem:[%s0 + $0x28] sm:$0xff]
    %v192 = vld [vmem:[%s0 + $0x30] sm:$0xff]
    %v193 = vld [vmem:[%s0 + $0x38] sm:$0xff]
    %v194 = vld [vmem:[%s0 + $0x40] sm:$0xff]
    %v195 = vld [vmem:[%s0 + $0x48] sm:$0xff]
    %v196 = vld [vmem:[%s0 + $0x50] sm:$0xff]
    %v197 = vld [vmem:[%s0 + $0x58] sm:$0xff]
    %v198 = vld [vmem:[%s0 + $0x60] sm:$0xff]
    %v199 = vld [vmem:[%s0 + $0x68] sm:$0xff]
    %v200 = vld [vmem:[%s0 + $0x70] sm:$0xff]
    %v201 = vld [vmem:[%s0 + $0x78] sm:$0xff]
    %v202 = vlaneseq
    %v203 = vand.u32 %v202, 127
    %204 = vset.pattern.permute.xlu0 0
    %205 = vperm.xlu0 %204, %v186
    %v206 = vpop.permute.xlu0 %205
    %207 = vset.pattern.permute.xlu0 0
    %208 = vperm.xlu0 %207, %v187
    %v209 = vpop.permute.xlu0 %208
    %210 = vset.pattern.permute.xlu0 0
    %211 = vperm.xlu0 %210, %v188
    %v212 = vpop.permute.xlu0 %211
    %213 = vset.pattern.permute.xlu0 0
    %214 = vperm.xlu0 %213, %v189
    %v215 = vpop.permute.xlu0 %214
    %216 = vset.pattern.permute.xlu0 0
    %217 = vperm.xlu0 %216, %v190
    %v218 = vpop.permute.xlu0 %217
    %219 = vset.pattern.permute.xlu0 0
    %220 = vperm.xlu0 %219, %v191
    %v221 = vpop.permute.xlu0 %220
    %222 = vset.pattern.permute.xlu0 0
    %223 = vperm.xlu0 %222, %v192
    %v224 = vpop.permute.xlu0 %223
    %225 = vset.pattern.permute.xlu0 0
    %226 = vperm.xlu0 %225, %v193
    %v227 = vpop.permute.xlu0 %226
    %228 = vset.pattern.permute.xlu0 0
    %229 = vperm.xlu0 %228, %v194
    %v230 = vpop.permute.xlu0 %229
    %231 = vset.pattern.permute.xlu0 0
    %232 = vperm.xlu0 %231, %v195
    %v233 = vpop.permute.xlu0 %232
    %234 = vset.pattern.permute.xlu0 0
    %235 = vperm.xlu0 %234, %v196
    %v236 = vpop.permute.xlu0 %235
    %237 = vset.pattern.permute.xlu0 0
    %238 = vperm.xlu0 %237, %v197
    %v239 = vpop.permute.xlu0 %238
    %240 = vset.pattern.permute.xlu0 0
    %241 = vperm.xlu0 %240, %v198
    %v242 = vpop.permute.xlu0 %241
    %243 = vset.pattern.permute.xlu0 0
    %244 = vperm.xlu0 %243, %v199
    %v245 = vpop.permute.xlu0 %244
    %246 = vset.pattern.permute.xlu0 0
    %247 = vperm.xlu0 %246, %v200
    %v248 = vpop.permute.xlu0 %247
    %249 = vset.pattern.permute.xlu0 0
    %250 = vperm.xlu0 %249, %v201
    %v251 = vpop.permute.xlu0 %250
    %vm252 = vcmp.eq.s32.totalorder %v206, %v203
    %vm253 = vcmp.eq.s32.totalorder %v209, %v203
    %vm254 = vcmp.eq.s32.totalorder %v212, %v203
    %vm255 = vcmp.eq.s32.totalorder %v215, %v203
    %vm256 = vcmp.eq.s32.totalorder %v218, %v203
    %vm257 = vcmp.eq.s32.totalorder %v221, %v203
    %vm258 = vcmp.eq.s32.totalorder %v224, %v203
    %vm259 = vcmp.eq.s32.totalorder %v227, %v203
    %vm260 = vcmp.eq.s32.totalorder %v230, %v203
    %vm261 = vcmp.eq.s32.totalorder %v233, %v203
    %vm262 = vcmp.eq.s32.totalorder %v236, %v203
    %vm263 = vcmp.eq.s32.totalorder %v239, %v203
    %vm264 = vcmp.eq.s32.totalorder %v242, %v203
    %vm265 = vcmp.eq.s32.totalorder %v245, %v203
    %vm266 = vcmp.eq.s32.totalorder %v248, %v203
    %vm267 = vcmp.eq.s32.totalorder %v251, %v203
    %v268 = vsel %vm252, 1, 0
    %v269 = vsel %vm253, 1, 0
    %v270 = vsel %vm254, 1, 0
    %v271 = vsel %vm255, 1, 0
    %v272 = vsel %vm256, 1, 0
    %v273 = vsel %vm257, 1, 0
    %v274 = vsel %vm258, 1, 0
    %v275 = vsel %vm259, 1, 0
    %v276 = vsel %vm260, 1, 0
    %v277 = vsel %vm261, 1, 0
    %v278 = vsel %vm262, 1, 0
    %v279 = vsel %vm263, 1, 0
    %v280 = vsel %vm264, 1, 0
    %v281 = vsel %vm265, 1, 0
    %v282 = vsel %vm266, 1, 0
    %v283 = vsel %vm267, 1, 0
    %v284 = vcvt.s32.f32 %v268
    %v285 = vcvt.s32.f32 %v269
    %v286 = vcvt.s32.f32 %v270
    %v287 = vcvt.s32.f32 %v271
    %v288 = vcvt.s32.f32 %v272
    %v289 = vcvt.s32.f32 %v273
    %v290 = vcvt.s32.f32 %v274
    %v291 = vcvt.s32.f32 %v275
    %v292 = vcvt.s32.f32 %v276
    %v293 = vcvt.s32.f32 %v277
    %v294 = vcvt.s32.f32 %v278
    %v295 = vcvt.s32.f32 %v279
    %v296 = vcvt.s32.f32 %v280
    %v297 = vcvt.s32.f32 %v281
    %v298 = vcvt.s32.f32 %v282
    %v299 = vcvt.s32.f32 %v283
    %v300 = vpack.c.bf16 %v285, %v284
    %v301 = vpack.c.bf16 %v287, %v286
    %v302 = vpack.c.bf16 %v289, %v288
    %v303 = vpack.c.bf16 %v291, %v290
    %v304 = vpack.c.bf16 %v293, %v292
    %v305 = vpack.c.bf16 %v295, %v294
    %v306 = vpack.c.bf16 %v297, %v296
    %v307 = vpack.c.bf16 %v299, %v298
    %v308 = vld [vmem:[%s1] sm:$0xff]
    %v309 = vld [vmem:[%s1 + $0x8] sm:$0xff]
    %v310 = vld [vmem:[%s1 + $0x10] sm:$0xff]
    %v311 = vld [vmem:[%s1 + $0x18] sm:$0xff]
    %v312 = vld [vmem:[%s1 + $0x20] sm:$0xff]
    %v313 = vld [vmem:[%s1 + $0x28] sm:$0xff]
    %v314 = vld [vmem:[%s1 + $0x30] sm:$0xff]
    %v315 = vld [vmem:[%s1 + $0x38] sm:$0xff]
    %v316 = vld [vmem:[%s3] sm:$0xf]
    %v318 = vlaneseq
    %v319 = vshrl.u32 %v318, 7
    %v320 = vsub.s32 0, %v319
    %v321 = vrot.slane %v316, %v320
    %v322 = vlaneseq
    %v323 = vshrl.u32 %v322, 7
    %v324 = vsub.s32 1, %v323
    %v325 = vrot.slane %v316, %v324
    %v326 = vlaneseq
    %v327 = vshrl.u32 %v326, 7
    %v328 = vsub.s32 2, %v327
    %v329 = vrot.slane %v316, %v328
    %v330 = vlaneseq
    %v331 = vshrl.u32 %v330, 7
    %v332 = vsub.s32 3, %v331
    %v333 = vrot.slane %v316, %v332
    %v346 = vunpack.c.l.b16 %v308
    %v347 = vunpack.c.h.b16 %v308
    %v348 = vunpack.c.l.b16 %v309
    %v349 = vunpack.c.h.b16 %v309
    %v350 = vunpack.c.l.b16 %v310
    %v351 = vunpack.c.h.b16 %v310
    %v352 = vunpack.c.l.b16 %v311
    %v353 = vunpack.c.h.b16 %v311
    %v354 = vunpack.c.l.b16 %v312
    %v355 = vunpack.c.h.b16 %v312
    %v356 = vunpack.c.l.b16 %v313
    %v357 = vunpack.c.h.b16 %v313
    %v358 = vunpack.c.l.b16 %v314
    %v359 = vunpack.c.h.b16 %v314
    %v360 = vunpack.c.l.b16 %v315
    %v361 = vunpack.c.h.b16 %v315
    %v362 = vpack.c.b16 %v350, %v346
    %v363 = vpack.c.b16 %v351, %v347
    %v364 = vpack.c.b16 %v352, %v348
    %v365 = vpack.c.b16 %v353, %v349
    %v366 = vpack.c.b16 %v358, %v354
    %v367 = vpack.c.b16 %v359, %v355
    %v368 = vpack.c.b16 %v360, %v356
    %v369 = vpack.c.b16 %v361, %v357
    %vm378 = vcmask 261120
    %v380 = vsel %vm378, %v300, 0
    %v383 = vsel %vm378, %v301, 0
    %v386 = vsel %vm378, %v302, 0
    %v389 = vsel %vm378, %v303, 0
    %v392 = vsel %vm378, %v304, 0
    %v395 = vsel %vm378, %v305, 0
    %v398 = vsel %vm378, %v306, 0
    %v401 = vsel %vm378, %v307, 0
    %403 = vmatprep.subr.bf16.mxu0 0
    %404 = vmatpush1.bf16.msra.mxu0 0
    %405 = vmatprep.subr.bf16.mxu0 0
    %406 = vmatpush1.bf16.msra.mxu0 0
    %407 = vmatprep.subr.bf16.mxu0 0
    %408 = vmatpush1.bf16.msra.mxu0 0
    %409 = vmatprep.subr.bf16.mxu0 0
    %410 = vmatpush1.bf16.msra.mxu0 0
    %411 = vmatprep.subr.bf16.mxu0 0
    %412 = vmatpush1.bf16.msra.mxu0 0
    %413 = vmatprep.subr.bf16.mxu0 0
    %414 = vmatpush1.bf16.msra.mxu0 0
    %415 = vmatprep.subr.bf16.mxu0 %v367
    %416 = vmatpush1.bf16.msra.mxu0 %v366
    %417 = vmatprep.subr.bf16.mxu0 %v363
    %418 = vmatpush1.bf16.msra.mxu0 %v362
    %419 = vmatprep.subr.bf16.mxu0 0
    %420 = vmatpush2.bf16.msra.mxu0 0
    %421 = vmatprep.subr.bf16.mxu0 0
    %422 = vmatpush2.bf16.msra.mxu0 0
    %423 = vmatprep.subr.bf16.mxu0 0
    %424 = vmatpush2.bf16.msra.mxu0 0
    %425 = vmatprep.subr.bf16.mxu0 0
    %426 = vmatpush2.bf16.msra.mxu0 0
    %427 = vmatprep.subr.bf16.mxu0 0
    %428 = vmatpush2.bf16.msra.mxu0 0
    %429 = vmatprep.subr.bf16.mxu0 0
    %430 = vmatpush2.bf16.msra.mxu0 0
    %431 = vmatprep.subr.bf16.mxu0 0
    %432 = vmatpush2.bf16.msra.mxu0 0
    %433 = vmatprep.subr.bf16.mxu0 0
    %434 = vmatpush2.bf16.msra.mxu0 0
    %435 = vmatprep.mubr.bf16.mxu0 0
    %436 = vmatmul.mubr.bf16.gmra.mxu0 %v380
    %v437 = vpop.f32.mrf.mxu0
    %v438 = vadd.f32 %v321, %v437
    %v439 = vpop.f32.mrf.mxu0
    %v440 = vadd.f32 %v325, %v439
    %v441 = vpop.f32.mrf.mxu0
    %v442 = vadd.f32 %v321, %v441
    %v443 = vpop.f32.mrf.mxu0
    %v444 = vadd.f32 %v325, %v443
    %445 = vmatprep.mubr.bf16.mxu0 0
    %446 = vmatmul.mubr.bf16.gmra.mxu0 %v383
    %v447 = vpop.f32.mrf.mxu0
    %v448 = vadd.f32 %v321, %v447
    %v449 = vpop.f32.mrf.mxu0
    %v450 = vadd.f32 %v325, %v449
    %v451 = vpop.f32.mrf.mxu0
    %v452 = vadd.f32 %v321, %v451
    %v453 = vpop.f32.mrf.mxu0
    %v454 = vadd.f32 %v325, %v453
    %455 = vmatprep.mubr.bf16.mxu0 0
    %456 = vmatmul.mubr.bf16.gmra.mxu0 %v386
    %v457 = vpop.f32.mrf.mxu0
    %v458 = vadd.f32 %v321, %v457
    %v459 = vpop.f32.mrf.mxu0
    %v460 = vadd.f32 %v325, %v459
    %v461 = vpop.f32.mrf.mxu0
    %v462 = vadd.f32 %v321, %v461
    %v463 = vpop.f32.mrf.mxu0
    %v464 = vadd.f32 %v325, %v463
    %465 = vmatprep.mubr.bf16.mxu0 0
    %466 = vmatmul.mubr.bf16.gmra.mxu0 %v389
    %v467 = vpop.f32.mrf.mxu0
    %v468 = vadd.f32 %v321, %v467
    %v469 = vpop.f32.mrf.mxu0
    %v470 = vadd.f32 %v325, %v469
    %v471 = vpop.f32.mrf.mxu0
    %v472 = vadd.f32 %v321, %v471
    %v473 = vpop.f32.mrf.mxu0
    %v474 = vadd.f32 %v325, %v473
    %475 = vmatprep.mubr.bf16.mxu0 0
    %476 = vmatmul.mubr.bf16.gmra.mxu0 %v392
    %v477 = vpop.f32.mrf.mxu0
    %v478 = vadd.f32 %v321, %v477
    %v479 = vpop.f32.mrf.mxu0
    %v480 = vadd.f32 %v325, %v479
    %v481 = vpop.f32.mrf.mxu0
    %v482 = vadd.f32 %v321, %v481
    %v483 = vpop.f32.mrf.mxu0
    %v484 = vadd.f32 %v325, %v483
    %485 = vmatprep.mubr.bf16.mxu0 0
    %486 = vmatmul.mubr.bf16.gmra.mxu0 %v395
    %v487 = vpop.f32.mrf.mxu0
    %v488 = vadd.f32 %v321, %v487
    %v489 = vpop.f32.mrf.mxu0
    %v490 = vadd.f32 %v325, %v489
    %v491 = vpop.f32.mrf.mxu0
    %v492 = vadd.f32 %v321, %v491
    %v493 = vpop.f32.mrf.mxu0
    %v494 = vadd.f32 %v325, %v493
    %495 = vmatprep.mubr.bf16.mxu0 0
    %496 = vmatmul.mubr.bf16.gmra.mxu0 %v398
    %v497 = vpop.f32.mrf.mxu0
    %v498 = vadd.f32 %v321, %v497
    %v499 = vpop.f32.mrf.mxu0
    %v500 = vadd.f32 %v325, %v499
    %v501 = vpop.f32.mrf.mxu0
    %v502 = vadd.f32 %v321, %v501
    %v503 = vpop.f32.mrf.mxu0
    %v504 = vadd.f32 %v325, %v503
    %505 = vmatprep.mubr.bf16.mxu0 0
    %506 = vmatmul.mubr.bf16.gmra.mxu0 %v401
    %v507 = vpop.f32.mrf.mxu0
    %v508 = vadd.f32 %v321, %v507
    %v509 = vpop.f32.mrf.mxu0
    %v510 = vadd.f32 %v325, %v509
    %v511 = vpop.f32.mrf.mxu0
    %v512 = vadd.f32 %v321, %v511
    %v513 = vpop.f32.mrf.mxu0
    %v514 = vadd.f32 %v325, %v513
    %515 = vdwg.mxu0
    %516 = vmatprep.subr.bf16.mxu0 0
    %517 = vmatpush1.bf16.msra.mxu0 0
    %518 = vmatprep.subr.bf16.mxu0 0
    %519 = vmatpush1.bf16.msra.mxu0 0
    %520 = vmatprep.subr.bf16.mxu0 0
    %521 = vmatpush1.bf16.msra.mxu0 0
    %522 = vmatprep.subr.bf16.mxu0 0
    %523 = vmatpush1.bf16.msra.mxu0 0
    %524 = vmatprep.subr.bf16.mxu0 0
    %525 = vmatpush1.bf16.msra.mxu0 0
    %526 = vmatprep.subr.bf16.mxu0 0
    %527 = vmatpush1.bf16.msra.mxu0 0
    %528 = vmatprep.subr.bf16.mxu0 %v369
    %529 = vmatpush1.bf16.msra.mxu0 %v368
    %530 = vmatprep.subr.bf16.mxu0 %v365
    %531 = vmatpush1.bf16.msra.mxu0 %v364
    %532 = vmatprep.subr.bf16.mxu0 0
    %533 = vmatpush2.bf16.msra.mxu0 0
    %534 = vmatprep.subr.bf16.mxu0 0
    %535 = vmatpush2.bf16.msra.mxu0 0
    %536 = vmatprep.subr.bf16.mxu0 0
    %537 = vmatpush2.bf16.msra.mxu0 0
    %538 = vmatprep.subr.bf16.mxu0 0
    %539 = vmatpush2.bf16.msra.mxu0 0
    %540 = vmatprep.subr.bf16.mxu0 0
    %541 = vmatpush2.bf16.msra.mxu0 0
    %542 = vmatprep.subr.bf16.mxu0 0
    %543 = vmatpush2.bf16.msra.mxu0 0
    %544 = vmatprep.subr.bf16.mxu0 0
    %545 = vmatpush2.bf16.msra.mxu0 0
    %546 = vmatprep.subr.bf16.mxu0 0
    %547 = vmatpush2.bf16.msra.mxu0 0
    %548 = vmatprep.mubr.bf16.mxu0 0
    %549 = vmatmul.mubr.bf16.gmra.mxu0 %v380
    %v550 = vpop.f32.mrf.mxu0
    %v551 = vadd.f32 %v329, %v550
    %v552 = vpop.f32.mrf.mxu0
    %v553 = vadd.f32 %v333, %v552
    %v554 = vpop.f32.mrf.mxu0
    %v555 = vadd.f32 %v329, %v554
    %v556 = vpop.f32.mrf.mxu0
    %v557 = vadd.f32 %v333, %v556
    %558 = vmatprep.mubr.bf16.mxu0 0
    %559 = vmatmul.mubr.bf16.gmra.mxu0 %v383
    %v560 = vpop.f32.mrf.mxu0
    %v561 = vadd.f32 %v329, %v560
    %v562 = vpop.f32.mrf.mxu0
    %v563 = vadd.f32 %v333, %v562
    %v564 = vpop.f32.mrf.mxu0
    %v565 = vadd.f32 %v329, %v564
    %v566 = vpop.f32.mrf.mxu0
    %v567 = vadd.f32 %v333, %v566
    %568 = vmatprep.mubr.bf16.mxu0 0
    %569 = vmatmul.mubr.bf16.gmra.mxu0 %v386
    %v570 = vpop.f32.mrf.mxu0
    %v571 = vadd.f32 %v329, %v570
    %v572 = vpop.f32.mrf.mxu0
    %v573 = vadd.f32 %v333, %v572
    %v574 = vpop.f32.mrf.mxu0
    %v575 = vadd.f32 %v329, %v574
    %v576 = vpop.f32.mrf.mxu0
    %v577 = vadd.f32 %v333, %v576
    %578 = vmatprep.mubr.bf16.mxu0 0
    %579 = vmatmul.mubr.bf16.gmra.mxu0 %v389
    %v580 = vpop.f32.mrf.mxu0
    %v581 = vadd.f32 %v329, %v580
    %v582 = vpop.f32.mrf.mxu0
    %v583 = vadd.f32 %v333, %v582
    %v584 = vpop.f32.mrf.mxu0
    %v585 = vadd.f32 %v329, %v584
    %v586 = vpop.f32.mrf.mxu0
    %v587 = vadd.f32 %v333, %v586
    %588 = vmatprep.mubr.bf16.mxu0 0
    %589 = vmatmul.mubr.bf16.gmra.mxu0 %v392
    %v590 = vpop.f32.mrf.mxu0
    %v591 = vadd.f32 %v329, %v590
    %v592 = vpop.f32.mrf.mxu0
    %v593 = vadd.f32 %v333, %v592
    %v594 = vpop.f32.mrf.mxu0
    %v595 = vadd.f32 %v329, %v594
    %v596 = vpop.f32.mrf.mxu0
    %v597 = vadd.f32 %v333, %v596
    %598 = vmatprep.mubr.bf16.mxu0 0
    %599 = vmatmul.mubr.bf16.gmra.mxu0 %v395
    %v600 = vpop.f32.mrf.mxu0
    %v601 = vadd.f32 %v329, %v600
    %v602 = vpop.f32.mrf.mxu0
    %v603 = vadd.f32 %v333, %v602
    %v604 = vpop.f32.mrf.mxu0
    %v605 = vadd.f32 %v329, %v604
    %v606 = vpop.f32.mrf.mxu0
    %v607 = vadd.f32 %v333, %v606
    %608 = vmatprep.mubr.bf16.mxu0 0
    %609 = vmatmul.mubr.bf16.gmra.mxu0 %v398
    %v610 = vpop.f32.mrf.mxu0
    %v611 = vadd.f32 %v329, %v610
    %v612 = vpop.f32.mrf.mxu0
    %v613 = vadd.f32 %v333, %v612
    %v614 = vpop.f32.mrf.mxu0
    %v615 = vadd.f32 %v329, %v614
    %v616 = vpop.f32.mrf.mxu0
    %v617 = vadd.f32 %v333, %v616
    %618 = vmatprep.mubr.bf16.mxu0 0
    %619 = vmatmul.mubr.bf16.gmra.mxu0 %v401
    %v620 = vpop.f32.mrf.mxu0
    %v621 = vadd.f32 %v329, %v620
    %v622 = vpop.f32.mrf.mxu0
    %v623 = vadd.f32 %v333, %v622
    %v624 = vpop.f32.mrf.mxu0
    %v625 = vadd.f32 %v329, %v624
    %v626 = vpop.f32.mrf.mxu0
    %v627 = vadd.f32 %v333, %v626
    %628 = vdwg.mxu0
    %v661 = vunpack.c.l.b16 %v89
    %v662 = vunpack.c.h.b16 %v89
    %v663 = vunpack.c.l.b16 %v90
    %v664 = vunpack.c.h.b16 %v90
    %v665 = vunpack.c.l.b16 %v91
    %v666 = vunpack.c.h.b16 %v91
    %v667 = vunpack.c.l.b16 %v92
    %v668 = vunpack.c.h.b16 %v92
    %v669 = vunpack.c.l.b16 %v93
    %v670 = vunpack.c.h.b16 %v93
    %v671 = vunpack.c.l.b16 %v94
    %v672 = vunpack.c.h.b16 %v94
    %v673 = vunpack.c.l.b16 %v95
    %v674 = vunpack.c.h.b16 %v95
    %v675 = vunpack.c.l.b16 %v96
    %v676 = vunpack.c.h.b16 %v96
    %v677 = vunpack.c.l.b16 %v97
    %v678 = vunpack.c.h.b16 %v97
    %v679 = vunpack.c.l.b16 %v98
    %v680 = vunpack.c.h.b16 %v98
    %v681 = vunpack.c.l.b16 %v99
    %v682 = vunpack.c.h.b16 %v99
    %v683 = vunpack.c.l.b16 %v100
    %v684 = vunpack.c.h.b16 %v100
    %v685 = vunpack.c.l.b16 %v101
    %v686 = vunpack.c.h.b16 %v101
    %v687 = vunpack.c.l.b16 %v102
    %v688 = vunpack.c.h.b16 %v102
    %v689 = vunpack.c.l.b16 %v103
    %v690 = vunpack.c.h.b16 %v103
    %v691 = vunpack.c.l.b16 %v104
    %v692 = vunpack.c.h.b16 %v104
    %v693 = vunpack.c.l.b16 %v105
    %v694 = vunpack.c.h.b16 %v105
    %v695 = vunpack.c.l.b16 %v106
    %v696 = vunpack.c.h.b16 %v106
    %v697 = vunpack.c.l.b16 %v107
    %v698 = vunpack.c.h.b16 %v107
    %v699 = vunpack.c.l.b16 %v108
    %v700 = vunpack.c.h.b16 %v108
    %v701 = vunpack.c.l.b16 %v109
    %v702 = vunpack.c.h.b16 %v109
    %v703 = vunpack.c.l.b16 %v110
    %v704 = vunpack.c.h.b16 %v110
    %v705 = vunpack.c.l.b16 %v111
    %v706 = vunpack.c.h.b16 %v111
    %v707 = vunpack.c.l.b16 %v112
    %v708 = vunpack.c.h.b16 %v112
    %v709 = vunpack.c.l.b16 %v113
    %v710 = vunpack.c.h.b16 %v113
    %v711 = vunpack.c.l.b16 %v114
    %v712 = vunpack.c.h.b16 %v114
    %v713 = vunpack.c.l.b16 %v115
    %v714 = vunpack.c.h.b16 %v115
    %v715 = vunpack.c.l.b16 %v116
    %v716 = vunpack.c.h.b16 %v116
    %v717 = vunpack.c.l.b16 %v117
    %v718 = vunpack.c.h.b16 %v117
    %v719 = vunpack.c.l.b16 %v118
    %v720 = vunpack.c.h.b16 %v118
    %v721 = vunpack.c.l.b16 %v119
    %v722 = vunpack.c.h.b16 %v119
    %v723 = vunpack.c.l.b16 %v120
    %v724 = vunpack.c.h.b16 %v120
    %v725 = vpack.c.b16 %v665, %v661
    %v726 = vpack.c.b16 %v666, %v662
    %v727 = vpack.c.b16 %v667, %v663
    %v728 = vpack.c.b16 %v668, %v664
    %v729 = vpack.c.b16 %v673, %v669
    %v730 = vpack.c.b16 %v674, %v670
    %v731 = vpack.c.b16 %v675, %v671
    %v732 = vpack.c.b16 %v676, %v672
    %v733 = vpack.c.b16 %v681, %v677
    %v734 = vpack.c.b16 %v682, %v678
    %v735 = vpack.c.b16 %v683, %v679
    %v736 = vpack.c.b16 %v684, %v680
    %v737 = vpack.c.b16 %v689, %v685
    %v738 = vpack.c.b16 %v690, %v686
    %v739 = vpack.c.b16 %v691, %v687
    %v740 = vpack.c.b16 %v692, %v688
    %v741 = vpack.c.b16 %v697, %v693
    %v742 = vpack.c.b16 %v698, %v694
    %v743 = vpack.c.b16 %v699, %v695
    %v744 = vpack.c.b16 %v700, %v696
    %v745 = vpack.c.b16 %v705, %v701
    %v746 = vpack.c.b16 %v706, %v702
    %v747 = vpack.c.b16 %v707, %v703
    %v748 = vpack.c.b16 %v708, %v704
    %v749 = vpack.c.b16 %v713, %v709
    %v750 = vpack.c.b16 %v714, %v710
    %v751 = vpack.c.b16 %v715, %v711
    %v752 = vpack.c.b16 %v716, %v712
    %v753 = vpack.c.b16 %v721, %v717
    %v754 = vpack.c.b16 %v722, %v718
    %v755 = vpack.c.b16 %v723, %v719
    %v756 = vpack.c.b16 %v724, %v720
    %789 = vmatprep.subr.bf16.mxu0 %v754
    %790 = vmatpush1.bf16.msra.mxu0 %v753
    %791 = vmatprep.subr.bf16.mxu0 %v750
    %792 = vmatpush1.bf16.msra.mxu0 %v749
    %793 = vmatprep.subr.bf16.mxu0 %v746
    %794 = vmatpush1.bf16.msra.mxu0 %v745
    %795 = vmatprep.subr.bf16.mxu0 %v742
    %796 = vmatpush1.bf16.msra.mxu0 %v741
    %797 = vmatprep.subr.bf16.mxu0 %v738
    %798 = vmatpush1.bf16.msra.mxu0 %v737
    %799 = vmatprep.subr.bf16.mxu0 %v734
    %800 = vmatpush1.bf16.msra.mxu0 %v733
    %801 = vmatprep.subr.bf16.mxu0 %v730
    %802 = vmatpush1.bf16.msra.mxu0 %v729
    %803 = vmatprep.subr.bf16.mxu0 %v726
    %804 = vmatpush1.bf16.msra.mxu0 %v725
    %805 = vmatprep.subr.bf16.mxu0 0
    %806 = vmatpush2.bf16.msra.mxu0 0
    %807 = vmatprep.subr.bf16.mxu0 0
    %808 = vmatpush2.bf16.msra.mxu0 0
    %809 = vmatprep.subr.bf16.mxu0 0
    %810 = vmatpush2.bf16.msra.mxu0 0
    %811 = vmatprep.subr.bf16.mxu0 0
    %812 = vmatpush2.bf16.msra.mxu0 0
    %813 = vmatprep.subr.bf16.mxu0 0
    %814 = vmatpush2.bf16.msra.mxu0 0
    %815 = vmatprep.subr.bf16.mxu0 0
    %816 = vmatpush2.bf16.msra.mxu0 0
    %817 = vmatprep.subr.bf16.mxu0 0
    %818 = vmatpush2.bf16.msra.mxu0 0
    %819 = vmatprep.subr.bf16.mxu0 0
    %820 = vmatpush2.bf16.msra.mxu0 0
    %821 = vmatprep.mubr.bf16.mxu0 0
    %822 = vmatmul.mubr.bf16.gmra.mxu0 0
    %v823 = vpop.f32.mrf.mxu0
    %v824 = vadd.f32 0.0, %v823
    %v825 = vpop.f32.mrf.mxu0
    %v826 = vadd.f32 0.0, %v825
    %v827 = vpop.f32.mrf.mxu0
    %v828 = vadd.f32 0.0, %v827
    %v829 = vpop.f32.mrf.mxu0
    %v830 = vadd.f32 0.0, %v829
    %831 = vdwg.mxu0
    %832 = vmatprep.subr.bf16.mxu0 %v756
    %833 = vmatpush1.bf16.msra.mxu0 %v755
    %834 = vmatprep.subr.bf16.mxu0 %v752
    %835 = vmatpush1.bf16.msra.mxu0 %v751
    %836 = vmatprep.subr.bf16.mxu0 %v748
    %837 = vmatpush1.bf16.msra.mxu0 %v747
    %838 = vmatprep.subr.bf16.mxu0 %v744
    %839 = vmatpush1.bf16.msra.mxu0 %v743
    %840 = vmatprep.subr.bf16.mxu0 %v740
    %841 = vmatpush1.bf16.msra.mxu0 %v739
    %842 = vmatprep.subr.bf16.mxu0 %v736
    %843 = vmatpush1.bf16.msra.mxu0 %v735
    %844 = vmatprep.subr.bf16.mxu0 %v732
    %845 = vmatpush1.bf16.msra.mxu0 %v731
    %846 = vmatprep.subr.bf16.mxu0 %v728
    %847 = vmatpush1.bf16.msra.mxu0 %v727
    %848 = vmatprep.subr.bf16.mxu0 0
    %849 = vmatpush2.bf16.msra.mxu0 0
    %850 = vmatprep.subr.bf16.mxu0 0
    %851 = vmatpush2.bf16.msra.mxu0 0
    %852 = vmatprep.subr.bf16.mxu0 0
    %853 = vmatpush2.bf16.msra.mxu0 0
    %854 = vmatprep.subr.bf16.mxu0 0
    %855 = vmatpush2.bf16.msra.mxu0 0
    %856 = vmatprep.subr.bf16.mxu0 0
    %857 = vmatpush2.bf16.msra.mxu0 0
    %858 = vmatprep.subr.bf16.mxu0 0
    %859 = vmatpush2.bf16.msra.mxu0 0
    %860 = vmatprep.subr.bf16.mxu0 0
    %861 = vmatpush2.bf16.msra.mxu0 0
    %862 = vmatprep.subr.bf16.mxu0 0
    %863 = vmatpush2.bf16.msra.mxu0 0
    %864 = vmatprep.mubr.bf16.mxu0 0
    %865 = vmatmul.mubr.bf16.gmra.mxu0 0
    %v866 = vpop.f32.mrf.mxu0
    %v867 = vadd.f32 0.0, %v866
    %v868 = vpop.f32.mrf.mxu0
    %v869 = vadd.f32 0.0, %v868
    %v870 = vpop.f32.mrf.mxu0
    %v871 = vadd.f32 0.0, %v870
    %v872 = vpop.f32.mrf.mxu0
    %v873 = vadd.f32 0.0, %v872
    %874 = vdwg.mxu0
    %v875 = vadd.f32 %v438, %v824
    %v876 = vadd.f32 %v440, %v826
    %v877 = vadd.f32 %v551, %v867
    %v878 = vadd.f32 %v553, %v869
    %v879 = vadd.f32 %v442, %v828
    %v880 = vadd.f32 %v444, %v830
    %v881 = vadd.f32 %v555, %v871
    %v882 = vadd.f32 %v557, %v873
    %v883 = vxor.u32 %v875, 2147483648
    %v884 = vxor.u32 %v879, 2147483648
    %v885 = vmul.f32 %v883, 1.442695
    %v886 = vpow.pop %v885
    %v887 = vmul.f32 %v884, 1.442695
    %v888 = vpow.pop %v887
    %v889 = vadd.f32 %v886, 1.0
    %v890 = vadd.f32 %v888, 1.0
    %v891 = vrcp.pop %v889
    %v892 = vmul.f32 1.0, %v891
    %v893 = vrcp.pop %v890
    %v894 = vmul.f32 1.0, %v893
    %v895 = vxor.u32 %v876, 2147483648
    %v896 = vxor.u32 %v880, 2147483648
    %v897 = vmul.f32 %v895, 1.442695
    %v898 = vpow.pop %v897
    %v899 = vmul.f32 %v896, 1.442695
    %v900 = vpow.pop %v899
    %v901 = vadd.f32 %v898, 1.0
    %v902 = vadd.f32 %v900, 1.0
    %v903 = vrcp.pop %v901
    %v904 = vmul.f32 1.0, %v903
    %v905 = vrcp.pop %v902
    %v906 = vmul.f32 1.0, %v905
    %v907 = vtanh.pop %v877
    %v908 = vtanh.pop %v881
    %v909 = vxor.u32 %v878, 2147483648
    %v910 = vxor.u32 %v882, 2147483648
    %v911 = vmul.f32 %v909, 1.442695
    %v912 = vpow.pop %v911
    %v913 = vmul.f32 %v910, 1.442695
    %v914 = vpow.pop %v913
    %v915 = vadd.f32 %v912, 1.0
    %v916 = vadd.f32 %v914, 1.0
    %v917 = vrcp.pop %v915
    %v918 = vmul.f32 1.0, %v917
    %v919 = vrcp.pop %v916
    %v920 = vmul.f32 1.0, %v919
    %v921 = vmul.f32 %v904, 0.0
    %v922 = vmul.f32 %v906, 0.0
    %v923 = vmul.f32 %v892, %v907
    %v924 = vmul.f32 %v894, %v908
    %v925 = vadd.f32 %v921, %v923
    %v926 = vadd.f32 %v922, %v924
    %v927 = vtanh.pop %v925
    %v928 = vtanh.pop %v926
    %v929 = vmul.f32 %v918, %v927
    %v930 = vmul.f32 %v920, %v928
    %v931 = vpack.c.bf16 %v930, %v929
    %v933 = vlaneseq
    %v934 = vshrl.u32 %v933, 7
    %v935 = vsub.s32 0, %v934
    %v936 = vrot.slane %v185, %v935
    %v937 = vlaneseq
    %v938 = vshrl.u32 %v937, 7
    %v939 = vsub.s32 1, %v938
    %v940 = vrot.slane %v185, %v939
    %v941 = vlaneseq
    %v942 = vshrl.u32 %v941, 7
    %v943 = vsub.s32 2, %v942
    %v944 = vrot.slane %v185, %v943
    %v945 = vlaneseq
    %v946 = vshrl.u32 %v945, 7
    %v947 = vsub.s32 3, %v946
    %v948 = vrot.slane %v185, %v947
    %v985 = vunpack.c.l.b16 %v121
    %v986 = vunpack.c.h.b16 %v121
    %v987 = vunpack.c.l.b16 %v122
    %v988 = vunpack.c.h.b16 %v122
    %v989 = vunpack.c.l.b16 %v123
    %v990 = vunpack.c.h.b16 %v123
    %v991 = vunpack.c.l.b16 %v124
    %v992 = vunpack.c.h.b16 %v124
    %v993 = vunpack.c.l.b16 %v125
    %v994 = vunpack.c.h.b16 %v125
    %v995 = vunpack.c.l.b16 %v126
    %v996 = vunpack.c.h.b16 %v126
    %v997 = vunpack.c.l.b16 %v127
    %v998 = vunpack.c.h.b16 %v127
    %v999 = vunpack.c.l.b16 %v128
    %v1000 = vunpack.c.h.b16 %v128
    %v1001 = vunpack.c.l.b16 %v129
    %v1002 = vunpack.c.h.b16 %v129
    %v1003 = vunpack.c.l.b16 %v130
    %v1004 = vunpack.c.h.b16 %v130
    %v1005 = vunpack.c.l.b16 %v131
    %v1006 = vunpack.c.h.b16 %v131
    %v1007 = vunpack.c.l.b16 %v132
    %v1008 = vunpack.c.h.b16 %v132
    %v1009 = vunpack.c.l.b16 %v133
    %v1010 = vunpack.c.h.b16 %v133
    %v1011 = vunpack.c.l.b16 %v134
    %v1012 = vunpack.c.h.b16 %v134
    %v1013 = vunpack.c.l.b16 %v135
    %v1014 = vunpack.c.h.b16 %v135
    %v1015 = vunpack.c.l.b16 %v136
    %v1016 = vunpack.c.h.b16 %v136
    %v1017 = vunpack.c.l.b16 %v137
    %v1018 = vunpack.c.h.b16 %v137
    %v1019 = vunpack.c.l.b16 %v138
    %v1020 = vunpack.c.h.b16 %v138
    %v1021 = vunpack.c.l.b16 %v139
    %v1022 = vunpack.c.h.b16 %v139
    %v1023 = vunpack.c.l.b16 %v140
    %v1024 = vunpack.c.h.b16 %v140
    %v1025 = vunpack.c.l.b16 %v141
    %v1026 = vunpack.c.h.b16 %v141
    %v1027 = vunpack.c.l.b16 %v142
    %v1028 = vunpack.c.h.b16 %v142
    %v1029 = vunpack.c.l.b16 %v143
    %v1030 = vunpack.c.h.b16 %v143
    %v1031 = vunpack.c.l.b16 %v144
    %v1032 = vunpack.c.h.b16 %v144
    %v1033 = vunpack.c.l.b16 %v145
    %v1034 = vunpack.c.h.b16 %v145
    %v1035 = vunpack.c.l.b16 %v146
    %v1036 = vunpack.c.h.b16 %v146
    %v1037 = vunpack.c.l.b16 %v147
    %v1038 = vunpack.c.h.b16 %v147
    %v1039 = vunpack.c.l.b16 %v148
    %v1040 = vunpack.c.h.b16 %v148
    %v1041 = vunpack.c.l.b16 %v149
    %v1042 = vunpack.c.h.b16 %v149
    %v1043 = vunpack.c.l.b16 %v150
    %v1044 = vunpack.c.h.b16 %v150
    %v1045 = vunpack.c.l.b16 %v151
    %v1046 = vunpack.c.h.b16 %v151
    %v1047 = vunpack.c.l.b16 %v152
    %v1048 = vunpack.c.h.b16 %v152
    %v1049 = vpack.c.b16 %v989, %v985
    %v1050 = vpack.c.b16 %v990, %v986
    %v1051 = vpack.c.b16 %v991, %v987
    %v1052 = vpack.c.b16 %v992, %v988
    %v1053 = vpack.c.b16 %v997, %v993
    %v1054 = vpack.c.b16 %v998, %v994
    %v1055 = vpack.c.b16 %v999, %v995
    %v1056 = vpack.c.b16 %v1000, %v996
    %v1057 = vpack.c.b16 %v1005, %v1001
    %v1058 = vpack.c.b16 %v1006, %v1002
    %v1059 = vpack.c.b16 %v1007, %v1003
    %v1060 = vpack.c.b16 %v1008, %v1004
    %v1061 = vpack.c.b16 %v1013, %v1009
    %v1062 = vpack.c.b16 %v1014, %v1010
    %v1063 = vpack.c.b16 %v1015, %v1011
    %v1064 = vpack.c.b16 %v1016, %v1012
    %v1065 = vpack.c.b16 %v1021, %v1017
    %v1066 = vpack.c.b16 %v1022, %v1018
    %v1067 = vpack.c.b16 %v1023, %v1019
    %v1068 = vpack.c.b16 %v1024, %v1020
    %v1069 = vpack.c.b16 %v1029, %v1025
    %v1070 = vpack.c.b16 %v1030, %v1026
    %v1071 = vpack.c.b16 %v1031, %v1027
    %v1072 = vpack.c.b16 %v1032, %v1028
    %v1073 = vpack.c.b16 %v1037, %v1033
    %v1074 = vpack.c.b16 %v1038, %v1034
    %v1075 = vpack.c.b16 %v1039, %v1035
    %v1076 = vpack.c.b16 %v1040, %v1036
    %v1077 = vpack.c.b16 %v1045, %v1041
    %v1078 = vpack.c.b16 %v1046, %v1042
    %v1079 = vpack.c.b16 %v1047, %v1043
    %v1080 = vpack.c.b16 %v1048, %v1044
    %1113 = vmatprep.subr.bf16.mxu0 %v1078
    %1114 = vmatpush1.bf16.msra.mxu0 %v1077
    %1115 = vmatprep.subr.bf16.mxu0 %v1074
    %1116 = vmatpush1.bf16.msra.mxu0 %v1073
    %1117 = vmatprep.subr.bf16.mxu0 %v1070
    %1118 = vmatpush1.bf16.msra.mxu0 %v1069
    %1119 = vmatprep.subr.bf16.mxu0 %v1066
    %1120 = vmatpush1.bf16.msra.mxu0 %v1065
    %1121 = vmatprep.subr.bf16.mxu0 %v1062
    %1122 = vmatpush1.bf16.msra.mxu0 %v1061
    %1123 = vmatprep.subr.bf16.mxu0 %v1058
    %1124 = vmatpush1.bf16.msra.mxu0 %v1057
    %1125 = vmatprep.subr.bf16.mxu0 %v1054
    %1126 = vmatpush1.bf16.msra.mxu0 %v1053
    %1127 = vmatprep.subr.bf16.mxu0 %v1050
    %1128 = vmatpush1.bf16.msra.mxu0 %v1049
    %1129 = vmatprep.subr.bf16.mxu0 0
    %1130 = vmatpush2.bf16.msra.mxu0 0
    %1131 = vmatprep.subr.bf16.mxu0 0
    %1132 = vmatpush2.bf16.msra.mxu0 0
    %1133 = vmatprep.subr.bf16.mxu0 0
    %1134 = vmatpush2.bf16.msra.mxu0 0
    %1135 = vmatprep.subr.bf16.mxu0 0
    %1136 = vmatpush2.bf16.msra.mxu0 0
    %1137 = vmatprep.subr.bf16.mxu0 0
    %1138 = vmatpush2.bf16.msra.mxu0 0
    %1139 = vmatprep.subr.bf16.mxu0 0
    %1140 = vmatpush2.bf16.msra.mxu0 0
    %1141 = vmatprep.subr.bf16.mxu0 0
    %1142 = vmatpush2.bf16.msra.mxu0 0
    %1143 = vmatprep.subr.bf16.mxu0 0
    %1144 = vmatpush2.bf16.msra.mxu0 0
    %1145 = vmatprep.mubr.bf16.mxu0 0
    %1146 = vmatmul.mubr.bf16.gmra.mxu0 %v931
    %v1147 = vpop.f32.mrf.mxu0
    %v1148 = vadd.f32 %v936, %v1147
    %v1149 = vpop.f32.mrf.mxu0
    %v1150 = vadd.f32 %v940, %v1149
    %v1151 = vpop.f32.mrf.mxu0
    %v1152 = vadd.f32 %v936, %v1151
    %v1153 = vpop.f32.mrf.mxu0
    %v1154 = vadd.f32 %v940, %v1153
    %1155 = vdwg.mxu0
    %1156 = vmatprep.subr.bf16.mxu0 %v1080
    %1157 = vmatpush1.bf16.msra.mxu0 %v1079
    %1158 = vmatprep.subr.bf16.mxu0 %v1076
    %1159 = vmatpush1.bf16.msra.mxu0 %v1075
    %1160 = vmatprep.subr.bf16.mxu0 %v1072
    %1161 = vmatpush1.bf16.msra.mxu0 %v1071
    %1162 = vmatprep.subr.bf16.mxu0 %v1068
    %1163 = vmatpush1.bf16.msra.mxu0 %v1067
    %1164 = vmatprep.subr.bf16.mxu0 %v1064
    %1165 = vmatpush1.bf16.msra.mxu0 %v1063
    %1166 = vmatprep.subr.bf16.mxu0 %v1060
    %1167 = vmatpush1.bf16.msra.mxu0 %v1059
    %1168 = vmatprep.subr.bf16.mxu0 %v1056
    %1169 = vmatpush1.bf16.msra.mxu0 %v1055
    %1170 = vmatprep.subr.bf16.mxu0 %v1052
    %1171 = vmatpush1.bf16.msra.mxu0 %v1051
    %1172 = vmatprep.subr.bf16.mxu0 0
    %1173 = vmatpush2.bf16.msra.mxu0 0
    %1174 = vmatprep.subr.bf16.mxu0 0
    %1175 = vmatpush2.bf16.msra.mxu0 0
    %1176 = vmatprep.subr.bf16.mxu0 0
    %1177 = vmatpush2.bf16.msra.mxu0 0
    %1178 = vmatprep.subr.bf16.mxu0 0
    %1179 = vmatpush2.bf16.msra.mxu0 0
    %1180 = vmatprep.subr.bf16.mxu0 0
    %1181 = vmatpush2.bf16.msra.mxu0 0
    %1182 = vmatprep.subr.bf16.mxu0 0
    %1183 = vmatpush2.bf16.msra.mxu0 0
    %1184 = vmatprep.subr.bf16.mxu0 0
    %1185 = vmatpush2.bf16.msra.mxu0 0
    %1186 = vmatprep.subr.bf16.mxu0 0
    %1187 = vmatpush2.bf16.msra.mxu0 0
    %1188 = vmatprep.mubr.bf16.mxu0 0
    %1189 = vmatmul.mubr.bf16.gmra.mxu0 %v931
    %v1190 = vpop.f32.mrf.mxu0
    %v1191 = vadd.f32 %v944, %v1190
    %v1192 = vpop.f32.mrf.mxu0
    %v1193 = vadd.f32 %v948, %v1192
    %v1194 = vpop.f32.mrf.mxu0
    %v1195 = vadd.f32 %v944, %v1194
    %v1196 = vpop.f32.mrf.mxu0
    %v1197 = vadd.f32 %v948, %v1196
    %1198 = vdwg.mxu0
    %v1231 = vunpack.c.l.b16 %v153
    %v1232 = vunpack.c.h.b16 %v153
    %v1233 = vunpack.c.l.b16 %v154
    %v1234 = vunpack.c.h.b16 %v154
    %v1235 = vunpack.c.l.b16 %v155
    %v1236 = vunpack.c.h.b16 %v155
    %v1237 = vunpack.c.l.b16 %v156
    %v1238 = vunpack.c.h.b16 %v156
    %v1239 = vunpack.c.l.b16 %v157
    %v1240 = vunpack.c.h.b16 %v157
    %v1241 = vunpack.c.l.b16 %v158
    %v1242 = vunpack.c.h.b16 %v158
    %v1243 = vunpack.c.l.b16 %v159
    %v1244 = vunpack.c.h.b16 %v159
    %v1245 = vunpack.c.l.b16 %v160
    %v1246 = vunpack.c.h.b16 %v160
    %v1247 = vunpack.c.l.b16 %v161
    %v1248 = vunpack.c.h.b16 %v161
    %v1249 = vunpack.c.l.b16 %v162
    %v1250 = vunpack.c.h.b16 %v162
    %v1251 = vunpack.c.l.b16 %v163
    %v1252 = vunpack.c.h.b16 %v163
    %v1253 = vunpack.c.l.b16 %v164
    %v1254 = vunpack.c.h.b16 %v164
    %v1255 = vunpack.c.l.b16 %v165
    %v1256 = vunpack.c.h.b16 %v165
    %v1257 = vunpack.c.l.b16 %v166
    %v1258 = vunpack.c.h.b16 %v166
    %v1259 = vunpack.c.l.b16 %v167
    %v1260 = vunpack.c.h.b16 %v167
    %v1261 = vunpack.c.l.b16 %v168
    %v1262 = vunpack.c.h.b16 %v168
    %v1263 = vunpack.c.l.b16 %v169
    %v1264 = vunpack.c.h.b16 %v169
    %v1265 = vunpack.c.l.b16 %v170
    %v1266 = vunpack.c.h.b16 %v170
    %v1267 = vunpack.c.l.b16 %v171
    %v1268 = vunpack.c.h.b16 %v171
    %v1269 = vunpack.c.l.b16 %v172
    %v1270 = vunpack.c.h.b16 %v172
    %v1271 = vunpack.c.l.b16 %v173
    %v1272 = vunpack.c.h.b16 %v173
    %v1273 = vunpack.c.l.b16 %v174
    %v1274 = vunpack.c.h.b16 %v174
    %v1275 = vunpack.c.l.b16 %v175
    %v1276 = vunpack.c.h.b16 %v175
    %v1277 = vunpack.c.l.b16 %v176
    %v1278 = vunpack.c.h.b16 %v176
    %v1279 = vunpack.c.l.b16 %v177
    %v1280 = vunpack.c.h.b16 %v177
    %v1281 = vunpack.c.l.b16 %v178
    %v1282 = vunpack.c.h.b16 %v178
    %v1283 = vunpack.c.l.b16 %v179
    %v1284 = vunpack.c.h.b16 %v179
    %v1285 = vunpack.c.l.b16 %v180
    %v1286 = vunpack.c.h.b16 %v180
    %v1287 = vunpack.c.l.b16 %v181
    %v1288 = vunpack.c.h.b16 %v181
    %v1289 = vunpack.c.l.b16 %v182
    %v1290 = vunpack.c.h.b16 %v182
    %v1291 = vunpack.c.l.b16 %v183
    %v1292 = vunpack.c.h.b16 %v183
    %v1293 = vunpack.c.l.b16 %v184
    %v1294 = vunpack.c.h.b16 %v184
    %v1295 = vpack.c.b16 %v1235, %v1231
    %v1296 = vpack.c.b16 %v1236, %v1232
    %v1297 = vpack.c.b16 %v1237, %v1233
    %v1298 = vpack.c.b16 %v1238, %v1234
    %v1299 = vpack.c.b16 %v1243, %v1239
    %v1300 = vpack.c.b16 %v1244, %v1240
    %v1301 = vpack.c.b16 %v1245, %v1241
    %v1302 = vpack.c.b16 %v1246, %v1242
    %v1303 = vpack.c.b16 %v1251, %v1247
    %v1304 = vpack.c.b16 %v1252, %v1248
    %v1305 = vpack.c.b16 %v1253, %v1249
    %v1306 = vpack.c.b16 %v1254, %v1250
    %v1307 = vpack.c.b16 %v1259, %v1255
    %v1308 = vpack.c.b16 %v1260, %v1256
    %v1309 = vpack.c.b16 %v1261, %v1257
    %v1310 = vpack.c.b16 %v1262, %v1258
    %v1311 = vpack.c.b16 %v1267, %v1263
    %v1312 = vpack.c.b16 %v1268, %v1264
    %v1313 = vpack.c.b16 %v1269, %v1265
    %v1314 = vpack.c.b16 %v1270, %v1266
    %v1315 = vpack.c.b16 %v1275, %v1271
    %v1316 = vpack.c.b16 %v1276, %v1272
    %v1317 = vpack.c.b16 %v1277, %v1273
    %v1318 = vpack.c.b16 %v1278, %v1274
    %v1319 = vpack.c.b16 %v1283, %v1279
    %v1320 = vpack.c.b16 %v1284, %v1280
    %v1321 = vpack.c.b16 %v1285, %v1281
    %v1322 = vpack.c.b16 %v1286, %v1282
    %v1323 = vpack.c.b16 %v1291, %v1287
    %v1324 = vpack.c.b16 %v1292, %v1288
    %v1325 = vpack.c.b16 %v1293, %v1289
    %v1326 = vpack.c.b16 %v1294, %v1290
    %1359 = vmatprep.subr.bf16.mxu0 %v1324
    %1360 = vmatpush1.bf16.msra.mxu0 %v1323
    %1361 = vmatprep.subr.bf16.mxu0 %v1320
    %1362 = vmatpush1.bf16.msra.mxu0 %v1319
    %1363 = vmatprep.subr.bf16.mxu0 %v1316
    %1364 = vmatpush1.bf16.msra.mxu0 %v1315
    %1365 = vmatprep.subr.bf16.mxu0 %v1312
    %1366 = vmatpush1.bf16.msra.mxu0 %v1311
    %1367 = vmatprep.subr.bf16.mxu0 %v1308
    %1368 = vmatpush1.bf16.msra.mxu0 %v1307
    %1369 = vmatprep.subr.bf16.mxu0 %v1304
    %1370 = vmatpush1.bf16.msra.mxu0 %v1303
    %1371 = vmatprep.subr.bf16.mxu0 %v1300
    %1372 = vmatpush1.bf16.msra.mxu0 %v1299
    %1373 = vmatprep.subr.bf16.mxu0 %v1296
    %1374 = vmatpush1.bf16.msra.mxu0 %v1295
    %1375 = vmatprep.subr.bf16.mxu0 0
    %1376 = vmatpush2.bf16.msra.mxu0 0
    %1377 = vmatprep.subr.bf16.mxu0 0
    %1378 = vmatpush2.bf16.msra.mxu0 0
    %1379 = vmatprep.subr.bf16.mxu0 0
    %1380 = vmatpush2.bf16.msra.mxu0 0
    %1381 = vmatprep.subr.bf16.mxu0 0
    %1382 = vmatpush2.bf16.msra.mxu0 0
    %1383 = vmatprep.subr.bf16.mxu0 0
    %1384 = vmatpush2.bf16.msra.mxu0 0
    %1385 = vmatprep.subr.bf16.mxu0 0
    %1386 = vmatpush2.bf16.msra.mxu0 0
    %1387 = vmatprep.subr.bf16.mxu0 0
    %1388 = vmatpush2.bf16.msra.mxu0 0
    %1389 = vmatprep.subr.bf16.mxu0 0
    %1390 = vmatpush2.bf16.msra.mxu0 0
    %1391 = vmatprep.mubr.bf16.mxu0 0
    %1392 = vmatmul.mubr.bf16.gmra.mxu0 0
    %v1393 = vpop.f32.mrf.mxu0
    %v1394 = vadd.f32 0.0, %v1393
    %v1395 = vpop.f32.mrf.mxu0
    %v1396 = vadd.f32 0.0, %v1395
    %v1397 = vpop.f32.mrf.mxu0
    %v1398 = vadd.f32 0.0, %v1397
    %v1399 = vpop.f32.mrf.mxu0
    %v1400 = vadd.f32 0.0, %v1399
    %1401 = vdwg.mxu0
    %1402 = vmatprep.subr.bf16.mxu0 %v1326
    %1403 = vmatpush1.bf16.msra.mxu0 %v1325
    %1404 = vmatprep.subr.bf16.mxu0 %v1322
    %1405 = vmatpush1.bf16.msra.mxu0 %v1321
    %1406 = vmatprep.subr.bf16.mxu0 %v1318
    %1407 = vmatpush1.bf16.msra.mxu0 %v1317
    %1408 = vmatprep.subr.bf16.mxu0 %v1314
    %1409 = vmatpush1.bf16.msra.mxu0 %v1313
    %1410 = vmatprep.subr.bf16.mxu0 %v1310
    %1411 = vmatpush1.bf16.msra.mxu0 %v1309
    %1412 = vmatprep.subr.bf16.mxu0 %v1306
    %1413 = vmatpush1.bf16.msra.mxu0 %v1305
    %1414 = vmatprep.subr.bf16.mxu0 %v1302
    %1415 = vmatpush1.bf16.msra.mxu0 %v1301
    %1416 = vmatprep.subr.bf16.mxu0 %v1298
    %1417 = vmatpush1.bf16.msra.mxu0 %v1297
    %1418 = vmatprep.subr.bf16.mxu0 0
    %1419 = vmatpush2.bf16.msra.mxu0 0
    %1420 = vmatprep.subr.bf16.mxu0 0
    %1421 = vmatpush2.bf16.msra.mxu0 0
    %1422 = vmatprep.subr.bf16.mxu0 0
    %1423 = vmatpush2.bf16.msra.mxu0 0
    %1424 = vmatprep.subr.bf16.mxu0 0
    %1425 = vmatpush2.bf16.msra.mxu0 0
    %1426 = vmatprep.subr.bf16.mxu0 0
    %1427 = vmatpush2.bf16.msra.mxu0 0
    %1428 = vmatprep.subr.bf16.mxu0 0
    %1429 = vmatpush2.bf16.msra.mxu0 0
    %1430 = vmatprep.subr.bf16.mxu0 0
    %1431 = vmatpush2.bf16.msra.mxu0 0
    %1432 = vmatprep.subr.bf16.mxu0 0
    %1433 = vmatpush2.bf16.msra.mxu0 0
    %1434 = vmatprep.mubr.bf16.mxu0 0
    %1435 = vmatmul.mubr.bf16.gmra.mxu0 0
    %v1436 = vpop.f32.mrf.mxu0
    %v1437 = vadd.f32 0.0, %v1436
    %v1438 = vpop.f32.mrf.mxu0
    %v1439 = vadd.f32 0.0, %v1438
    %v1440 = vpop.f32.mrf.mxu0
    %v1441 = vadd.f32 0.0, %v1440
    %v1442 = vpop.f32.mrf.mxu0
    %v1443 = vadd.f32 0.0, %v1442
    %1444 = vdwg.mxu0
    %v1445 = vadd.f32 %v1148, %v1394
    %v1446 = vadd.f32 %v1150, %v1396
    %v1447 = vadd.f32 %v1191, %v1437
    %v1448 = vadd.f32 %v1193, %v1439
    %v1449 = vadd.f32 %v1152, %v1398
    %v1450 = vadd.f32 %v1154, %v1400
    %v1451 = vadd.f32 %v1195, %v1441
    %v1452 = vadd.f32 %v1197, %v1443
    %v1453 = vxor.u32 %v1445, 2147483648
    %v1454 = vxor.u32 %v1449, 2147483648
    %v1455 = vmul.f32 %v1453, 1.442695
    %v1456 = vpow.pop %v1455
    %v1457 = vmul.f32 %v1454, 1.442695
    %v1458 = vpow.pop %v1457
    %v1459 = vadd.f32 %v1456, 1.0
    %v1460 = vadd.f32 %v1458, 1.0
    %v1461 = vrcp.pop %v1459
    %v1462 = vmul.f32 1.0, %v1461
    %v1463 = vrcp.pop %v1460
    %v1464 = vmul.f32 1.0, %v1463
    %v1465 = vxor.u32 %v1446, 2147483648
    %v1466 = vxor.u32 %v1450, 2147483648
    %v1467 = vmul.f32 %v1465, 1.442695
    %v1468 = vpow.pop %v1467
    %v1469 = vmul.f32 %v1466, 1.442695
    %v1470 = vpow.pop %v1469
    %v1471 = vadd.f32 %v1468, 1.0
    %v1472 = vadd.f32 %v1470, 1.0
    %v1473 = vrcp.pop %v1471
    %v1474 = vmul.f32 1.0, %v1473
    %v1475 = vrcp.pop %v1472
    %v1476 = vmul.f32 1.0, %v1475
    %v1477 = vtanh.pop %v1447
    %v1478 = vtanh.pop %v1451
    %v1479 = vxor.u32 %v1448, 2147483648
    %v1480 = vxor.u32 %v1452, 2147483648
    %v1481 = vmul.f32 %v1479, 1.442695
    %v1482 = vpow.pop %v1481
    %v1483 = vmul.f32 %v1480, 1.442695
    %v1484 = vpow.pop %v1483
    %v1485 = vadd.f32 %v1482, 1.0
    %v1486 = vadd.f32 %v1484, 1.0
    %v1487 = vrcp.pop %v1485
    %v1488 = vmul.f32 1.0, %v1487
    %v1489 = vrcp.pop %v1486
    %v1490 = vmul.f32 1.0, %v1489
    %v1491 = vmul.f32 %v1474, 0.0
    %v1492 = vmul.f32 %v1476, 0.0
    %v1493 = vmul.f32 %v1462, %v1477
    %v1494 = vmul.f32 %v1464, %v1478
    %v1495 = vadd.f32 %v1491, %v1493
    %v1496 = vadd.f32 %v1492, %v1494
    %v1497 = vtanh.pop %v1495
    %v1498 = vtanh.pop %v1496
    %v1499 = vmul.f32 %v1488, %v1497
    %v1500 = vmul.f32 %v1490, %v1498
    %v1501 = vpack.c.bf16 %v1500, %v1499
    %v1503 = vunpack.c.l.b16 %v1501
    %v1504 = vunpack.c.h.b16 %v1501
    %v1505 = vpack.c.b16 %v1503, %v1503
    %v1506 = vpack.c.b16 %v1504, %v1504
    %1509 = vst [vmem:[#allocation2] sm:$0xf] %v1505
    %1510 = vst [vmem:[#allocation2 + $0x20] sm:$0xf] %v1506
    %1511 = vmatprep.subr.bf16.mxu0 %v754
    %1512 = vmatpush1.bf16.msra.mxu0 %v753
    %1513 = vmatprep.subr.bf16.mxu0 %v750
    %1514 = vmatpush1.bf16.msra.mxu0 %v749
    %1515 = vmatprep.subr.bf16.mxu0 %v746
    %1516 = vmatpush1.bf16.msra.mxu0 %v745
    %1517 = vmatprep.subr.bf16.mxu0 %v742
    %1518 = vmatpush1.bf16.msra.mxu0 %v741
    %1519 = vmatprep.subr.bf16.mxu0 %v738
    %1520 = vmatpush1.bf16.msra.mxu0 %v737
    %1521 = vmatprep.subr.bf16.mxu0 %v734
    %1522 = vmatpush1.bf16.msra.mxu0 %v733
    %1523 = vmatprep.subr.bf16.mxu0 %v730
    %1524 = vmatpush1.bf16.msra.mxu0 %v729
    %1525 = vmatprep.subr.bf16.mxu0 %v726
    %1526 = vmatpush1.bf16.msra.mxu0 %v725
    %1527 = vmatprep.subr.bf16.mxu0 0
    %1528 = vmatpush2.bf16.msra.mxu0 0
    %1529 = vmatprep.subr.bf16.mxu0 0
    %1530 = vmatpush2.bf16.msra.mxu0 0
    %1531 = vmatprep.subr.bf16.mxu0 0
    %1532 = vmatpush2.bf16.msra.mxu0 0
    %1533 = vmatprep.subr.bf16.mxu0 0
    %1534 = vmatpush2.bf16.msra.mxu0 0
    %1535 = vmatprep.subr.bf16.mxu0 0
    %1536 = vmatpush2.bf16.msra.mxu0 0
    %1537 = vmatprep.subr.bf16.mxu0 0
    %1538 = vmatpush2.bf16.msra.mxu0 0
    %1539 = vmatprep.subr.bf16.mxu0 0
    %1540 = vmatpush2.bf16.msra.mxu0 0
    %1541 = vmatprep.subr.bf16.mxu0 0
    %1542 = vmatpush2.bf16.msra.mxu0 0
    %1543 = vmatprep.mubr.bf16.mxu0 0
    %1544 = vmatmul.mubr.bf16.gmra.mxu0 %v931
    %v1545 = vpop.f32.mrf.mxu0
    %v1546 = vadd.f32 0.0, %v1545
    %v1547 = vpop.f32.mrf.mxu0
    %v1548 = vadd.f32 0.0, %v1547
    %v1549 = vpop.f32.mrf.mxu0
    %v1550 = vadd.f32 0.0, %v1549
    %v1551 = vpop.f32.mrf.mxu0
    %v1552 = vadd.f32 0.0, %v1551
    %1553 = vdwg.mxu0
    %1554 = vmatprep.subr.bf16.mxu0 %v756
    %1555 = vmatpush1.bf16.msra.mxu0 %v755
    %1556 = vmatprep.subr.bf16.mxu0 %v752
    %1557 = vmatpush1.bf16.msra.mxu0 %v751
    %1558 = vmatprep.subr.bf16.mxu0 %v748
    %1559 = vmatpush1.bf16.msra.mxu0 %v747
    %1560 = vmatprep.subr.bf16.mxu0 %v744
    %1561 = vmatpush1.bf16.msra.mxu0 %v743
    %1562 = vmatprep.subr.bf16.mxu0 %v740
    %1563 = vmatpush1.bf16.msra.mxu0 %v739
    %1564 = vmatprep.subr.bf16.mxu0 %v736
    %1565 = vmatpush1.bf16.msra.mxu0 %v735
    %1566 = vmatprep.subr.bf16.mxu0 %v732
    %1567 = vmatpush1.bf16.msra.mxu0 %v731
    %1568 = vmatprep.subr.bf16.mxu0 %v728
    %1569 = vmatpush1.bf16.msra.mxu0 %v727
    %1570 = vmatprep.subr.bf16.mxu0 0
    %1571 = vmatpush2.bf16.msra.mxu0 0
    %1572 = vmatprep.subr.bf16.mxu0 0
    %1573 = vmatpush2.bf16.msra.mxu0 0
    %1574 = vmatprep.subr.bf16.mxu0 0
    %1575 = vmatpush2.bf16.msra.mxu0 0
    %1576 = vmatprep.subr.bf16.mxu0 0
    %1577 = vmatpush2.bf16.msra.mxu0 0
    %1578 = vmatprep.subr.bf16.mxu0 0
    %1579 = vmatpush2.bf16.msra.mxu0 0
    %1580 = vmatprep.subr.bf16.mxu0 0
    %1581 = vmatpush2.bf16.msra.mxu0 0
    %1582 = vmatprep.subr.bf16.mxu0 0
    %1583 = vmatpush2.bf16.msra.mxu0 0
    %1584 = vmatprep.subr.bf16.mxu0 0
    %1585 = vmatpush2.bf16.msra.mxu0 0
    %1586 = vmatprep.mubr.bf16.mxu0 0
    %1587 = vmatmul.mubr.bf16.gmra.mxu0 %v931
    %v1588 = vpop.f32.mrf.mxu0
    %v1589 = vadd.f32 0.0, %v1588
    %v1590 = vpop.f32.mrf.mxu0
    %v1591 = vadd.f32 0.0, %v1590
    %v1592 = vpop.f32.mrf.mxu0
    %v1593 = vadd.f32 0.0, %v1592
    %v1594 = vpop.f32.mrf.mxu0
    %v1595 = vadd.f32 0.0, %v1594
    %1596 = vdwg.mxu0
    %v1597 = vadd.f32 %v448, %v1546
    %v1598 = vadd.f32 %v450, %v1548
    %v1599 = vadd.f32 %v561, %v1589
    %v1600 = vadd.f32 %v563, %v1591
    %v1601 = vadd.f32 %v452, %v1550
    %v1602 = vadd.f32 %v454, %v1552
    %v1603 = vadd.f32 %v565, %v1593
    %v1604 = vadd.f32 %v567, %v1595
    %v1605 = vxor.u32 %v1597, 2147483648
    %v1606 = vxor.u32 %v1601, 2147483648
    %v1607 = vmul.f32 %v1605, 1.442695
    %v1608 = vpow.pop %v1607
    %v1609 = vmul.f32 %v1606, 1.442695
    %v1610 = vpow.pop %v1609
    %v1611 = vadd.f32 %v1608, 1.0
    %v1612 = vadd.f32 %v1610, 1.0
    %v1613 = vrcp.pop %v1611
    %v1614 = vmul.f32 1.0, %v1613
    %v1615 = vrcp.pop %v1612
    %v1616 = vmul.f32 1.0, %v1615
    %v1617 = vxor.u32 %v1598, 2147483648
    %v1618 = vxor.u32 %v1602, 2147483648
    %v1619 = vmul.f32 %v1617, 1.442695
    %v1620 = vpow.pop %v1619
    %v1621 = vmul.f32 %v1618, 1.442695
    %v1622 = vpow.pop %v1621
    %v1623 = vadd.f32 %v1620, 1.0
    %v1624 = vadd.f32 %v1622, 1.0
    %v1625 = vrcp.pop %v1623
    %v1626 = vmul.f32 1.0, %v1625
    %v1627 = vrcp.pop %v1624
    %v1628 = vmul.f32 1.0, %v1627
    %v1629 = vtanh.pop %v1599
    %v1630 = vtanh.pop %v1603
    %v1631 = vxor.u32 %v1600, 2147483648
    %v1632 = vxor.u32 %v1604, 2147483648
    %v1633 = vmul.f32 %v1631, 1.442695
    %v1634 = vpow.pop %v1633
    %v1635 = vmul.f32 %v1632, 1.442695
    %v1636 = vpow.pop %v1635
    %v1637 = vadd.f32 %v1634, 1.0
    %v1638 = vadd.f32 %v1636, 1.0
    %v1639 = vrcp.pop %v1637
    %v1640 = vmul.f32 1.0, %v1639
    %v1641 = vrcp.pop %v1638
    %v1642 = vmul.f32 1.0, %v1641
    %v1643 = vmul.f32 %v1626, %v925
    %v1644 = vmul.f32 %v1628, %v926
    %v1645 = vmul.f32 %v1614, %v1629
    %v1646 = vmul.f32 %v1616, %v1630
    %v1647 = vadd.f32 %v1643, %v1645
    %v1648 = vadd.f32 %v1644, %v1646
    %v1649 = vtanh.pop %v1647
    %v1650 = vtanh.pop %v1648
    %v1651 = vmul.f32 %v1640, %v1649
    %v1652 = vmul.f32 %v1642, %v1650
    %v1653 = vpack.c.bf16 %v1652, %v1651
    %1654 = vmatprep.subr.bf16.mxu0 %v1078
    %1655 = vmatpush1.bf16.msra.mxu0 %v1077
    %1656 = vmatprep.subr.bf16.mxu0 %v1074
    %1657 = vmatpush1.bf16.msra.mxu0 %v1073
    %1658 = vmatprep.subr.bf16.mxu0 %v1070
    %1659 = vmatpush1.bf16.msra.mxu0 %v1069
    %1660 = vmatprep.subr.bf16.mxu0 %v1066
    %1661 = vmatpush1.bf16.msra.mxu0 %v1065
    %1662 = vmatprep.subr.bf16.mxu0 %v1062
    %1663 = vmatpush1.bf16.msra.mxu0 %v1061
    %1664 = vmatprep.subr.bf16.mxu0 %v1058
    %1665 = vmatpush1.bf16.msra.mxu0 %v1057
    %1666 = vmatprep.subr.bf16.mxu0 %v1054
    %1667 = vmatpush1.bf16.msra.mxu0 %v1053
    %1668 = vmatprep.subr.bf16.mxu0 %v1050
    %1669 = vmatpush1.bf16.msra.mxu0 %v1049
    %1670 = vmatprep.subr.bf16.mxu0 0
    %1671 = vmatpush2.bf16.msra.mxu0 0
    %1672 = vmatprep.subr.bf16.mxu0 0
    %1673 = vmatpush2.bf16.msra.mxu0 0
    %1674 = vmatprep.subr.bf16.mxu0 0
    %1675 = vmatpush2.bf16.msra.mxu0 0
    %1676 = vmatprep.subr.bf16.mxu0 0
    %1677 = vmatpush2.bf16.msra.mxu0 0
    %1678 = vmatprep.subr.bf16.mxu0 0
    %1679 = vmatpush2.bf16.msra.mxu0 0
    %1680 = vmatprep.subr.bf16.mxu0 0
    %1681 = vmatpush2.bf16.msra.mxu0 0
    %1682 = vmatprep.subr.bf16.mxu0 0
    %1683 = vmatpush2.bf16.msra.mxu0 0
    %1684 = vmatprep.subr.bf16.mxu0 0
    %1685 = vmatpush2.bf16.msra.mxu0 0
    %1686 = vmatprep.mubr.bf16.mxu0 0
    %1687 = vmatmul.mubr.bf16.gmra.mxu0 %v1653
    %v1688 = vpop.f32.mrf.mxu0
    %v1689 = vadd.f32 %v936, %v1688
    %v1690 = vpop.f32.mrf.mxu0
    %v1691 = vadd.f32 %v940, %v1690
    %v1692 = vpop.f32.mrf.mxu0
    %v1693 = vadd.f32 %v936, %v1692
    %v1694 = vpop.f32.mrf.mxu0
    %v1695 = vadd.f32 %v940, %v1694
    %1696 = vdwg.mxu0
    %1697 = vmatprep.subr.bf16.mxu0 %v1080
    %1698 = vmatpush1.bf16.msra.mxu0 %v1079
    %1699 = vmatprep.subr.bf16.mxu0 %v1076
    %1700 = vmatpush1.bf16.msra.mxu0 %v1075
    %1701 = vmatprep.subr.bf16.mxu0 %v1072
    %1702 = vmatpush1.bf16.msra.mxu0 %v1071
    %1703 = vmatprep.subr.bf16.mxu0 %v1068
    %1704 = vmatpush1.bf16.msra.mxu0 %v1067
    %1705 = vmatprep.subr.bf16.mxu0 %v1064
    %1706 = vmatpush1.bf16.msra.mxu0 %v1063
    %1707 = vmatprep.subr.bf16.mxu0 %v1060
    %1708 = vmatpush1.bf16.msra.mxu0 %v1059
    %1709 = vmatprep.subr.bf16.mxu0 %v1056
    %1710 = vmatpush1.bf16.msra.mxu0 %v1055
    %1711 = vmatprep.subr.bf16.mxu0 %v1052
    %1712 = vmatpush1.bf16.msra.mxu0 %v1051
    %1713 = vmatprep.subr.bf16.mxu0 0
    %1714 = vmatpush2.bf16.msra.mxu0 0
    %1715 = vmatprep.subr.bf16.mxu0 0
    %1716 = vmatpush2.bf16.msra.mxu0 0
    %1717 = vmatprep.subr.bf16.mxu0 0
    %1718 = vmatpush2.bf16.msra.mxu0 0
    %1719 = vmatprep.subr.bf16.mxu0 0
    %1720 = vmatpush2.bf16.msra.mxu0 0
    %1721 = vmatprep.subr.bf16.mxu0 0
    %1722 = vmatpush2.bf16.msra.mxu0 0
    %1723 = vmatprep.subr.bf16.mxu0 0
    %1724 = vmatpush2.bf16.msra.mxu0 0
    %1725 = vmatprep.subr.bf16.mxu0 0
    %1726 = vmatpush2.bf16.msra.mxu0 0
    %1727 = vmatprep.subr.bf16.mxu0 0
    %1728 = vmatpush2.bf16.msra.mxu0 0
    %1729 = vmatprep.mubr.bf16.mxu0 0
    %1730 = vmatmul.mubr.bf16.gmra.mxu0 %v1653
    %v1731 = vpop.f32.mrf.mxu0
    %v1732 = vadd.f32 %v944, %v1731
    %v1733 = vpop.f32.mrf.mxu0
    %v1734 = vadd.f32 %v948, %v1733
    %v1735 = vpop.f32.mrf.mxu0
    %v1736 = vadd.f32 %v944, %v1735
    %v1737 = vpop.f32.mrf.mxu0
    %v1738 = vadd.f32 %v948, %v1737
    %1739 = vdwg.mxu0
    %1740 = vmatprep.subr.bf16.mxu0 %v1324
    %1741 = vmatpush1.bf16.msra.mxu0 %v1323
    %1742 = vmatprep.subr.bf16.mxu0 %v1320
    %1743 = vmatpush1.bf16.msra.mxu0 %v1319
    %1744 = vmatprep.subr.bf16.mxu0 %v1316
    %1745 = vmatpush1.bf16.msra.mxu0 %v1315
    %1746 = vmatprep.subr.bf16.mxu0 %v1312
    %1747 = vmatpush1.bf16.msra.mxu0 %v1311
    %1748 = vmatprep.subr.bf16.mxu0 %v1308
    %1749 = vmatpush1.bf16.msra.mxu0 %v1307
    %1750 = vmatprep.subr.bf16.mxu0 %v1304
    %1751 = vmatpush1.bf16.msra.mxu0 %v1303
    %1752 = vmatprep.subr.bf16.mxu0 %v1300
    %1753 = vmatpush1.bf16.msra.mxu0 %v1299
    %1754 = vmatprep.subr.bf16.mxu0 %v1296
    %1755 = vmatpush1.bf16.msra.mxu0 %v1295
    %1756 = vmatprep.subr.bf16.mxu0 0
    %1757 = vmatpush2.bf16.msra.mxu0 0
    %1758 = vmatprep.subr.bf16.mxu0 0
    %1759 = vmatpush2.bf16.msra.mxu0 0
    %1760 = vmatprep.subr.bf16.mxu0 0
    %1761 = vmatpush2.bf16.msra.mxu0 0
    %1762 = vmatprep.subr.bf16.mxu0 0
    %1763 = vmatpush2.bf16.msra.mxu0 0
    %1764 = vmatprep.subr.bf16.mxu0 0
    %1765 = vmatpush2.bf16.msra.mxu0 0
    %1766 = vmatprep.subr.bf16.mxu0 0
    %1767 = vmatpush2.bf16.msra.mxu0 0
    %1768 = vmatprep.subr.bf16.mxu0 0
    %1769 = vmatpush2.bf16.msra.mxu0 0
    %1770 = vmatprep.subr.bf16.mxu0 0
    %1771 = vmatpush2.bf16.msra.mxu0 0
    %1772 = vmatprep.mubr.bf16.mxu0 0
    %1773 = vmatmul.mubr.bf16.gmra.mxu0 %v1501
    %v1774 = vpop.f32.mrf.mxu0
    %v1775 = vadd.f32 0.0, %v1774
    %v1776 = vpop.f32.mrf.mxu0
    %v1777 = vadd.f32 0.0, %v1776
    %v1778 = vpop.f32.mrf.mxu0
    %v1779 = vadd.f32 0.0, %v1778
    %v1780 = vpop.f32.mrf.mxu0
    %v1781 = vadd.f32 0.0, %v1780
    %1782 = vdwg.mxu0
    %1783 = vmatprep.subr.bf16.mxu0 %v1326
    %1784 = vmatpush1.bf16.msra.mxu0 %v1325
    %1785 = vmatprep.subr.bf16.mxu0 %v1322
    %1786 = vmatpush1.bf16.msra.mxu0 %v1321
    %1787 = vmatprep.subr.bf16.mxu0 %v1318
    %1788 = vmatpush1.bf16.msra.mxu0 %v1317
    %1789 = vmatprep.subr.bf16.mxu0 %v1314
    %1790 = vmatpush1.bf16.msra.mxu0 %v1313
    %1791 = vmatprep.subr.bf16.mxu0 %v1310
    %1792 = vmatpush1.bf16.msra.mxu0 %v1309
    %1793 = vmatprep.subr.bf16.mxu0 %v1306
    %1794 = vmatpush1.bf16.msra.mxu0 %v1305
    %1795 = vmatprep.subr.bf16.mxu0 %v1302
    %1796 = vmatpush1.bf16.msra.mxu0 %v1301
    %1797 = vmatprep.subr.bf16.mxu0 %v1298
    %1798 = vmatpush1.bf16.msra.mxu0 %v1297
    %1799 = vmatprep.subr.bf16.mxu0 0
    %1800 = vmatpush2.bf16.msra.mxu0 0
    %1801 = vmatprep.subr.bf16.mxu0 0
    %1802 = vmatpush2.bf16.msra.mxu0 0
    %1803 = vmatprep.subr.bf16.mxu0 0
    %1804 = vmatpush2.bf16.msra.mxu0 0
    %1805 = vmatprep.subr.bf16.mxu0 0
    %1806 = vmatpush2.bf16.msra.mxu0 0
    %1807 = vmatprep.subr.bf16.mxu0 0
    %1808 = vmatpush2.bf16.msra.mxu0 0
    %1809 = vmatprep.subr.bf16.mxu0 0
    %1810 = vmatpush2.bf16.msra.mxu0 0
    %1811 = vmatprep.subr.bf16.mxu0 0
    %1812 = vmatpush2.bf16.msra.mxu0 0
    %1813 = vmatprep.subr.bf16.mxu0 0
    %1814 = vmatpush2.bf16.msra.mxu0 0
    %1815 = vmatprep.mubr.bf16.mxu0 0
    %1816 = vmatmul.mubr.bf16.gmra.mxu0 %v1501
    %v1817 = vpop.f32.mrf.mxu0
    %v1818 = vadd.f32 0.0, %v1817
    %v1819 = vpop.f32.mrf.mxu0
    %v1820 = vadd.f32 0.0, %v1819
    %v1821 = vpop.f32.mrf.mxu0
    %v1822 = vadd.f32 0.0, %v1821
    %v1823 = vpop.f32.mrf.mxu0
    %v1824 = vadd.f32 0.0, %v1823
    %1825 = vdwg.mxu0
    %v1826 = vadd.f32 %v1689, %v1775
    %v1827 = vadd.f32 %v1691, %v1777
    %v1828 = vadd.f32 %v1732, %v1818
    %v1829 = vadd.f32 %v1734, %v1820
    %v1830 = vadd.f32 %v1693, %v1779
    %v1831 = vadd.f32 %v1695, %v1781
    %v1832 = vadd.f32 %v1736, %v1822
    %v1833 = vadd.f32 %v1738, %v1824
    %v1834 = vxor.u32 %v1826, 2147483648
    %v1835 = vxor.u32 %v1830, 2147483648
    %v1836 = vmul.f32 %v1834, 1.442695
    %v1837 = vpow.pop %v1836
    %v1838 = vmul.f32 %v1835, 1.442695
    %v1839 = vpow.pop %v1838
    %v1840 = vadd.f32 %v1837, 1.0
    %v1841 = vadd.f32 %v1839, 1.0
    %v1842 = vrcp.pop %v1840
    %v1843 = vmul.f32 1.0, %v1842
    %v1844 = vrcp.pop %v1841
    %v1845 = vmul.f32 1.0, %v1844
    %v1846 = vxor.u32 %v1827, 2147483648
    %v1847 = vxor.u32 %v1831, 2147483648
    %v1848 = vmul.f32 %v1846, 1.442695
    %v1849 = vpow.pop %v1848
    %v1850 = vmul.f32 %v1847, 1.442695
    %v1851 = vpow.pop %v1850
    %v1852 = vadd.f32 %v1849, 1.0
    %v1853 = vadd.f32 %v1851, 1.0
    %v1854 = vrcp.pop %v1852
    %v1855 = vmul.f32 1.0, %v1854
    %v1856 = vrcp.pop %v1853
    %v1857 = vmul.f32 1.0, %v1856
    %v1858 = vtanh.pop %v1828
    %v1859 = vtanh.pop %v1832
    %v1860 = vxor.u32 %v1829, 2147483648
    %v1861 = vxor.u32 %v1833, 2147483648
    %v1862 = vmul.f32 %v1860, 1.442695
    %v1863 = vpow.pop %v1862
    %v1864 = vmul.f32 %v1861, 1.442695
    %v1865 = vpow.pop %v1864
    %v1866 = vadd.f32 %v1863, 1.0
    %v1867 = vadd.f32 %v1865, 1.0
    %v1868 = vrcp.pop %v1866
    %v1869 = vmul.f32 1.0, %v1868
    %v1870 = vrcp.pop %v1867
    %v1871 = vmul.f32 1.0, %v1870
    %v1872 = vmul.f32 %v1855, %v1495
    %v1873 = vmul.f32 %v1857, %v1496
    %v1874 = vmul.f32 %v1843, %v1858
    %v1875 = vmul.f32 %v1845, %v1859
    %v1876 = vadd.f32 %v1872, %v1874
    %v1877 = vadd.f32 %v1873, %v1875
    %v1878 = vtanh.pop %v1876
    %v1879 = vtanh.pop %v1877
    %v1880 = vmul.f32 %v1869, %v1878
    %v1881 = vmul.f32 %v1871, %v1879
    %v1882 = vpack.c.bf16 %v1881, %v1880
    %v1884 = vunpack.c.l.b16 %v1882
    %v1885 = vunpack.c.h.b16 %v1882
    %v1886 = vpack.c.b16 %v1884, %v1884
    %v1887 = vpack.c.b16 %v1885, %v1885
    %1890 = vst [vmem:[#allocation2 + $0x4] sm:$0xf] %v1886
    %1891 = vst [vmem:[#allocation2 + $0x24] sm:$0xf] %v1887
    %1892 = vmatprep.subr.bf16.mxu0 %v754
    %1893 = vmatpush1.bf16.msra.mxu0 %v753
    %1894 = vmatprep.subr.bf16.mxu0 %v750
    %1895 = vmatpush1.bf16.msra.mxu0 %v749
    %1896 = vmatprep.subr.bf16.mxu0 %v746
    %1897 = vmatpush1.bf16.msra.mxu0 %v745
    %1898 = vmatprep.subr.bf16.mxu0 %v742
    %1899 = vmatpush1.bf16.msra.mxu0 %v741
    %1900 = vmatprep.subr.bf16.mxu0 %v738
    %1901 = vmatpush1.bf16.msra.mxu0 %v737
    %1902 = vmatprep.subr.bf16.mxu0 %v734
    %1903 = vmatpush1.bf16.msra.mxu0 %v733
    %1904 = vmatprep.subr.bf16.mxu0 %v730
    %1905 = vmatpush1.bf16.msra.mxu0 %v729
    %1906 = vmatprep.subr.bf16.mxu0 %v726
    %1907 = vmatpush1.bf16.msra.mxu0 %v725
    %1908 = vmatprep.subr.bf16.mxu0 0
    %1909 = vmatpush2.bf16.msra.mxu0 0
    %1910 = vmatprep.subr.bf16.mxu0 0
    %1911 = vmatpush2.bf16.msra.mxu0 0
    %1912 = vmatprep.subr.bf16.mxu0 0
    %1913 = vmatpush2.bf16.msra.mxu0 0
    %1914 = vmatprep.subr.bf16.mxu0 0
    %1915 = vmatpush2.bf16.msra.mxu0 0
    %1916 = vmatprep.subr.bf16.mxu0 0
    %1917 = vmatpush2.bf16.msra.mxu0 0
    %1918 = vmatprep.subr.bf16.mxu0 0
    %1919 = vmatpush2.bf16.msra.mxu0 0
    %1920 = vmatprep.subr.bf16.mxu0 0
    %1921 = vmatpush2.bf16.msra.mxu0 0
    %1922 = vmatprep.subr.bf16.mxu0 0
    %1923 = vmatpush2.bf16.msra.mxu0 0
    %1924 = vmatprep.mubr.bf16.mxu0 0
    %1925 = vmatmul.mubr.bf16.gmra.mxu0 %v1653
    %v1926 = vpop.f32.mrf.mxu0
    %v1927 = vadd.f32 0.0, %v1926
    %v1928 = vpop.f32.mrf.mxu0
    %v1929 = vadd.f32 0.0, %v1928
    %v1930 = vpop.f32.mrf.mxu0
    %v1931 = vadd.f32 0.0, %v1930
    %v1932 = vpop.f32.mrf.mxu0
    %v1933 = vadd.f32 0.0, %v1932
    %1934 = vdwg.mxu0
    %1935 = vmatprep.subr.bf16.mxu0 %v756
    %1936 = vmatpush1.bf16.msra.mxu0 %v755
    %1937 = vmatprep.subr.bf16.mxu0 %v752
    %1938 = vmatpush1.bf16.msra.mxu0 %v751
    %1939 = vmatprep.subr.bf16.mxu0 %v748
    %1940 = vmatpush1.bf16.msra.mxu0 %v747
    %1941 = vmatprep.subr.bf16.mxu0 %v744
    %1942 = vmatpush1.bf16.msra.mxu0 %v743
    %1943 = vmatprep.subr.bf16.mxu0 %v740
    %1944 = vmatpush1.bf16.msra.mxu0 %v739
    %1945 = vmatprep.subr.bf16.mxu0 %v736
    %1946 = vmatpush1.bf16.msra.mxu0 %v735
    %1947 = vmatprep.subr.bf16.mxu0 %v732
    %1948 = vmatpush1.bf16.msra.mxu0 %v731
    %1949 = vmatprep.subr.bf16.mxu0 %v728
    %1950 = vmatpush1.bf16.msra.mxu0 %v727
    %1951 = vmatprep.subr.bf16.mxu0 0
    %1952 = vmatpush2.bf16.msra.mxu0 0
    %1953 = vmatprep.subr.bf16.mxu0 0
    %1954 = vmatpush2.bf16.msra.mxu0 0
    %1955 = vmatprep.subr.bf16.mxu0 0
    %1956 = vmatpush2.bf16.msra.mxu0 0
    %1957 = vmatprep.subr.bf16.mxu0 0
    %1958 = vmatpush2.bf16.msra.mxu0 0
    %1959 = vmatprep.subr.bf16.mxu0 0
    %1960 = vmatpush2.bf16.msra.mxu0 0
    %1961 = vmatprep.subr.bf16.mxu0 0
    %1962 = vmatpush2.bf16.msra.mxu0 0
    %1963 = vmatprep.subr.bf16.mxu0 0
    %1964 = vmatpush2.bf16.msra.mxu0 0
    %1965 = vmatprep.subr.bf16.mxu0 0
    %1966 = vmatpush2.bf16.msra.mxu0 0
    %1967 = vmatprep.mubr.bf16.mxu0 0
    %1968 = vmatmul.mubr.bf16.gmra.mxu0 %v1653
    %v1969 = vpop.f32.mrf.mxu0
    %v1970 = vadd.f32 0.0, %v1969
    %v1971 = vpop.f32.mrf.mxu0
    %v1972 = vadd.f32 0.0, %v1971
    %v1973 = vpop.f32.mrf.mxu0
    %v1974 = vadd.f32 0.0, %v1973
    %v1975 = vpop.f32.mrf.mxu0
    %v1976 = vadd.f32 0.0, %v1975
    %1977 = vdwg.mxu0
    %v1978 = vadd.f32 %v458, %v1927
    %v1979 = vadd.f32 %v460, %v1929
    %v1980 = vadd.f32 %v571, %v1970
    %v1981 = vadd.f32 %v573, %v1972
    %v1982 = vadd.f32 %v462, %v1931
    %v1983 = vadd.f32 %v464, %v1933
    %v1984 = vadd.f32 %v575, %v1974
    %v1985 = vadd.f32 %v577, %v1976
    %v1986 = vxor.u32 %v1978, 2147483648
    %v1987 = vxor.u32 %v1982, 2147483648
    %v1988 = vmul.f32 %v1986, 1.442695
    %v1989 = vpow.pop %v1988
    %v1990 = vmul.f32 %v1987, 1.442695
    %v1991 = vpow.pop %v1990
    %v1992 = vadd.f32 %v1989, 1.0
    %v1993 = vadd.f32 %v1991, 1.0
    %v1994 = vrcp.pop %v1992
    %v1995 = vmul.f32 1.0, %v1994
    %v1996 = vrcp.pop %v1993
    %v1997 = vmul.f32 1.0, %v1996
    %v1998 = vxor.u32 %v1979, 2147483648
    %v1999 = vxor.u32 %v1983, 2147483648
    %v2000 = vmul.f32 %v1998, 1.442695
    %v2001 = vpow.pop %v2000
    %v2002 = vmul.f32 %v1999, 1.442695
    %v2003 = vpow.pop %v2002
    %v2004 = vadd.f32 %v2001, 1.0
    %v2005 = vadd.f32 %v2003, 1.0
    %v2006 = vrcp.pop %v2004
    %v2007 = vmul.f32 1.0, %v2006
    %v2008 = vrcp.pop %v2005
    %v2009 = vmul.f32 1.0, %v2008
    %v2010 = vtanh.pop %v1980
    %v2011 = vtanh.pop %v1984
    %v2012 = vxor.u32 %v1981, 2147483648
    %v2013 = vxor.u32 %v1985, 2147483648
    %v2014 = vmul.f32 %v2012, 1.442695
    %v2015 = vpow.pop %v2014
    %v2016 = vmul.f32 %v2013, 1.442695
    %v2017 = vpow.pop %v2016
    %v2018 = vadd.f32 %v2015, 1.0
    %v2019 = vadd.f32 %v2017, 1.0
    %v2020 = vrcp.pop %v2018
    %v2021 = vmul.f32 1.0, %v2020
    %v2022 = vrcp.pop %v2019
    %v2023 = vmul.f32 1.0, %v2022
    %v2024 = vmul.f32 %v2007, %v1647
    %v2025 = vmul.f32 %v2009, %v1648
    %v2026 = vmul.f32 %v1995, %v2010
    %v2027 = vmul.f32 %v1997, %v2011
    %v2028 = vadd.f32 %v2024, %v2026
    %v2029 = vadd.f32 %v2025, %v2027
    %v2030 = vtanh.pop %v2028
    %v2031 = vtanh.pop %v2029
    %v2032 = vmul.f32 %v2021, %v2030
    %v2033 = vmul.f32 %v2023, %v2031
    %v2034 = vpack.c.bf16 %v2033, %v2032
    %2035 = vmatprep.subr.bf16.mxu0 %v1078
    %2036 = vmatpush1.bf16.msra.mxu0 %v1077
    %2037 = vmatprep.subr.bf16.mxu0 %v1074
    %2038 = vmatpush1.bf16.msra.mxu0 %v1073
    %2039 = vmatprep.subr.bf16.mxu0 %v1070
    %2040 = vmatpush1.bf16.msra.mxu0 %v1069
    %2041 = vmatprep.subr.bf16.mxu0 %v1066
    %2042 = vmatpush1.bf16.msra.mxu0 %v1065
    %2043 = vmatprep.subr.bf16.mxu0 %v1062
    %2044 = vmatpush1.bf16.msra.mxu0 %v1061
    %2045 = vmatprep.subr.bf16.mxu0 %v1058
    %2046 = vmatpush1.bf16.msra.mxu0 %v1057
    %2047 = vmatprep.subr.bf16.mxu0 %v1054
    %2048 = vmatpush1.bf16.msra.mxu0 %v1053
    %2049 = vmatprep.subr.bf16.mxu0 %v1050
    %2050 = vmatpush1.bf16.msra.mxu0 %v1049
    %2051 = vmatprep.subr.bf16.mxu0 0
    %2052 = vmatpush2.bf16.msra.mxu0 0
    %2053 = vmatprep.subr.bf16.mxu0 0
    %2054 = vmatpush2.bf16.msra.mxu0 0
    %2055 = vmatprep.subr.bf16.mxu0 0
    %2056 = vmatpush2.bf16.msra.mxu0 0
    %2057 = vmatprep.subr.bf16.mxu0 0
    %2058 = vmatpush2.bf16.msra.mxu0 0
    %2059 = vmatprep.subr.bf16.mxu0 0
    %2060 = vmatpush2.bf16.msra.mxu0 0
    %2061 = vmatprep.subr.bf16.mxu0 0
    %2062 = vmatpush2.bf16.msra.mxu0 0
    %2063 = vmatprep.subr.bf16.mxu0 0
    %2064 = vmatpush2.bf16.msra.mxu0 0
    %2065 = vmatprep.subr.bf16.mxu0 0
    %2066 = vmatpush2.bf16.msra.mxu0 0
    %2067 = vmatprep.mubr.bf16.mxu0 0
    %2068 = vmatmul.mubr.bf16.gmra.mxu0 %v2034
    %v2069 = vpop.f32.mrf.mxu0
    %v2070 = vadd.f32 %v936, %v2069
    %v2071 = vpop.f32.mrf.mxu0
    %v2072 = vadd.f32 %v940, %v2071
    %v2073 = vpop.f32.mrf.mxu0
    %v2074 = vadd.f32 %v936, %v2073
    %v2075 = vpop.f32.mrf.mxu0
    %v2076 = vadd.f32 %v940, %v2075
    %2077 = vdwg.mxu0
    %2078 = vmatprep.subr.bf16.mxu0 %v1080
    %2079 = vmatpush1.bf16.msra.mxu0 %v1079
    %2080 = vmatprep.subr.bf16.mxu0 %v1076
    %2081 = vmatpush1.bf16.msra.mxu0 %v1075
    %2082 = vmatprep.subr.bf16.mxu0 %v1072
    %2083 = vmatpush1.bf16.msra.mxu0 %v1071
    %2084 = vmatprep.subr.bf16.mxu0 %v1068
    %2085 = vmatpush1.bf16.msra.mxu0 %v1067
    %2086 = vmatprep.subr.bf16.mxu0 %v1064
    %2087 = vmatpush1.bf16.msra.mxu0 %v1063
    %2088 = vmatprep.subr.bf16.mxu0 %v1060
    %2089 = vmatpush1.bf16.msra.mxu0 %v1059
    %2090 = vmatprep.subr.bf16.mxu0 %v1056
    %2091 = vmatpush1.bf16.msra.mxu0 %v1055
    %2092 = vmatprep.subr.bf16.mxu0 %v1052
    %2093 = vmatpush1.bf16.msra.mxu0 %v1051
    %2094 = vmatprep.subr.bf16.mxu0 0
    %2095 = vmatpush2.bf16.msra.mxu0 0
    %2096 = vmatprep.subr.bf16.mxu0 0
    %2097 = vmatpush2.bf16.msra.mxu0 0
    %2098 = vmatprep.subr.bf16.mxu0 0
    %2099 = vmatpush2.bf16.msra.mxu0 0
    %2100 = vmatprep.subr.bf16.mxu0 0
    %2101 = vmatpush2.bf16.msra.mxu0 0
    %2102 = vmatprep.subr.bf16.mxu0 0
    %2103 = vmatpush2.bf16.msra.mxu0 0
    %2104 = vmatprep.subr.bf16.mxu0 0
    %2105 = vmatpush2.bf16.msra.mxu0 0
    %2106 = vmatprep.subr.bf16.mxu0 0
    %2107 = vmatpush2.bf16.msra.mxu0 0
    %2108 = vmatprep.subr.bf16.mxu0 0
    %2109 = vmatpush2.bf16.msra.mxu0 0
    %2110 = vmatprep.mubr.bf16.mxu0 0
    %2111 = vmatmul.mubr.bf16.gmra.mxu0 %v2034
    %v2112 = vpop.f32.mrf.mxu0
    %v2113 = vadd.f32 %v944, %v2112
    %v2114 = vpop.f32.mrf.mxu0
    %v2115 = vadd.f32 %v948, %v2114
    %v2116 = vpop.f32.mrf.mxu0
    %v2117 = vadd.f32 %v944, %v2116
    %v2118 = vpop.f32.mrf.mxu0
    %v2119 = vadd.f32 %v948, %v2118
    %2120 = vdwg.mxu0
    %2121 = vmatprep.subr.bf16.mxu0 %v1324
    %2122 = vmatpush1.bf16.msra.mxu0 %v1323
    %2123 = vmatprep.subr.bf16.mxu0 %v1320
    %2124 = vmatpush1.bf16.msra.mxu0 %v1319
    %2125 = vmatprep.subr.bf16.mxu0 %v1316
    %2126 = vmatpush1.bf16.msra.mxu0 %v1315
    %2127 = vmatprep.subr.bf16.mxu0 %v1312
    %2128 = vmatpush1.bf16.msra.mxu0 %v1311
    %2129 = vmatprep.subr.bf16.mxu0 %v1308
    %2130 = vmatpush1.bf16.msra.mxu0 %v1307
    %2131 = vmatprep.subr.bf16.mxu0 %v1304
    %2132 = vmatpush1.bf16.msra.mxu0 %v1303
    %2133 = vmatprep.subr.bf16.mxu0 %v1300
    %2134 = vmatpush1.bf16.msra.mxu0 %v1299
    %2135 = vmatprep.subr.bf16.mxu0 %v1296
    %2136 = vmatpush1.bf16.msra.mxu0 %v1295
    %2137 = vmatprep.subr.bf16.mxu0 0
    %2138 = vmatpush2.bf16.msra.mxu0 0
    %2139 = vmatprep.subr.bf16.mxu0 0
    %2140 = vmatpush2.bf16.msra.mxu0 0
    %2141 = vmatprep.subr.bf16.mxu0 0
    %2142 = vmatpush2.bf16.msra.mxu0 0
    %2143 = vmatprep.subr.bf16.mxu0 0
    %2144 = vmatpush2.bf16.msra.mxu0 0
    %2145 = vmatprep.subr.bf16.mxu0 0
    %2146 = vmatpush2.bf16.msra.mxu0 0
    %2147 = vmatprep.subr.bf16.mxu0 0
    %2148 = vmatpush2.bf16.msra.mxu0 0
    %2149 = vmatprep.subr.bf16.mxu0 0
    %2150 = vmatpush2.bf16.msra.mxu0 0
    %2151 = vmatprep.subr.bf16.mxu0 0
    %2152 = vmatpush2.bf16.msra.mxu0 0
    %2153 = vmatprep.mubr.bf16.mxu0 0
    %2154 = vmatmul.mubr.bf16.gmra.mxu0 %v1882
    %v2155 = vpop.f32.mrf.mxu0
    %v2156 = vadd.f32 0.0, %v2155
    %v2157 = vpop.f32.mrf.mxu0
    %v2158 = vadd.f32 0.0, %v2157
    %v2159 = vpop.f32.mrf.mxu0
    %v2160 = vadd.f32 0.0, %v2159
    %v2161 = vpop.f32.mrf.mxu0
    %v2162 = vadd.f32 0.0, %v2161
    %2163 = vdwg.mxu0
    %2164 = vmatprep.subr.bf16.mxu0 %v1326
    %2165 = vmatpush1.bf16.msra.mxu0 %v1325
    %2166 = vmatprep.subr.bf16.mxu0 %v1322
    %2167 = vmatpush1.bf16.msra.mxu0 %v1321
    %2168 = vmatprep.subr.bf16.mxu0 %v1318
    %2169 = vmatpush1.bf16.msra.mxu0 %v1317
    %2170 = vmatprep.subr.bf16.mxu0 %v1314
    %2171 = vmatpush1.bf16.msra.mxu0 %v1313
    %2172 = vmatprep.subr.bf16.mxu0 %v1310
    %2173 = vmatpush1.bf16.msra.mxu0 %v1309
    %2174 = vmatprep.subr.bf16.mxu0 %v1306
    %2175 = vmatpush1.bf16.msra.mxu0 %v1305
    %2176 = vmatprep.subr.bf16.mxu0 %v1302
    %2177 = vmatpush1.bf16.msra.mxu0 %v1301
    %2178 = vmatprep.subr.bf16.mxu0 %v1298
    %2179 = vmatpush1.bf16.msra.mxu0 %v1297
    %2180 = vmatprep.subr.bf16.mxu0 0
    %2181 = vmatpush2.bf16.msra.mxu0 0
    %2182 = vmatprep.subr.bf16.mxu0 0
    %2183 = vmatpush2.bf16.msra.mxu0 0
    %2184 = vmatprep.subr.bf16.mxu0 0
    %2185 = vmatpush2.bf16.msra.mxu0 0
    %2186 = vmatprep.subr.bf16.mxu0 0
    %2187 = vmatpush2.bf16.msra.mxu0 0
    %2188 = vmatprep.subr.bf16.mxu0 0
    %2189 = vmatpush2.bf16.msra.mxu0 0
    %2190 = vmatprep.subr.bf16.mxu0 0
    %2191 = vmatpush2.bf16.msra.mxu0 0
    %2192 = vmatprep.subr.bf16.mxu0 0
    %2193 = vmatpush2.bf16.msra.mxu0 0
    %2194 = vmatprep.subr.bf16.mxu0 0
    %2195 = vmatpush2.bf16.msra.mxu0 0
    %2196 = vmatprep.mubr.bf16.mxu0 0
    %2197 = vmatmul.mubr.bf16.gmra.mxu0 %v1882
    %v2198 = vpop.f32.mrf.mxu0
    %v2199 = vadd.f32 0.0, %v2198
    %v2200 = vpop.f32.mrf.mxu0
    %v2201 = vadd.f32 0.0, %v2200
    %v2202 = vpop.f32.mrf.mxu0
    %v2203 = vadd.f32 0.0, %v2202
    %v2204 = vpop.f32.mrf.mxu0
    %v2205 = vadd.f32 0.0, %v2204
    %2206 = vdwg.mxu0
    %v2207 = vadd.f32 %v2070, %v2156
    %v2208 = vadd.f32 %v2072, %v2158
    %v2209 = vadd.f32 %v2113, %v2199
    %v2210 = vadd.f32 %v2115, %v2201
    %v2211 = vadd.f32 %v2074, %v2160
    %v2212 = vadd.f32 %v2076, %v2162
    %v2213 = vadd.f32 %v2117, %v2203
    %v2214 = vadd.f32 %v2119, %v2205
    %v2215 = vxor.u32 %v2207, 2147483648
    %v2216 = vxor.u32 %v2211, 2147483648
    %v2217 = vmul.f32 %v2215, 1.442695
    %v2218 = vpow.pop %v2217
    %v2219 = vmul.f32 %v2216, 1.442695
    %v2220 = vpow.pop %v2219
    %v2221 = vadd.f32 %v2218, 1.0
    %v2222 = vadd.f32 %v2220, 1.0
    %v2223 = vrcp.pop %v2221
    %v2224 = vmul.f32 1.0, %v2223
    %v2225 = vrcp.pop %v2222
    %v2226 = vmul.f32 1.0, %v2225
    %v2227 = vxor.u32 %v2208, 2147483648
    %v2228 = vxor.u32 %v2212, 2147483648
    %v2229 = vmul.f32 %v2227, 1.442695
    %v2230 = vpow.pop %v2229
    %v2231 = vmul.f32 %v2228, 1.442695
    %v2232 = vpow.pop %v2231
    %v2233 = vadd.f32 %v2230, 1.0
    %v2234 = vadd.f32 %v2232, 1.0
    %v2235 = vrcp.pop %v2233
    %v2236 = vmul.f32 1.0, %v2235
    %v2237 = vrcp.pop %v2234
    %v2238 = vmul.f32 1.0, %v2237
    %v2239 = vtanh.pop %v2209
    %v2240 = vtanh.pop %v2213
    %v2241 = vxor.u32 %v2210, 2147483648
    %v2242 = vxor.u32 %v2214, 2147483648
    %v2243 = vmul.f32 %v2241, 1.442695
    %v2244 = vpow.pop %v2243
    %v2245 = vmul.f32 %v2242, 1.442695
    %v2246 = vpow.pop %v2245
    %v2247 = vadd.f32 %v2244, 1.0
    %v2248 = vadd.f32 %v2246, 1.0
    %v2249 = vrcp.pop %v2247
    %v2250 = vmul.f32 1.0, %v2249
    %v2251 = vrcp.pop %v2248
    %v2252 = vmul.f32 1.0, %v2251
    %v2253 = vmul.f32 %v2236, %v1876
    %v2254 = vmul.f32 %v2238, %v1877
    %v2255 = vmul.f32 %v2224, %v2239
    %v2256 = vmul.f32 %v2226, %v2240
    %v2257 = vadd.f32 %v2253, %v2255
    %v2258 = vadd.f32 %v2254, %v2256
    %v2259 = vtanh.pop %v2257
    %v2260 = vtanh.pop %v2258
    %v2261 = vmul.f32 %v2250, %v2259
    %v2262 = vmul.f32 %v2252, %v2260
    %v2263 = vpack.c.bf16 %v2262, %v2261
    %v2265 = vunpack.c.l.b16 %v2263
    %v2266 = vunpack.c.h.b16 %v2263
    %v2267 = vpack.c.b16 %v2265, %v2265
    %v2268 = vpack.c.b16 %v2266, %v2266
    %2271 = vst [vmem:[#allocation2 + $0x8] sm:$0xf] %v2267
    %2272 = vst [vmem:[#allocation2 + $0x28] sm:$0xf] %v2268
    %2273 = vmatprep.subr.bf16.mxu0 %v754
    %2274 = vmatpush1.bf16.msra.mxu0 %v753
    %2275 = vmatprep.subr.bf16.mxu0 %v750
    %2276 = vmatpush1.bf16.msra.mxu0 %v749
    %2277 = vmatprep.subr.bf16.mxu0 %v746
    %2278 = vmatpush1.bf16.msra.mxu0 %v745
    %2279 = vmatprep.subr.bf16.mxu0 %v742
    %2280 = vmatpush1.bf16.msra.mxu0 %v741
    %2281 = vmatprep.subr.bf16.mxu0 %v738
    %2282 = vmatpush1.bf16.msra.mxu0 %v737
    %2283 = vmatprep.subr.bf16.mxu0 %v734
    %2284 = vmatpush1.bf16.msra.mxu0 %v733
    %2285 = vmatprep.subr.bf16.mxu0 %v730
    %2286 = vmatpush1.bf16.msra.mxu0 %v729
    %2287 = vmatprep.subr.bf16.mxu0 %v726
    %2288 = vmatpush1.bf16.msra.mxu0 %v725
    %2289 = vmatprep.subr.bf16.mxu0 0
    %2290 = vmatpush2.bf16.msra.mxu0 0
    %2291 = vmatprep.subr.bf16.mxu0 0
    %2292 = vmatpush2.bf16.msra.mxu0 0
    %2293 = vmatprep.subr.bf16.mxu0 0
    %2294 = vmatpush2.bf16.msra.mxu0 0
    %2295 = vmatprep.subr.bf16.mxu0 0
    %2296 = vmatpush2.bf16.msra.mxu0 0
    %2297 = vmatprep.subr.bf16.mxu0 0
    %2298 = vmatpush2.bf16.msra.mxu0 0
    %2299 = vmatprep.subr.bf16.mxu0 0
    %2300 = vmatpush2.bf16.msra.mxu0 0
    %2301 = vmatprep.subr.bf16.mxu0 0
    %2302 = vmatpush2.bf16.msra.mxu0 0
    %2303 = vmatprep.subr.bf16.mxu0 0
    %2304 = vmatpush2.bf16.msra.mxu0 0
    %2305 = vmatprep.mubr.bf16.mxu0 0
    %2306 = vmatmul.mubr.bf16.gmra.mxu0 %v2034
    %v2307 = vpop.f32.mrf.mxu0
    %v2308 = vadd.f32 0.0, %v2307
    %v2309 = vpop.f32.mrf.mxu0
    %v2310 = vadd.f32 0.0, %v2309
    %v2311 = vpop.f32.mrf.mxu0
    %v2312 = vadd.f32 0.0, %v2311
    %v2313 = vpop.f32.mrf.mxu0
    %v2314 = vadd.f32 0.0, %v2313
    %2315 = vdwg.mxu0
    %2316 = vmatprep.subr.bf16.mxu0 %v756
    %2317 = vmatpush1.bf16.msra.mxu0 %v755
    %2318 = vmatprep.subr.bf16.mxu0 %v752
    %2319 = vmatpush1.bf16.msra.mxu0 %v751
    %2320 = vmatprep.subr.bf16.mxu0 %v748
    %2321 = vmatpush1.bf16.msra.mxu0 %v747
    %2322 = vmatprep.subr.bf16.mxu0 %v744
    %2323 = vmatpush1.bf16.msra.mxu0 %v743
    %2324 = vmatprep.subr.bf16.mxu0 %v740
    %2325 = vmatpush1.bf16.msra.mxu0 %v739
    %2326 = vmatprep.subr.bf16.mxu0 %v736
    %2327 = vmatpush1.bf16.msra.mxu0 %v735
    %2328 = vmatprep.subr.bf16.mxu0 %v732
    %2329 = vmatpush1.bf16.msra.mxu0 %v731
    %2330 = vmatprep.subr.bf16.mxu0 %v728
    %2331 = vmatpush1.bf16.msra.mxu0 %v727
    %2332 = vmatprep.subr.bf16.mxu0 0
    %2333 = vmatpush2.bf16.msra.mxu0 0
    %2334 = vmatprep.subr.bf16.mxu0 0
    %2335 = vmatpush2.bf16.msra.mxu0 0
    %2336 = vmatprep.subr.bf16.mxu0 0
    %2337 = vmatpush2.bf16.msra.mxu0 0
    %2338 = vmatprep.subr.bf16.mxu0 0
    %2339 = vmatpush2.bf16.msra.mxu0 0
    %2340 = vmatprep.subr.bf16.mxu0 0
    %2341 = vmatpush2.bf16.msra.mxu0 0
    %2342 = vmatprep.subr.bf16.mxu0 0
    %2343 = vmatpush2.bf16.msra.mxu0 0
    %2344 = vmatprep.subr.bf16.mxu0 0
    %2345 = vmatpush2.bf16.msra.mxu0 0
    %2346 = vmatprep.subr.bf16.mxu0 0
    %2347 = vmatpush2.bf16.msra.mxu0 0
    %2348 = vmatprep.mubr.bf16.mxu0 0
    %2349 = vmatmul.mubr.bf16.gmra.mxu0 %v2034
    %v2350 = vpop.f32.mrf.mxu0
    %v2351 = vadd.f32 0.0, %v2350
    %v2352 = vpop.f32.mrf.mxu0
    %v2353 = vadd.f32 0.0, %v2352
    %v2354 = vpop.f32.mrf.mxu0
    %v2355 = vadd.f32 0.0, %v2354
    %v2356 = vpop.f32.mrf.mxu0
    %v2357 = vadd.f32 0.0, %v2356
    %2358 = vdwg.mxu0
    %v2359 = vadd.f32 %v468, %v2308
    %v2360 = vadd.f32 %v470, %v2310
    %v2361 = vadd.f32 %v581, %v2351
    %v2362 = vadd.f32 %v583, %v2353
    %v2363 = vadd.f32 %v472, %v2312
    %v2364 = vadd.f32 %v474, %v2314
    %v2365 = vadd.f32 %v585, %v2355
    %v2366 = vadd.f32 %v587, %v2357
    %v2367 = vxor.u32 %v2359, 2147483648
    %v2368 = vxor.u32 %v2363, 2147483648
    %v2369 = vmul.f32 %v2367, 1.442695
    %v2370 = vpow.pop %v2369
    %v2371 = vmul.f32 %v2368, 1.442695
    %v2372 = vpow.pop %v2371
    %v2373 = vadd.f32 %v2370, 1.0
    %v2374 = vadd.f32 %v2372, 1.0
    %v2375 = vrcp.pop %v2373
    %v2376 = vmul.f32 1.0, %v2375
    %v2377 = vrcp.pop %v2374
    %v2378 = vmul.f32 1.0, %v2377
    %v2379 = vxor.u32 %v2360, 2147483648
    %v2380 = vxor.u32 %v2364, 2147483648
    %v2381 = vmul.f32 %v2379, 1.442695
    %v2382 = vpow.pop %v2381
    %v2383 = vmul.f32 %v2380, 1.442695
    %v2384 = vpow.pop %v2383
    %v2385 = vadd.f32 %v2382, 1.0
    %v2386 = vadd.f32 %v2384, 1.0
    %v2387 = vrcp.pop %v2385
    %v2388 = vmul.f32 1.0, %v2387
    %v2389 = vrcp.pop %v2386
    %v2390 = vmul.f32 1.0, %v2389
    %v2391 = vtanh.pop %v2361
    %v2392 = vtanh.pop %v2365
    %v2393 = vxor.u32 %v2362, 2147483648
    %v2394 = vxor.u32 %v2366, 2147483648
    %v2395 = vmul.f32 %v2393, 1.442695
    %v2396 = vpow.pop %v2395
    %v2397 = vmul.f32 %v2394, 1.442695
    %v2398 = vpow.pop %v2397
    %v2399 = vadd.f32 %v2396, 1.0
    %v2400 = vadd.f32 %v2398, 1.0
    %v2401 = vrcp.pop %v2399
    %v2402 = vmul.f32 1.0, %v2401
    %v2403 = vrcp.pop %v2400
    %v2404 = vmul.f32 1.0, %v2403
    %v2405 = vmul.f32 %v2388, %v2028
    %v2406 = vmul.f32 %v2390, %v2029
    %v2407 = vmul.f32 %v2376, %v2391
    %v2408 = vmul.f32 %v2378, %v2392
    %v2409 = vadd.f32 %v2405, %v2407
    %v2410 = vadd.f32 %v2406, %v2408
    %v2411 = vtanh.pop %v2409
    %v2412 = vtanh.pop %v2410
    %v2413 = vmul.f32 %v2402, %v2411
    %v2414 = vmul.f32 %v2404, %v2412
    %v2415 = vpack.c.bf16 %v2414, %v2413
    %2416 = vmatprep.subr.bf16.mxu0 %v1078
    %2417 = vmatpush1.bf16.msra.mxu0 %v1077
    %2418 = vmatprep.subr.bf16.mxu0 %v1074
    %2419 = vmatpush1.bf16.msra.mxu0 %v1073
    %2420 = vmatprep.subr.bf16.mxu0 %v1070
    %2421 = vmatpush1.bf16.msra.mxu0 %v1069
    %2422 = vmatprep.subr.bf16.mxu0 %v1066
    %2423 = vmatpush1.bf16.msra.mxu0 %v1065
    %2424 = vmatprep.subr.bf16.mxu0 %v1062
    %2425 = vmatpush1.bf16.msra.mxu0 %v1061
    %2426 = vmatprep.subr.bf16.mxu0 %v1058
    %2427 = vmatpush1.bf16.msra.mxu0 %v1057
    %2428 = vmatprep.subr.bf16.mxu0 %v1054
    %2429 = vmatpush1.bf16.msra.mxu0 %v1053
    %2430 = vmatprep.subr.bf16.mxu0 %v1050
    %2431 = vmatpush1.bf16.msra.mxu0 %v1049
    %2432 = vmatprep.subr.bf16.mxu0 0
    %2433 = vmatpush2.bf16.msra.mxu0 0
    %2434 = vmatprep.subr.bf16.mxu0 0
    %2435 = vmatpush2.bf16.msra.mxu0 0
    %2436 = vmatprep.subr.bf16.mxu0 0
    %2437 = vmatpush2.bf16.msra.mxu0 0
    %2438 = vmatprep.subr.bf16.mxu0 0
    %2439 = vmatpush2.bf16.msra.mxu0 0
    %2440 = vmatprep.subr.bf16.mxu0 0
    %2441 = vmatpush2.bf16.msra.mxu0 0
    %2442 = vmatprep.subr.bf16.mxu0 0
    %2443 = vmatpush2.bf16.msra.mxu0 0
    %2444 = vmatprep.subr.bf16.mxu0 0
    %2445 = vmatpush2.bf16.msra.mxu0 0
    %2446 = vmatprep.subr.bf16.mxu0 0
    %2447 = vmatpush2.bf16.msra.mxu0 0
    %2448 = vmatprep.mubr.bf16.mxu0 0
    %2449 = vmatmul.mubr.bf16.gmra.mxu0 %v2415
    %v2450 = vpop.f32.mrf.mxu0
    %v2451 = vadd.f32 %v936, %v2450
    %v2452 = vpop.f32.mrf.mxu0
    %v2453 = vadd.f32 %v940, %v2452
    %v2454 = vpop.f32.mrf.mxu0
    %v2455 = vadd.f32 %v936, %v2454
    %v2456 = vpop.f32.mrf.mxu0
    %v2457 = vadd.f32 %v940, %v2456
    %2458 = vdwg.mxu0
    %2459 = vmatprep.subr.bf16.mxu0 %v1080
    %2460 = vmatpush1.bf16.msra.mxu0 %v1079
    %2461 = vmatprep.subr.bf16.mxu0 %v1076
    %2462 = vmatpush1.bf16.msra.mxu0 %v1075
    %2463 = vmatprep.subr.bf16.mxu0 %v1072
    %2464 = vmatpush1.bf16.msra.mxu0 %v1071
    %2465 = vmatprep.subr.bf16.mxu0 %v1068
    %2466 = vmatpush1.bf16.msra.mxu0 %v1067
    %2467 = vmatprep.subr.bf16.mxu0 %v1064
    %2468 = vmatpush1.bf16.msra.mxu0 %v1063
    %2469 = vmatprep.subr.bf16.mxu0 %v1060
    %2470 = vmatpush1.bf16.msra.mxu0 %v1059
    %2471 = vmatprep.subr.bf16.mxu0 %v1056
    %2472 = vmatpush1.bf16.msra.mxu0 %v1055
    %2473 = vmatprep.subr.bf16.mxu0 %v1052
    %2474 = vmatpush1.bf16.msra.mxu0 %v1051
    %2475 = vmatprep.subr.bf16.mxu0 0
    %2476 = vmatpush2.bf16.msra.mxu0 0
    %2477 = vmatprep.subr.bf16.mxu0 0
    %2478 = vmatpush2.bf16.msra.mxu0 0
    %2479 = vmatprep.subr.bf16.mxu0 0
    %2480 = vmatpush2.bf16.msra.mxu0 0
    %2481 = vmatprep.subr.bf16.mxu0 0
    %2482 = vmatpush2.bf16.msra.mxu0 0
    %2483 = vmatprep.subr.bf16.mxu0 0
    %2484 = vmatpush2.bf16.msra.mxu0 0
    %2485 = vmatprep.subr.bf16.mxu0 0
    %2486 = vmatpush2.bf16.msra.mxu0 0
    %2487 = vmatprep.subr.bf16.mxu0 0
    %2488 = vmatpush2.bf16.msra.mxu0 0
    %2489 = vmatprep.subr.bf16.mxu0 0
    %2490 = vmatpush2.bf16.msra.mxu0 0
    %2491 = vmatprep.mubr.bf16.mxu0 0
    %2492 = vmatmul.mubr.bf16.gmra.mxu0 %v2415
    %v2493 = vpop.f32.mrf.mxu0
    %v2494 = vadd.f32 %v944, %v2493
    %v2495 = vpop.f32.mrf.mxu0
    %v2496 = vadd.f32 %v948, %v2495
    %v2497 = vpop.f32.mrf.mxu0
    %v2498 = vadd.f32 %v944, %v2497
    %v2499 = vpop.f32.mrf.mxu0
    %v2500 = vadd.f32 %v948, %v2499
    %2501 = vdwg.mxu0
    %2502 = vmatprep.subr.bf16.mxu0 %v1324
    %2503 = vmatpush1.bf16.msra.mxu0 %v1323
    %2504 = vmatprep.subr.bf16.mxu0 %v1320
    %2505 = vmatpush1.bf16.msra.mxu0 %v1319
    %2506 = vmatprep.subr.bf16.mxu0 %v1316
    %2507 = vmatpush1.bf16.msra.mxu0 %v1315
    %2508 = vmatprep.subr.bf16.mxu0 %v1312
    %2509 = vmatpush1.bf16.msra.mxu0 %v1311
    %2510 = vmatprep.subr.bf16.mxu0 %v1308
    %2511 = vmatpush1.bf16.msra.mxu0 %v1307
    %2512 = vmatprep.subr.bf16.mxu0 %v1304
    %2513 = vmatpush1.bf16.msra.mxu0 %v1303
    %2514 = vmatprep.subr.bf16.mxu0 %v1300
    %2515 = vmatpush1.bf16.msra.mxu0 %v1299
    %2516 = vmatprep.subr.bf16.mxu0 %v1296
    %2517 = vmatpush1.bf16.msra.mxu0 %v1295
    %2518 = vmatprep.subr.bf16.mxu0 0
    %2519 = vmatpush2.bf16.msra.mxu0 0
    %2520 = vmatprep.subr.bf16.mxu0 0
    %2521 = vmatpush2.bf16.msra.mxu0 0
    %2522 = vmatprep.subr.bf16.mxu0 0
    %2523 = vmatpush2.bf16.msra.mxu0 0
    %2524 = vmatprep.subr.bf16.mxu0 0
    %2525 = vmatpush2.bf16.msra.mxu0 0
    %2526 = vmatprep.subr.bf16.mxu0 0
    %2527 = vmatpush2.bf16.msra.mxu0 0
    %2528 = vmatprep.subr.bf16.mxu0 0
    %2529 = vmatpush2.bf16.msra.mxu0 0
    %2530 = vmatprep.subr.bf16.mxu0 0
    %2531 = vmatpush2.bf16.msra.mxu0 0
    %2532 = vmatprep.subr.bf16.mxu0 0
    %2533 = vmatpush2.bf16.msra.mxu0 0
    %2534 = vmatprep.mubr.bf16.mxu0 0
    %2535 = vmatmul.mubr.bf16.gmra.mxu0 %v2263
    %v2536 = vpop.f32.mrf.mxu0
    %v2537 = vadd.f32 0.0, %v2536
    %v2538 = vpop.f32.mrf.mxu0
    %v2539 = vadd.f32 0.0, %v2538
    %v2540 = vpop.f32.mrf.mxu0
    %v2541 = vadd.f32 0.0, %v2540
    %v2542 = vpop.f32.mrf.mxu0
    %v2543 = vadd.f32 0.0, %v2542
    %2544 = vdwg.mxu0
    %2545 = vmatprep.subr.bf16.mxu0 %v1326
    %2546 = vmatpush1.bf16.msra.mxu0 %v1325
    %2547 = vmatprep.subr.bf16.mxu0 %v1322
    %2548 = vmatpush1.bf16.msra.mxu0 %v1321
    %2549 = vmatprep.subr.bf16.mxu0 %v1318
    %2550 = vmatpush1.bf16.msra.mxu0 %v1317
    %2551 = vmatprep.subr.bf16.mxu0 %v1314
    %2552 = vmatpush1.bf16.msra.mxu0 %v1313
    %2553 = vmatprep.subr.bf16.mxu0 %v1310
    %2554 = vmatpush1.bf16.msra.mxu0 %v1309
    %2555 = vmatprep.subr.bf16.mxu0 %v1306
    %2556 = vmatpush1.bf16.msra.mxu0 %v1305
    %2557 = vmatprep.subr.bf16.mxu0 %v1302
    %2558 = vmatpush1.bf16.msra.mxu0 %v1301
    %2559 = vmatprep.subr.bf16.mxu0 %v1298
    %2560 = vmatpush1.bf16.msra.mxu0 %v1297
    %2561 = vmatprep.subr.bf16.mxu0 0
    %2562 = vmatpush2.bf16.msra.mxu0 0
    %2563 = vmatprep.subr.bf16.mxu0 0
    %2564 = vmatpush2.bf16.msra.mxu0 0
    %2565 = vmatprep.subr.bf16.mxu0 0
    %2566 = vmatpush2.bf16.msra.mxu0 0
    %2567 = vmatprep.subr.bf16.mxu0 0
    %2568 = vmatpush2.bf16.msra.mxu0 0
    %2569 = vmatprep.subr.bf16.mxu0 0
    %2570 = vmatpush2.bf16.msra.mxu0 0
    %2571 = vmatprep.subr.bf16.mxu0 0
    %2572 = vmatpush2.bf16.msra.mxu0 0
    %2573 = vmatprep.subr.bf16.mxu0 0
    %2574 = vmatpush2.bf16.msra.mxu0 0
    %2575 = vmatprep.subr.bf16.mxu0 0
    %2576 = vmatpush2.bf16.msra.mxu0 0
    %2577 = vmatprep.mubr.bf16.mxu0 0
    %2578 = vmatmul.mubr.bf16.gmra.mxu0 %v2263
    %v2579 = vpop.f32.mrf.mxu0
    %v2580 = vadd.f32 0.0, %v2579
    %v2581 = vpop.f32.mrf.mxu0
    %v2582 = vadd.f32 0.0, %v2581
    %v2583 = vpop.f32.mrf.mxu0
    %v2584 = vadd.f32 0.0, %v2583
    %v2585 = vpop.f32.mrf.mxu0
    %v2586 = vadd.f32 0.0, %v2585
    %2587 = vdwg.mxu0
    %v2588 = vadd.f32 %v2451, %v2537
    %v2589 = vadd.f32 %v2453, %v2539
    %v2590 = vadd.f32 %v2494, %v2580
    %v2591 = vadd.f32 %v2496, %v2582
    %v2592 = vadd.f32 %v2455, %v2541
    %v2593 = vadd.f32 %v2457, %v2543
    %v2594 = vadd.f32 %v2498, %v2584
    %v2595 = vadd.f32 %v2500, %v2586
    %v2596 = vxor.u32 %v2588, 2147483648
    %v2597 = vxor.u32 %v2592, 2147483648
    %v2598 = vmul.f32 %v2596, 1.442695
    %v2599 = vpow.pop %v2598
    %v2600 = vmul.f32 %v2597, 1.442695
    %v2601 = vpow.pop %v2600
    %v2602 = vadd.f32 %v2599, 1.0
    %v2603 = vadd.f32 %v2601, 1.0
    %v2604 = vrcp.pop %v2602
    %v2605 = vmul.f32 1.0, %v2604
    %v2606 = vrcp.pop %v2603
    %v2607 = vmul.f32 1.0, %v2606
    %v2608 = vxor.u32 %v2589, 2147483648
    %v2609 = vxor.u32 %v2593, 2147483648
    %v2610 = vmul.f32 %v2608, 1.442695
    %v2611 = vpow.pop %v2610
    %v2612 = vmul.f32 %v2609, 1.442695
    %v2613 = vpow.pop %v2612
    %v2614 = vadd.f32 %v2611, 1.0
    %v2615 = vadd.f32 %v2613, 1.0
    %v2616 = vrcp.pop %v2614
    %v2617 = vmul.f32 1.0, %v2616
    %v2618 = vrcp.pop %v2615
    %v2619 = vmul.f32 1.0, %v2618
    %v2620 = vtanh.pop %v2590
    %v2621 = vtanh.pop %v2594
    %v2622 = vxor.u32 %v2591, 2147483648
    %v2623 = vxor.u32 %v2595, 2147483648
    %v2624 = vmul.f32 %v2622, 1.442695
    %v2625 = vpow.pop %v2624
    %v2626 = vmul.f32 %v2623, 1.442695
    %v2627 = vpow.pop %v2626
    %v2628 = vadd.f32 %v2625, 1.0
    %v2629 = vadd.f32 %v2627, 1.0
    %v2630 = vrcp.pop %v2628
    %v2631 = vmul.f32 1.0, %v2630
    %v2632 = vrcp.pop %v2629
    %v2633 = vmul.f32 1.0, %v2632
    %v2634 = vmul.f32 %v2617, %v2257
    %v2635 = vmul.f32 %v2619, %v2258
    %v2636 = vmul.f32 %v2605, %v2620
    %v2637 = vmul.f32 %v2607, %v2621
    %v2638 = vadd.f32 %v2634, %v2636
    %v2639 = vadd.f32 %v2635, %v2637
    %v2640 = vtanh.pop %v2638
    %v2641 = vtanh.pop %v2639
    %v2642 = vmul.f32 %v2631, %v2640
    %v2643 = vmul.f32 %v2633, %v2641
    %v2644 = vpack.c.bf16 %v2643, %v2642
    %v2646 = vunpack.c.l.b16 %v2644
    %v2647 = vunpack.c.h.b16 %v2644
    %v2648 = vpack.c.b16 %v2646, %v2646
    %v2649 = vpack.c.b16 %v2647, %v2647
    %2652 = vst [vmem:[#allocation2 + $0xc] sm:$0xf] %v2648
    %2653 = vst [vmem:[#allocation2 + $0x2c] sm:$0xf] %v2649
    %2654 = vmatprep.subr.bf16.mxu0 %v754
    %2655 = vmatpush1.bf16.msra.mxu0 %v753
    %2656 = vmatprep.subr.bf16.mxu0 %v750
    %2657 = vmatpush1.bf16.msra.mxu0 %v749
    %2658 = vmatprep.subr.bf16.mxu0 %v746
    %2659 = vmatpush1.bf16.msra.mxu0 %v745
    %2660 = vmatprep.subr.bf16.mxu0 %v742
    %2661 = vmatpush1.bf16.msra.mxu0 %v741
    %2662 = vmatprep.subr.bf16.mxu0 %v738
    %2663 = vmatpush1.bf16.msra.mxu0 %v737
    %2664 = vmatprep.subr.bf16.mxu0 %v734
    %2665 = vmatpush1.bf16.msra.mxu0 %v733
    %2666 = vmatprep.subr.bf16.mxu0 %v730
    %2667 = vmatpush1.bf16.msra.mxu0 %v729
    %2668 = vmatprep.subr.bf16.mxu0 %v726
    %2669 = vmatpush1.bf16.msra.mxu0 %v725
    %2670 = vmatprep.subr.bf16.mxu0 0
    %2671 = vmatpush2.bf16.msra.mxu0 0
    %2672 = vmatprep.subr.bf16.mxu0 0
    %2673 = vmatpush2.bf16.msra.mxu0 0
    %2674 = vmatprep.subr.bf16.mxu0 0
    %2675 = vmatpush2.bf16.msra.mxu0 0
    %2676 = vmatprep.subr.bf16.mxu0 0
    %2677 = vmatpush2.bf16.msra.mxu0 0
    %2678 = vmatprep.subr.bf16.mxu0 0
    %2679 = vmatpush2.bf16.msra.mxu0 0
    %2680 = vmatprep.subr.bf16.mxu0 0
    %2681 = vmatpush2.bf16.msra.mxu0 0
    %2682 = vmatprep.subr.bf16.mxu0 0
    %2683 = vmatpush2.bf16.msra.mxu0 0
    %2684 = vmatprep.subr.bf16.mxu0 0
    %2685 = vmatpush2.bf16.msra.mxu0 0
    %2686 = vmatprep.mubr.bf16.mxu0 0
    %2687 = vmatmul.mubr.bf16.gmra.mxu0 %v2415
    %v2688 = vpop.f32.mrf.mxu0
    %v2689 = vadd.f32 0.0, %v2688
    %v2690 = vpop.f32.mrf.mxu0
    %v2691 = vadd.f32 0.0, %v2690
    %v2692 = vpop.f32.mrf.mxu0
    %v2693 = vadd.f32 0.0, %v2692
    %v2694 = vpop.f32.mrf.mxu0
    %v2695 = vadd.f32 0.0, %v2694
    %2696 = vdwg.mxu0
    %2697 = vmatprep.subr.bf16.mxu0 %v756
    %2698 = vmatpush1.bf16.msra.mxu0 %v755
    %2699 = vmatprep.subr.bf16.mxu0 %v752
    %2700 = vmatpush1.bf16.msra.mxu0 %v751
    %2701 = vmatprep.subr.bf16.mxu0 %v748
    %2702 = vmatpush1.bf16.msra.mxu0 %v747
    %2703 = vmatprep.subr.bf16.mxu0 %v744
    %2704 = vmatpush1.bf16.msra.mxu0 %v743
    %2705 = vmatprep.subr.bf16.mxu0 %v740
    %2706 = vmatpush1.bf16.msra.mxu0 %v739
    %2707 = vmatprep.subr.bf16.mxu0 %v736
    %2708 = vmatpush1.bf16.msra.mxu0 %v735
    %2709 = vmatprep.subr.bf16.mxu0 %v732
    %2710 = vmatpush1.bf16.msra.mxu0 %v731
    %2711 = vmatprep.subr.bf16.mxu0 %v728
    %2712 = vmatpush1.bf16.msra.mxu0 %v727
    %2713 = vmatprep.subr.bf16.mxu0 0
    %2714 = vmatpush2.bf16.msra.mxu0 0
    %2715 = vmatprep.subr.bf16.mxu0 0
    %2716 = vmatpush2.bf16.msra.mxu0 0
    %2717 = vmatprep.subr.bf16.mxu0 0
    %2718 = vmatpush2.bf16.msra.mxu0 0
    %2719 = vmatprep.subr.bf16.mxu0 0
    %2720 = vmatpush2.bf16.msra.mxu0 0
    %2721 = vmatprep.subr.bf16.mxu0 0
    %2722 = vmatpush2.bf16.msra.mxu0 0
    %2723 = vmatprep.subr.bf16.mxu0 0
    %2724 = vmatpush2.bf16.msra.mxu0 0
    %2725 = vmatprep.subr.bf16.mxu0 0
    %2726 = vmatpush2.bf16.msra.mxu0 0
    %2727 = vmatprep.subr.bf16.mxu0 0
    %2728 = vmatpush2.bf16.msra.mxu0 0
    %2729 = vmatprep.mubr.bf16.mxu0 0
    %2730 = vmatmul.mubr.bf16.gmra.mxu0 %v2415
    %v2731 = vpop.f32.mrf.mxu0
    %v2732 = vadd.f32 0.0, %v2731
    %v2733 = vpop.f32.mrf.mxu0
    %v2734 = vadd.f32 0.0, %v2733
    %v2735 = vpop.f32.mrf.mxu0
    %v2736 = vadd.f32 0.0, %v2735
    %v2737 = vpop.f32.mrf.mxu0
    %v2738 = vadd.f32 0.0, %v2737
    %2739 = vdwg.mxu0
    %v2740 = vadd.f32 %v478, %v2689
    %v2741 = vadd.f32 %v480, %v2691
    %v2742 = vadd.f32 %v591, %v2732
    %v2743 = vadd.f32 %v593, %v2734
    %v2744 = vadd.f32 %v482, %v2693
    %v2745 = vadd.f32 %v484, %v2695
    %v2746 = vadd.f32 %v595, %v2736
    %v2747 = vadd.f32 %v597, %v2738
    %v2748 = vxor.u32 %v2740, 2147483648
    %v2749 = vxor.u32 %v2744, 2147483648
    %v2750 = vmul.f32 %v2748, 1.442695
    %v2751 = vpow.pop %v2750
    %v2752 = vmul.f32 %v2749, 1.442695
    %v2753 = vpow.pop %v2752
    %v2754 = vadd.f32 %v2751, 1.0
    %v2755 = vadd.f32 %v2753, 1.0
    %v2756 = vrcp.pop %v2754
    %v2757 = vmul.f32 1.0, %v2756
    %v2758 = vrcp.pop %v2755
    %v2759 = vmul.f32 1.0, %v2758
    %v2760 = vxor.u32 %v2741, 2147483648
    %v2761 = vxor.u32 %v2745, 2147483648
    %v2762 = vmul.f32 %v2760, 1.442695
    %v2763 = vpow.pop %v2762
    %v2764 = vmul.f32 %v2761, 1.442695
    %v2765 = vpow.pop %v2764
    %v2766 = vadd.f32 %v2763, 1.0
    %v2767 = vadd.f32 %v2765, 1.0
    %v2768 = vrcp.pop %v2766
    %v2769 = vmul.f32 1.0, %v2768
    %v2770 = vrcp.pop %v2767
    %v2771 = vmul.f32 1.0, %v2770
    %v2772 = vtanh.pop %v2742
    %v2773 = vtanh.pop %v2746
    %v2774 = vxor.u32 %v2743, 2147483648
    %v2775 = vxor.u32 %v2747, 2147483648
    %v2776 = vmul.f32 %v2774, 1.442695
    %v2777 = vpow.pop %v2776
    %v2778 = vmul.f32 %v2775, 1.442695
    %v2779 = vpow.pop %v2778
    %v2780 = vadd.f32 %v2777, 1.0
    %v2781 = vadd.f32 %v2779, 1.0
    %v2782 = vrcp.pop %v2780
    %v2783 = vmul.f32 1.0, %v2782
    %v2784 = vrcp.pop %v2781
    %v2785 = vmul.f32 1.0, %v2784
    %v2786 = vmul.f32 %v2769, %v2409
    %v2787 = vmul.f32 %v2771, %v2410
    %v2788 = vmul.f32 %v2757, %v2772
    %v2789 = vmul.f32 %v2759, %v2773
    %v2790 = vadd.f32 %v2786, %v2788
    %v2791 = vadd.f32 %v2787, %v2789
    %v2792 = vtanh.pop %v2790
    %v2793 = vtanh.pop %v2791
    %v2794 = vmul.f32 %v2783, %v2792
    %v2795 = vmul.f32 %v2785, %v2793
    %v2796 = vpack.c.bf16 %v2795, %v2794
    %2797 = vmatprep.subr.bf16.mxu0 %v1078
    %2798 = vmatpush1.bf16.msra.mxu0 %v1077
    %2799 = vmatprep.subr.bf16.mxu0 %v1074
    %2800 = vmatpush1.bf16.msra.mxu0 %v1073
    %2801 = vmatprep.subr.bf16.mxu0 %v1070
    %2802 = vmatpush1.bf16.msra.mxu0 %v1069
    %2803 = vmatprep.subr.bf16.mxu0 %v1066
    %2804 = vmatpush1.bf16.msra.mxu0 %v1065
    %2805 = vmatprep.subr.bf16.mxu0 %v1062
    %2806 = vmatpush1.bf16.msra.mxu0 %v1061
    %2807 = vmatprep.subr.bf16.mxu0 %v1058
    %2808 = vmatpush1.bf16.msra.mxu0 %v1057
    %2809 = vmatprep.subr.bf16.mxu0 %v1054
    %2810 = vmatpush1.bf16.msra.mxu0 %v1053
    %2811 = vmatprep.subr.bf16.mxu0 %v1050
    %2812 = vmatpush1.bf16.msra.mxu0 %v1049
    %2813 = vmatprep.subr.bf16.mxu0 0
    %2814 = vmatpush2.bf16.msra.mxu0 0
    %2815 = vmatprep.subr.bf16.mxu0 0
    %2816 = vmatpush2.bf16.msra.mxu0 0
    %2817 = vmatprep.subr.bf16.mxu0 0
    %2818 = vmatpush2.bf16.msra.mxu0 0
    %2819 = vmatprep.subr.bf16.mxu0 0
    %2820 = vmatpush2.bf16.msra.mxu0 0
    %2821 = vmatprep.subr.bf16.mxu0 0
    %2822 = vmatpush2.bf16.msra.mxu0 0
    %2823 = vmatprep.subr.bf16.mxu0 0
    %2824 = vmatpush2.bf16.msra.mxu0 0
    %2825 = vmatprep.subr.bf16.mxu0 0
    %2826 = vmatpush2.bf16.msra.mxu0 0
    %2827 = vmatprep.subr.bf16.mxu0 0
    %2828 = vmatpush2.bf16.msra.mxu0 0
    %2829 = vmatprep.mubr.bf16.mxu0 0
    %2830 = vmatmul.mubr.bf16.gmra.mxu0 %v2796
    %v2831 = vpop.f32.mrf.mxu0
    %v2832 = vadd.f32 %v936, %v2831
    %v2833 = vpop.f32.mrf.mxu0
    %v2834 = vadd.f32 %v940, %v2833
    %v2835 = vpop.f32.mrf.mxu0
    %v2836 = vadd.f32 %v936, %v2835
    %v2837 = vpop.f32.mrf.mxu0
    %v2838 = vadd.f32 %v940, %v2837
    %2839 = vdwg.mxu0
    %2840 = vmatprep.subr.bf16.mxu0 %v1080
    %2841 = vmatpush1.bf16.msra.mxu0 %v1079
    %2842 = vmatprep.subr.bf16.mxu0 %v1076
    %2843 = vmatpush1.bf16.msra.mxu0 %v1075
    %2844 = vmatprep.subr.bf16.mxu0 %v1072
    %2845 = vmatpush1.bf16.msra.mxu0 %v1071
    %2846 = vmatprep.subr.bf16.mxu0 %v1068
    %2847 = vmatpush1.bf16.msra.mxu0 %v1067
    %2848 = vmatprep.subr.bf16.mxu0 %v1064
    %2849 = vmatpush1.bf16.msra.mxu0 %v1063
    %2850 = vmatprep.subr.bf16.mxu0 %v1060
    %2851 = vmatpush1.bf16.msra.mxu0 %v1059
    %2852 = vmatprep.subr.bf16.mxu0 %v1056
    %2853 = vmatpush1.bf16.msra.mxu0 %v1055
    %2854 = vmatprep.subr.bf16.mxu0 %v1052
    %2855 = vmatpush1.bf16.msra.mxu0 %v1051
    %2856 = vmatprep.subr.bf16.mxu0 0
    %2857 = vmatpush2.bf16.msra.mxu0 0
    %2858 = vmatprep.subr.bf16.mxu0 0
    %2859 = vmatpush2.bf16.msra.mxu0 0
    %2860 = vmatprep.subr.bf16.mxu0 0
    %2861 = vmatpush2.bf16.msra.mxu0 0
    %2862 = vmatprep.subr.bf16.mxu0 0
    %2863 = vmatpush2.bf16.msra.mxu0 0
    %2864 = vmatprep.subr.bf16.mxu0 0
    %2865 = vmatpush2.bf16.msra.mxu0 0
    %2866 = vmatprep.subr.bf16.mxu0 0
    %2867 = vmatpush2.bf16.msra.mxu0 0
    %2868 = vmatprep.subr.bf16.mxu0 0
    %2869 = vmatpush2.bf16.msra.mxu0 0
    %2870 = vmatprep.subr.bf16.mxu0 0
    %2871 = vmatpush2.bf16.msra.mxu0 0
    %2872 = vmatprep.mubr.bf16.mxu0 0
    %2873 = vmatmul.mubr.bf16.gmra.mxu0 %v2796
    %v2874 = vpop.f32.mrf.mxu0
    %v2875 = vadd.f32 %v944, %v2874
    %v2876 = vpop.f32.mrf.mxu0
    %v2877 = vadd.f32 %v948, %v2876
    %v2878 = vpop.f32.mrf.mxu0
    %v2879 = vadd.f32 %v944, %v2878
    %v2880 = vpop.f32.mrf.mxu0
    %v2881 = vadd.f32 %v948, %v2880
    %2882 = vdwg.mxu0
    %2883 = vmatprep.subr.bf16.mxu0 %v1324
    %2884 = vmatpush1.bf16.msra.mxu0 %v1323
    %2885 = vmatprep.subr.bf16.mxu0 %v1320
    %2886 = vmatpush1.bf16.msra.mxu0 %v1319
    %2887 = vmatprep.subr.bf16.mxu0 %v1316
    %2888 = vmatpush1.bf16.msra.mxu0 %v1315
    %2889 = vmatprep.subr.bf16.mxu0 %v1312
    %2890 = vmatpush1.bf16.msra.mxu0 %v1311
    %2891 = vmatprep.subr.bf16.mxu0 %v1308
    %2892 = vmatpush1.bf16.msra.mxu0 %v1307
    %2893 = vmatprep.subr.bf16.mxu0 %v1304
    %2894 = vmatpush1.bf16.msra.mxu0 %v1303
    %2895 = vmatprep.subr.bf16.mxu0 %v1300
    %2896 = vmatpush1.bf16.msra.mxu0 %v1299
    %2897 = vmatprep.subr.bf16.mxu0 %v1296
    %2898 = vmatpush1.bf16.msra.mxu0 %v1295
    %2899 = vmatprep.subr.bf16.mxu0 0
    %2900 = vmatpush2.bf16.msra.mxu0 0
    %2901 = vmatprep.subr.bf16.mxu0 0
    %2902 = vmatpush2.bf16.msra.mxu0 0
    %2903 = vmatprep.subr.bf16.mxu0 0
    %2904 = vmatpush2.bf16.msra.mxu0 0
    %2905 = vmatprep.subr.bf16.mxu0 0
    %2906 = vmatpush2.bf16.msra.mxu0 0
    %2907 = vmatprep.subr.bf16.mxu0 0
    %2908 = vmatpush2.bf16.msra.mxu0 0
    %2909 = vmatprep.subr.bf16.mxu0 0
    %2910 = vmatpush2.bf16.msra.mxu0 0
    %2911 = vmatprep.subr.bf16.mxu0 0
    %2912 = vmatpush2.bf16.msra.mxu0 0
    %2913 = vmatprep.subr.bf16.mxu0 0
    %2914 = vmatpush2.bf16.msra.mxu0 0
    %2915 = vmatprep.mubr.bf16.mxu0 0
    %2916 = vmatmul.mubr.bf16.gmra.mxu0 %v2644
    %v2917 = vpop.f32.mrf.mxu0
    %v2918 = vadd.f32 0.0, %v2917
    %v2919 = vpop.f32.mrf.mxu0
    %v2920 = vadd.f32 0.0, %v2919
    %v2921 = vpop.f32.mrf.mxu0
    %v2922 = vadd.f32 0.0, %v2921
    %v2923 = vpop.f32.mrf.mxu0
    %v2924 = vadd.f32 0.0, %v2923
    %2925 = vdwg.mxu0
    %2926 = vmatprep.subr.bf16.mxu0 %v1326
    %2927 = vmatpush1.bf16.msra.mxu0 %v1325
    %2928 = vmatprep.subr.bf16.mxu0 %v1322
    %2929 = vmatpush1.bf16.msra.mxu0 %v1321
    %2930 = vmatprep.subr.bf16.mxu0 %v1318
    %2931 = vmatpush1.bf16.msra.mxu0 %v1317
    %2932 = vmatprep.subr.bf16.mxu0 %v1314
    %2933 = vmatpush1.bf16.msra.mxu0 %v1313
    %2934 = vmatprep.subr.bf16.mxu0 %v1310
    %2935 = vmatpush1.bf16.msra.mxu0 %v1309
    %2936 = vmatprep.subr.bf16.mxu0 %v1306
    %2937 = vmatpush1.bf16.msra.mxu0 %v1305
    %2938 = vmatprep.subr.bf16.mxu0 %v1302
    %2939 = vmatpush1.bf16.msra.mxu0 %v1301
    %2940 = vmatprep.subr.bf16.mxu0 %v1298
    %2941 = vmatpush1.bf16.msra.mxu0 %v1297
    %2942 = vmatprep.subr.bf16.mxu0 0
    %2943 = vmatpush2.bf16.msra.mxu0 0
    %2944 = vmatprep.subr.bf16.mxu0 0
    %2945 = vmatpush2.bf16.msra.mxu0 0
    %2946 = vmatprep.subr.bf16.mxu0 0
    %2947 = vmatpush2.bf16.msra.mxu0 0
    %2948 = vmatprep.subr.bf16.mxu0 0
    %2949 = vmatpush2.bf16.msra.mxu0 0
    %2950 = vmatprep.subr.bf16.mxu0 0
    %2951 = vmatpush2.bf16.msra.mxu0 0
    %2952 = vmatprep.subr.bf16.mxu0 0
    %2953 = vmatpush2.bf16.msra.mxu0 0
    %2954 = vmatprep.subr.bf16.mxu0 0
    %2955 = vmatpush2.bf16.msra.mxu0 0
    %2956 = vmatprep.subr.bf16.mxu0 0
    %2957 = vmatpush2.bf16.msra.mxu0 0
    %2958 = vmatprep.mubr.bf16.mxu0 0
    %2959 = vmatmul.mubr.bf16.gmra.mxu0 %v2644
    %v2960 = vpop.f32.mrf.mxu0
    %v2961 = vadd.f32 0.0, %v2960
    %v2962 = vpop.f32.mrf.mxu0
    %v2963 = vadd.f32 0.0, %v2962
    %v2964 = vpop.f32.mrf.mxu0
    %v2965 = vadd.f32 0.0, %v2964
    %v2966 = vpop.f32.mrf.mxu0
    %v2967 = vadd.f32 0.0, %v2966
    %2968 = vdwg.mxu0
    %v2969 = vadd.f32 %v2832, %v2918
    %v2970 = vadd.f32 %v2834, %v2920
    %v2971 = vadd.f32 %v2875, %v2961
    %v2972 = vadd.f32 %v2877, %v2963
    %v2973 = vadd.f32 %v2836, %v2922
    %v2974 = vadd.f32 %v2838, %v2924
    %v2975 = vadd.f32 %v2879, %v2965
    %v2976 = vadd.f32 %v2881, %v2967
    %v2977 = vxor.u32 %v2969, 2147483648
    %v2978 = vxor.u32 %v2973, 2147483648
    %v2979 = vmul.f32 %v2977, 1.442695
    %v2980 = vpow.pop %v2979
    %v2981 = vmul.f32 %v2978, 1.442695
    %v2982 = vpow.pop %v2981
    %v2983 = vadd.f32 %v2980, 1.0
    %v2984 = vadd.f32 %v2982, 1.0
    %v2985 = vrcp.pop %v2983
    %v2986 = vmul.f32 1.0, %v2985
    %v2987 = vrcp.pop %v2984
    %v2988 = vmul.f32 1.0, %v2987
    %v2989 = vxor.u32 %v2970, 2147483648
    %v2990 = vxor.u32 %v2974, 2147483648
    %v2991 = vmul.f32 %v2989, 1.442695
    %v2992 = vpow.pop %v2991
    %v2993 = vmul.f32 %v2990, 1.442695
    %v2994 = vpow.pop %v2993
    %v2995 = vadd.f32 %v2992, 1.0
    %v2996 = vadd.f32 %v2994, 1.0
    %v2997 = vrcp.pop %v2995
    %v2998 = vmul.f32 1.0, %v2997
    %v2999 = vrcp.pop %v2996
    %v3000 = vmul.f32 1.0, %v2999
    %v3001 = vtanh.pop %v2971
    %v3002 = vtanh.pop %v2975
    %v3003 = vxor.u32 %v2972, 2147483648
    %v3004 = vxor.u32 %v2976, 2147483648
    %v3005 = vmul.f32 %v3003, 1.442695
    %v3006 = vpow.pop %v3005
    %v3007 = vmul.f32 %v3004, 1.442695
    %v3008 = vpow.pop %v3007
    %v3009 = vadd.f32 %v3006, 1.0
    %v3010 = vadd.f32 %v3008, 1.0
    %v3011 = vrcp.pop %v3009
    %v3012 = vmul.f32 1.0, %v3011
    %v3013 = vrcp.pop %v3010
    %v3014 = vmul.f32 1.0, %v3013
    %v3015 = vmul.f32 %v2998, %v2638
    %v3016 = vmul.f32 %v3000, %v2639
    %v3017 = vmul.f32 %v2986, %v3001
    %v3018 = vmul.f32 %v2988, %v3002
    %v3019 = vadd.f32 %v3015, %v3017
    %v3020 = vadd.f32 %v3016, %v3018
    %v3021 = vtanh.pop %v3019
    %v3022 = vtanh.pop %v3020
    %v3023 = vmul.f32 %v3012, %v3021
    %v3024 = vmul.f32 %v3014, %v3022
    %v3025 = vpack.c.bf16 %v3024, %v3023
    %v3027 = vunpack.c.l.b16 %v3025
    %v3028 = vunpack.c.h.b16 %v3025
    %v3029 = vpack.c.b16 %v3027, %v3027
    %v3030 = vpack.c.b16 %v3028, %v3028
    %3033 = vst [vmem:[#allocation2 + $0x10] sm:$0xf] %v3029
    %3034 = vst [vmem:[#allocation2 + $0x30] sm:$0xf] %v3030
    %3035 = vmatprep.subr.bf16.mxu0 %v754
    %3036 = vmatpush1.bf16.msra.mxu0 %v753
    %3037 = vmatprep.subr.bf16.mxu0 %v750
    %3038 = vmatpush1.bf16.msra.mxu0 %v749
    %3039 = vmatprep.subr.bf16.mxu0 %v746
    %3040 = vmatpush1.bf16.msra.mxu0 %v745
    %3041 = vmatprep.subr.bf16.mxu0 %v742
    %3042 = vmatpush1.bf16.msra.mxu0 %v741
    %3043 = vmatprep.subr.bf16.mxu0 %v738
    %3044 = vmatpush1.bf16.msra.mxu0 %v737
    %3045 = vmatprep.subr.bf16.mxu0 %v734
    %3046 = vmatpush1.bf16.msra.mxu0 %v733
    %3047 = vmatprep.subr.bf16.mxu0 %v730
    %3048 = vmatpush1.bf16.msra.mxu0 %v729
    %3049 = vmatprep.subr.bf16.mxu0 %v726
    %3050 = vmatpush1.bf16.msra.mxu0 %v725
    %3051 = vmatprep.subr.bf16.mxu0 0
    %3052 = vmatpush2.bf16.msra.mxu0 0
    %3053 = vmatprep.subr.bf16.mxu0 0
    %3054 = vmatpush2.bf16.msra.mxu0 0
    %3055 = vmatprep.subr.bf16.mxu0 0
    %3056 = vmatpush2.bf16.msra.mxu0 0
    %3057 = vmatprep.subr.bf16.mxu0 0
    %3058 = vmatpush2.bf16.msra.mxu0 0
    %3059 = vmatprep.subr.bf16.mxu0 0
    %3060 = vmatpush2.bf16.msra.mxu0 0
    %3061 = vmatprep.subr.bf16.mxu0 0
    %3062 = vmatpush2.bf16.msra.mxu0 0
    %3063 = vmatprep.subr.bf16.mxu0 0
    %3064 = vmatpush2.bf16.msra.mxu0 0
    %3065 = vmatprep.subr.bf16.mxu0 0
    %3066 = vmatpush2.bf16.msra.mxu0 0
    %3067 = vmatprep.mubr.bf16.mxu0 0
    %3068 = vmatmul.mubr.bf16.gmra.mxu0 %v2796
    %v3069 = vpop.f32.mrf.mxu0
    %v3070 = vadd.f32 0.0, %v3069
    %v3071 = vpop.f32.mrf.mxu0
    %v3072 = vadd.f32 0.0, %v3071
    %v3073 = vpop.f32.mrf.mxu0
    %v3074 = vadd.f32 0.0, %v3073
    %v3075 = vpop.f32.mrf.mxu0
    %v3076 = vadd.f32 0.0, %v3075
    %3077 = vdwg.mxu0
    %3078 = vmatprep.subr.bf16.mxu0 %v756
    %3079 = vmatpush1.bf16.msra.mxu0 %v755
    %3080 = vmatprep.subr.bf16.mxu0 %v752
    %3081 = vmatpush1.bf16.msra.mxu0 %v751
    %3082 = vmatprep.subr.bf16.mxu0 %v748
    %3083 = vmatpush1.bf16.msra.mxu0 %v747
    %3084 = vmatprep.subr.bf16.mxu0 %v744
    %3085 = vmatpush1.bf16.msra.mxu0 %v743
    %3086 = vmatprep.subr.bf16.mxu0 %v740
    %3087 = vmatpush1.bf16.msra.mxu0 %v739
    %3088 = vmatprep.subr.bf16.mxu0 %v736
    %3089 = vmatpush1.bf16.msra.mxu0 %v735
    %3090 = vmatprep.subr.bf16.mxu0 %v732
    %3091 = vmatpush1.bf16.msra.mxu0 %v731
    %3092 = vmatprep.subr.bf16.mxu0 %v728
    %3093 = vmatpush1.bf16.msra.mxu0 %v727
    %3094 = vmatprep.subr.bf16.mxu0 0
    %3095 = vmatpush2.bf16.msra.mxu0 0
    %3096 = vmatprep.subr.bf16.mxu0 0
    %3097 = vmatpush2.bf16.msra.mxu0 0
    %3098 = vmatprep.subr.bf16.mxu0 0
    %3099 = vmatpush2.bf16.msra.mxu0 0
    %3100 = vmatprep.subr.bf16.mxu0 0
    %3101 = vmatpush2.bf16.msra.mxu0 0
    %3102 = vmatprep.subr.bf16.mxu0 0
    %3103 = vmatpush2.bf16.msra.mxu0 0
    %3104 = vmatprep.subr.bf16.mxu0 0
    %3105 = vmatpush2.bf16.msra.mxu0 0
    %3106 = vmatprep.subr.bf16.mxu0 0
    %3107 = vmatpush2.bf16.msra.mxu0 0
    %3108 = vmatprep.subr.bf16.mxu0 0
    %3109 = vmatpush2.bf16.msra.mxu0 0
    %3110 = vmatprep.mubr.bf16.mxu0 0
    %3111 = vmatmul.mubr.bf16.gmra.mxu0 %v2796
    %v3112 = vpop.f32.mrf.mxu0
    %v3113 = vadd.f32 0.0, %v3112
    %v3114 = vpop.f32.mrf.mxu0
    %v3115 = vadd.f32 0.0, %v3114
    %v3116 = vpop.f32.mrf.mxu0
    %v3117 = vadd.f32 0.0, %v3116
    %v3118 = vpop.f32.mrf.mxu0
    %v3119 = vadd.f32 0.0, %v3118
    %3120 = vdwg.mxu0
    %v3121 = vadd.f32 %v488, %v3070
    %v3122 = vadd.f32 %v490, %v3072
    %v3123 = vadd.f32 %v601, %v3113
    %v3124 = vadd.f32 %v603, %v3115
    %v3125 = vadd.f32 %v492, %v3074
    %v3126 = vadd.f32 %v494, %v3076
    %v3127 = vadd.f32 %v605, %v3117
    %v3128 = vadd.f32 %v607, %v3119
    %v3129 = vxor.u32 %v3121, 2147483648
    %v3130 = vxor.u32 %v3125, 2147483648
    %v3131 = vmul.f32 %v3129, 1.442695
    %v3132 = vpow.pop %v3131
    %v3133 = vmul.f32 %v3130, 1.442695
    %v3134 = vpow.pop %v3133
    %v3135 = vadd.f32 %v3132, 1.0
    %v3136 = vadd.f32 %v3134, 1.0
    %v3137 = vrcp.pop %v3135
    %v3138 = vmul.f32 1.0, %v3137
    %v3139 = vrcp.pop %v3136
    %v3140 = vmul.f32 1.0, %v3139
    %v3141 = vxor.u32 %v3122, 2147483648
    %v3142 = vxor.u32 %v3126, 2147483648
    %v3143 = vmul.f32 %v3141, 1.442695
    %v3144 = vpow.pop %v3143
    %v3145 = vmul.f32 %v3142, 1.442695
    %v3146 = vpow.pop %v3145
    %v3147 = vadd.f32 %v3144, 1.0
    %v3148 = vadd.f32 %v3146, 1.0
    %v3149 = vrcp.pop %v3147
    %v3150 = vmul.f32 1.0, %v3149
    %v3151 = vrcp.pop %v3148
    %v3152 = vmul.f32 1.0, %v3151
    %v3153 = vtanh.pop %v3123
    %v3154 = vtanh.pop %v3127
    %v3155 = vxor.u32 %v3124, 2147483648
    %v3156 = vxor.u32 %v3128, 2147483648
    %v3157 = vmul.f32 %v3155, 1.442695
    %v3158 = vpow.pop %v3157
    %v3159 = vmul.f32 %v3156, 1.442695
    %v3160 = vpow.pop %v3159
    %v3161 = vadd.f32 %v3158, 1.0
    %v3162 = vadd.f32 %v3160, 1.0
    %v3163 = vrcp.pop %v3161
    %v3164 = vmul.f32 1.0, %v3163
    %v3165 = vrcp.pop %v3162
    %v3166 = vmul.f32 1.0, %v3165
    %v3167 = vmul.f32 %v3150, %v2790
    %v3168 = vmul.f32 %v3152, %v2791
    %v3169 = vmul.f32 %v3138, %v3153
    %v3170 = vmul.f32 %v3140, %v3154
    %v3171 = vadd.f32 %v3167, %v3169
    %v3172 = vadd.f32 %v3168, %v3170
    %v3173 = vtanh.pop %v3171
    %v3174 = vtanh.pop %v3172
    %v3175 = vmul.f32 %v3164, %v3173
    %v3176 = vmul.f32 %v3166, %v3174
    %v3177 = vpack.c.bf16 %v3176, %v3175
    %3178 = vmatprep.subr.bf16.mxu0 %v1078
    %3179 = vmatpush1.bf16.msra.mxu0 %v1077
    %3180 = vmatprep.subr.bf16.mxu0 %v1074
    %3181 = vmatpush1.bf16.msra.mxu0 %v1073
    %3182 = vmatprep.subr.bf16.mxu0 %v1070
    %3183 = vmatpush1.bf16.msra.mxu0 %v1069
    %3184 = vmatprep.subr.bf16.mxu0 %v1066
    %3185 = vmatpush1.bf16.msra.mxu0 %v1065
    %3186 = vmatprep.subr.bf16.mxu0 %v1062
    %3187 = vmatpush1.bf16.msra.mxu0 %v1061
    %3188 = vmatprep.subr.bf16.mxu0 %v1058
    %3189 = vmatpush1.bf16.msra.mxu0 %v1057
    %3190 = vmatprep.subr.bf16.mxu0 %v1054
    %3191 = vmatpush1.bf16.msra.mxu0 %v1053
    %3192 = vmatprep.subr.bf16.mxu0 %v1050
    %3193 = vmatpush1.bf16.msra.mxu0 %v1049
    %3194 = vmatprep.subr.bf16.mxu0 0
    %3195 = vmatpush2.bf16.msra.mxu0 0
    %3196 = vmatprep.subr.bf16.mxu0 0
    %3197 = vmatpush2.bf16.msra.mxu0 0
    %3198 = vmatprep.subr.bf16.mxu0 0
    %3199 = vmatpush2.bf16.msra.mxu0 0
    %3200 = vmatprep.subr.bf16.mxu0 0
    %3201 = vmatpush2.bf16.msra.mxu0 0
    %3202 = vmatprep.subr.bf16.mxu0 0
    %3203 = vmatpush2.bf16.msra.mxu0 0
    %3204 = vmatprep.subr.bf16.mxu0 0
    %3205 = vmatpush2.bf16.msra.mxu0 0
    %3206 = vmatprep.subr.bf16.mxu0 0
    %3207 = vmatpush2.bf16.msra.mxu0 0
    %3208 = vmatprep.subr.bf16.mxu0 0
    %3209 = vmatpush2.bf16.msra.mxu0 0
    %3210 = vmatprep.mubr.bf16.mxu0 0
    %3211 = vmatmul.mubr.bf16.gmra.mxu0 %v3177
    %v3212 = vpop.f32.mrf.mxu0
    %v3213 = vadd.f32 %v936, %v3212
    %v3214 = vpop.f32.mrf.mxu0
    %v3215 = vadd.f32 %v940, %v3214
    %v3216 = vpop.f32.mrf.mxu0
    %v3217 = vadd.f32 %v936, %v3216
    %v3218 = vpop.f32.mrf.mxu0
    %v3219 = vadd.f32 %v940, %v3218
    %3220 = vdwg.mxu0
    %3221 = vmatprep.subr.bf16.mxu0 %v1080
    %3222 = vmatpush1.bf16.msra.mxu0 %v1079
    %3223 = vmatprep.subr.bf16.mxu0 %v1076
    %3224 = vmatpush1.bf16.msra.mxu0 %v1075
    %3225 = vmatprep.subr.bf16.mxu0 %v1072
    %3226 = vmatpush1.bf16.msra.mxu0 %v1071
    %3227 = vmatprep.subr.bf16.mxu0 %v1068
    %3228 = vmatpush1.bf16.msra.mxu0 %v1067
    %3229 = vmatprep.subr.bf16.mxu0 %v1064
    %3230 = vmatpush1.bf16.msra.mxu0 %v1063
    %3231 = vmatprep.subr.bf16.mxu0 %v1060
    %3232 = vmatpush1.bf16.msra.mxu0 %v1059
    %3233 = vmatprep.subr.bf16.mxu0 %v1056
    %3234 = vmatpush1.bf16.msra.mxu0 %v1055
    %3235 = vmatprep.subr.bf16.mxu0 %v1052
    %3236 = vmatpush1.bf16.msra.mxu0 %v1051
    %3237 = vmatprep.subr.bf16.mxu0 0
    %3238 = vmatpush2.bf16.msra.mxu0 0
    %3239 = vmatprep.subr.bf16.mxu0 0
    %3240 = vmatpush2.bf16.msra.mxu0 0
    %3241 = vmatprep.subr.bf16.mxu0 0
    %3242 = vmatpush2.bf16.msra.mxu0 0
    %3243 = vmatprep.subr.bf16.mxu0 0
    %3244 = vmatpush2.bf16.msra.mxu0 0
    %3245 = vmatprep.subr.bf16.mxu0 0
    %3246 = vmatpush2.bf16.msra.mxu0 0
    %3247 = vmatprep.subr.bf16.mxu0 0
    %3248 = vmatpush2.bf16.msra.mxu0 0
    %3249 = vmatprep.subr.bf16.mxu0 0
    %3250 = vmatpush2.bf16.msra.mxu0 0
    %3251 = vmatprep.subr.bf16.mxu0 0
    %3252 = vmatpush2.bf16.msra.mxu0 0
    %3253 = vmatprep.mubr.bf16.mxu0 0
    %3254 = vmatmul.mubr.bf16.gmra.mxu0 %v3177
    %v3255 = vpop.f32.mrf.mxu0
    %v3256 = vadd.f32 %v944, %v3255
    %v3257 = vpop.f32.mrf.mxu0
    %v3258 = vadd.f32 %v948, %v3257
    %v3259 = vpop.f32.mrf.mxu0
    %v3260 = vadd.f32 %v944, %v3259
    %v3261 = vpop.f32.mrf.mxu0
    %v3262 = vadd.f32 %v948, %v3261
    %3263 = vdwg.mxu0
    %3264 = vmatprep.subr.bf16.mxu0 %v1324
    %3265 = vmatpush1.bf16.msra.mxu0 %v1323
    %3266 = vmatprep.subr.bf16.mxu0 %v1320
    %3267 = vmatpush1.bf16.msra.mxu0 %v1319
    %3268 = vmatprep.subr.bf16.mxu0 %v1316
    %3269 = vmatpush1.bf16.msra.mxu0 %v1315
    %3270 = vmatprep.subr.bf16.mxu0 %v1312
    %3271 = vmatpush1.bf16.msra.mxu0 %v1311
    %3272 = vmatprep.subr.bf16.mxu0 %v1308
    %3273 = vmatpush1.bf16.msra.mxu0 %v1307
    %3274 = vmatprep.subr.bf16.mxu0 %v1304
    %3275 = vmatpush1.bf16.msra.mxu0 %v1303
    %3276 = vmatprep.subr.bf16.mxu0 %v1300
    %3277 = vmatpush1.bf16.msra.mxu0 %v1299
    %3278 = vmatprep.subr.bf16.mxu0 %v1296
    %3279 = vmatpush1.bf16.msra.mxu0 %v1295
    %3280 = vmatprep.subr.bf16.mxu0 0
    %3281 = vmatpush2.bf16.msra.mxu0 0
    %3282 = vmatprep.subr.bf16.mxu0 0
    %3283 = vmatpush2.bf16.msra.mxu0 0
    %3284 = vmatprep.subr.bf16.mxu0 0
    %3285 = vmatpush2.bf16.msra.mxu0 0
    %3286 = vmatprep.subr.bf16.mxu0 0
    %3287 = vmatpush2.bf16.msra.mxu0 0
    %3288 = vmatprep.subr.bf16.mxu0 0
    %3289 = vmatpush2.bf16.msra.mxu0 0
    %3290 = vmatprep.subr.bf16.mxu0 0
    %3291 = vmatpush2.bf16.msra.mxu0 0
    %3292 = vmatprep.subr.bf16.mxu0 0
    %3293 = vmatpush2.bf16.msra.mxu0 0
    %3294 = vmatprep.subr.bf16.mxu0 0
    %3295 = vmatpush2.bf16.msra.mxu0 0
    %3296 = vmatprep.mubr.bf16.mxu0 0
    %3297 = vmatmul.mubr.bf16.gmra.mxu0 %v3025
    %v3298 = vpop.f32.mrf.mxu0
    %v3299 = vadd.f32 0.0, %v3298
    %v3300 = vpop.f32.mrf.mxu0
    %v3301 = vadd.f32 0.0, %v3300
    %v3302 = vpop.f32.mrf.mxu0
    %v3303 = vadd.f32 0.0, %v3302
    %v3304 = vpop.f32.mrf.mxu0
    %v3305 = vadd.f32 0.0, %v3304
    %3306 = vdwg.mxu0
    %3307 = vmatprep.subr.bf16.mxu0 %v1326
    %3308 = vmatpush1.bf16.msra.mxu0 %v1325
    %3309 = vmatprep.subr.bf16.mxu0 %v1322
    %3310 = vmatpush1.bf16.msra.mxu0 %v1321
    %3311 = vmatprep.subr.bf16.mxu0 %v1318
    %3312 = vmatpush1.bf16.msra.mxu0 %v1317
    %3313 = vmatprep.subr.bf16.mxu0 %v1314
    %3314 = vmatpush1.bf16.msra.mxu0 %v1313
    %3315 = vmatprep.subr.bf16.mxu0 %v1310
    %3316 = vmatpush1.bf16.msra.mxu0 %v1309
    %3317 = vmatprep.subr.bf16.mxu0 %v1306
    %3318 = vmatpush1.bf16.msra.mxu0 %v1305
    %3319 = vmatprep.subr.bf16.mxu0 %v1302
    %3320 = vmatpush1.bf16.msra.mxu0 %v1301
    %3321 = vmatprep.subr.bf16.mxu0 %v1298
    %3322 = vmatpush1.bf16.msra.mxu0 %v1297
    %3323 = vmatprep.subr.bf16.mxu0 0
    %3324 = vmatpush2.bf16.msra.mxu0 0
    %3325 = vmatprep.subr.bf16.mxu0 0
    %3326 = vmatpush2.bf16.msra.mxu0 0
    %3327 = vmatprep.subr.bf16.mxu0 0
    %3328 = vmatpush2.bf16.msra.mxu0 0
    %3329 = vmatprep.subr.bf16.mxu0 0
    %3330 = vmatpush2.bf16.msra.mxu0 0
    %3331 = vmatprep.subr.bf16.mxu0 0
    %3332 = vmatpush2.bf16.msra.mxu0 0
    %3333 = vmatprep.subr.bf16.mxu0 0
    %3334 = vmatpush2.bf16.msra.mxu0 0
    %3335 = vmatprep.subr.bf16.mxu0 0
    %3336 = vmatpush2.bf16.msra.mxu0 0
    %3337 = vmatprep.subr.bf16.mxu0 0
    %3338 = vmatpush2.bf16.msra.mxu0 0
    %3339 = vmatprep.mubr.bf16.mxu0 0
    %3340 = vmatmul.mubr.bf16.gmra.mxu0 %v3025
    %v3341 = vpop.f32.mrf.mxu0
    %v3342 = vadd.f32 0.0, %v3341
    %v3343 = vpop.f32.mrf.mxu0
    %v3344 = vadd.f32 0.0, %v3343
    %v3345 = vpop.f32.mrf.mxu0
    %v3346 = vadd.f32 0.0, %v3345
    %v3347 = vpop.f32.mrf.mxu0
    %v3348 = vadd.f32 0.0, %v3347
    %3349 = vdwg.mxu0
    %v3350 = vadd.f32 %v3213, %v3299
    %v3351 = vadd.f32 %v3215, %v3301
    %v3352 = vadd.f32 %v3256, %v3342
    %v3353 = vadd.f32 %v3258, %v3344
    %v3354 = vadd.f32 %v3217, %v3303
    %v3355 = vadd.f32 %v3219, %v3305
    %v3356 = vadd.f32 %v3260, %v3346
    %v3357 = vadd.f32 %v3262, %v3348
    %v3358 = vxor.u32 %v3350, 2147483648
    %v3359 = vxor.u32 %v3354, 2147483648
    %v3360 = vmul.f32 %v3358, 1.442695
    %v3361 = vpow.pop %v3360
    %v3362 = vmul.f32 %v3359, 1.442695
    %v3363 = vpow.pop %v3362
    %v3364 = vadd.f32 %v3361, 1.0
    %v3365 = vadd.f32 %v3363, 1.0
    %v3366 = vrcp.pop %v3364
    %v3367 = vmul.f32 1.0, %v3366
    %v3368 = vrcp.pop %v3365
    %v3369 = vmul.f32 1.0, %v3368
    %v3370 = vxor.u32 %v3351, 2147483648
    %v3371 = vxor.u32 %v3355, 2147483648
    %v3372 = vmul.f32 %v3370, 1.442695
    %v3373 = vpow.pop %v3372
    %v3374 = vmul.f32 %v3371, 1.442695
    %v3375 = vpow.pop %v3374
    %v3376 = vadd.f32 %v3373, 1.0
    %v3377 = vadd.f32 %v3375, 1.0
    %v3378 = vrcp.pop %v3376
    %v3379 = vmul.f32 1.0, %v3378
    %v3380 = vrcp.pop %v3377
    %v3381 = vmul.f32 1.0, %v3380
    %v3382 = vtanh.pop %v3352
    %v3383 = vtanh.pop %v3356
    %v3384 = vxor.u32 %v3353, 2147483648
    %v3385 = vxor.u32 %v3357, 2147483648
    %v3386 = vmul.f32 %v3384, 1.442695
    %v3387 = vpow.pop %v3386
    %v3388 = vmul.f32 %v3385, 1.442695
    %v3389 = vpow.pop %v3388
    %v3390 = vadd.f32 %v3387, 1.0
    %v3391 = vadd.f32 %v3389, 1.0
    %v3392 = vrcp.pop %v3390
    %v3393 = vmul.f32 1.0, %v3392
    %v3394 = vrcp.pop %v3391
    %v3395 = vmul.f32 1.0, %v3394
    %v3396 = vmul.f32 %v3379, %v3019
    %v3397 = vmul.f32 %v3381, %v3020
    %v3398 = vmul.f32 %v3367, %v3382
    %v3399 = vmul.f32 %v3369, %v3383
    %v3400 = vadd.f32 %v3396, %v3398
    %v3401 = vadd.f32 %v3397, %v3399
    %v3402 = vtanh.pop %v3400
    %v3403 = vtanh.pop %v3401
    %v3404 = vmul.f32 %v3393, %v3402
    %v3405 = vmul.f32 %v3395, %v3403
    %v3406 = vpack.c.bf16 %v3405, %v3404
    %v3408 = vunpack.c.l.b16 %v3406
    %v3409 = vunpack.c.h.b16 %v3406
    %v3410 = vpack.c.b16 %v3408, %v3408
    %v3411 = vpack.c.b16 %v3409, %v3409
    %3414 = vst [vmem:[#allocation2 + $0x14] sm:$0xf] %v3410
    %3415 = vst [vmem:[#allocation2 + $0x34] sm:$0xf] %v3411
    %3416 = vmatprep.subr.bf16.mxu0 %v754
    %3417 = vmatpush1.bf16.msra.mxu0 %v753
    %3418 = vmatprep.subr.bf16.mxu0 %v750
    %3419 = vmatpush1.bf16.msra.mxu0 %v749
    %3420 = vmatprep.subr.bf16.mxu0 %v746
    %3421 = vmatpush1.bf16.msra.mxu0 %v745
    %3422 = vmatprep.subr.bf16.mxu0 %v742
    %3423 = vmatpush1.bf16.msra.mxu0 %v741
    %3424 = vmatprep.subr.bf16.mxu0 %v738
    %3425 = vmatpush1.bf16.msra.mxu0 %v737
    %3426 = vmatprep.subr.bf16.mxu0 %v734
    %3427 = vmatpush1.bf16.msra.mxu0 %v733
    %3428 = vmatprep.subr.bf16.mxu0 %v730
    %3429 = vmatpush1.bf16.msra.mxu0 %v729
    %3430 = vmatprep.subr.bf16.mxu0 %v726
    %3431 = vmatpush1.bf16.msra.mxu0 %v725
    %3432 = vmatprep.subr.bf16.mxu0 0
    %3433 = vmatpush2.bf16.msra.mxu0 0
    %3434 = vmatprep.subr.bf16.mxu0 0
    %3435 = vmatpush2.bf16.msra.mxu0 0
    %3436 = vmatprep.subr.bf16.mxu0 0
    %3437 = vmatpush2.bf16.msra.mxu0 0
    %3438 = vmatprep.subr.bf16.mxu0 0
    %3439 = vmatpush2.bf16.msra.mxu0 0
    %3440 = vmatprep.subr.bf16.mxu0 0
    %3441 = vmatpush2.bf16.msra.mxu0 0
    %3442 = vmatprep.subr.bf16.mxu0 0
    %3443 = vmatpush2.bf16.msra.mxu0 0
    %3444 = vmatprep.subr.bf16.mxu0 0
    %3445 = vmatpush2.bf16.msra.mxu0 0
    %3446 = vmatprep.subr.bf16.mxu0 0
    %3447 = vmatpush2.bf16.msra.mxu0 0
    %3448 = vmatprep.mubr.bf16.mxu0 0
    %3449 = vmatmul.mubr.bf16.gmra.mxu0 %v3177
    %v3450 = vpop.f32.mrf.mxu0
    %v3451 = vadd.f32 0.0, %v3450
    %v3452 = vpop.f32.mrf.mxu0
    %v3453 = vadd.f32 0.0, %v3452
    %v3454 = vpop.f32.mrf.mxu0
    %v3455 = vadd.f32 0.0, %v3454
    %v3456 = vpop.f32.mrf.mxu0
    %v3457 = vadd.f32 0.0, %v3456
    %3458 = vdwg.mxu0
    %3459 = vmatprep.subr.bf16.mxu0 %v756
    %3460 = vmatpush1.bf16.msra.mxu0 %v755
    %3461 = vmatprep.subr.bf16.mxu0 %v752
    %3462 = vmatpush1.bf16.msra.mxu0 %v751
    %3463 = vmatprep.subr.bf16.mxu0 %v748
    %3464 = vmatpush1.bf16.msra.mxu0 %v747
    %3465 = vmatprep.subr.bf16.mxu0 %v744
    %3466 = vmatpush1.bf16.msra.mxu0 %v743
    %3467 = vmatprep.subr.bf16.mxu0 %v740
    %3468 = vmatpush1.bf16.msra.mxu0 %v739
    %3469 = vmatprep.subr.bf16.mxu0 %v736
    %3470 = vmatpush1.bf16.msra.mxu0 %v735
    %3471 = vmatprep.subr.bf16.mxu0 %v732
    %3472 = vmatpush1.bf16.msra.mxu0 %v731
    %3473 = vmatprep.subr.bf16.mxu0 %v728
    %3474 = vmatpush1.bf16.msra.mxu0 %v727
    %3475 = vmatprep.subr.bf16.mxu0 0
    %3476 = vmatpush2.bf16.msra.mxu0 0
    %3477 = vmatprep.subr.bf16.mxu0 0
    %3478 = vmatpush2.bf16.msra.mxu0 0
    %3479 = vmatprep.subr.bf16.mxu0 0
    %3480 = vmatpush2.bf16.msra.mxu0 0
    %3481 = vmatprep.subr.bf16.mxu0 0
    %3482 = vmatpush2.bf16.msra.mxu0 0
    %3483 = vmatprep.subr.bf16.mxu0 0
    %3484 = vmatpush2.bf16.msra.mxu0 0
    %3485 = vmatprep.subr.bf16.mxu0 0
    %3486 = vmatpush2.bf16.msra.mxu0 0
    %3487 = vmatprep.subr.bf16.mxu0 0
    %3488 = vmatpush2.bf16.msra.mxu0 0
    %3489 = vmatprep.subr.bf16.mxu0 0
    %3490 = vmatpush2.bf16.msra.mxu0 0
    %3491 = vmatprep.mubr.bf16.mxu0 0
    %3492 = vmatmul.mubr.bf16.gmra.mxu0 %v3177
    %v3493 = vpop.f32.mrf.mxu0
    %v3494 = vadd.f32 0.0, %v3493
    %v3495 = vpop.f32.mrf.mxu0
    %v3496 = vadd.f32 0.0, %v3495
    %v3497 = vpop.f32.mrf.mxu0
    %v3498 = vadd.f32 0.0, %v3497
    %v3499 = vpop.f32.mrf.mxu0
    %v3500 = vadd.f32 0.0, %v3499
    %3501 = vdwg.mxu0
    %v3502 = vadd.f32 %v498, %v3451
    %v3503 = vadd.f32 %v500, %v3453
    %v3504 = vadd.f32 %v611, %v3494
    %v3505 = vadd.f32 %v613, %v3496
    %v3506 = vadd.f32 %v502, %v3455
    %v3507 = vadd.f32 %v504, %v3457
    %v3508 = vadd.f32 %v615, %v3498
    %v3509 = vadd.f32 %v617, %v3500
    %v3510 = vxor.u32 %v3502, 2147483648
    %v3511 = vxor.u32 %v3506, 2147483648
    %v3512 = vmul.f32 %v3510, 1.442695
    %v3513 = vpow.pop %v3512
    %v3514 = vmul.f32 %v3511, 1.442695
    %v3515 = vpow.pop %v3514
    %v3516 = vadd.f32 %v3513, 1.0
    %v3517 = vadd.f32 %v3515, 1.0
    %v3518 = vrcp.pop %v3516
    %v3519 = vmul.f32 1.0, %v3518
    %v3520 = vrcp.pop %v3517
    %v3521 = vmul.f32 1.0, %v3520
    %v3522 = vxor.u32 %v3503, 2147483648
    %v3523 = vxor.u32 %v3507, 2147483648
    %v3524 = vmul.f32 %v3522, 1.442695
    %v3525 = vpow.pop %v3524
    %v3526 = vmul.f32 %v3523, 1.442695
    %v3527 = vpow.pop %v3526
    %v3528 = vadd.f32 %v3525, 1.0
    %v3529 = vadd.f32 %v3527, 1.0
    %v3530 = vrcp.pop %v3528
    %v3531 = vmul.f32 1.0, %v3530
    %v3532 = vrcp.pop %v3529
    %v3533 = vmul.f32 1.0, %v3532
    %v3534 = vtanh.pop %v3504
    %v3535 = vtanh.pop %v3508
    %v3536 = vxor.u32 %v3505, 2147483648
    %v3537 = vxor.u32 %v3509, 2147483648
    %v3538 = vmul.f32 %v3536, 1.442695
    %v3539 = vpow.pop %v3538
    %v3540 = vmul.f32 %v3537, 1.442695
    %v3541 = vpow.pop %v3540
    %v3542 = vadd.f32 %v3539, 1.0
    %v3543 = vadd.f32 %v3541, 1.0
    %v3544 = vrcp.pop %v3542
    %v3545 = vmul.f32 1.0, %v3544
    %v3546 = vrcp.pop %v3543
    %v3547 = vmul.f32 1.0, %v3546
    %v3548 = vmul.f32 %v3531, %v3171
    %v3549 = vmul.f32 %v3533, %v3172
    %v3550 = vmul.f32 %v3519, %v3534
    %v3551 = vmul.f32 %v3521, %v3535
    %v3552 = vadd.f32 %v3548, %v3550
    %v3553 = vadd.f32 %v3549, %v3551
    %v3554 = vtanh.pop %v3552
    %v3555 = vtanh.pop %v3553
    %v3556 = vmul.f32 %v3545, %v3554
    %v3557 = vmul.f32 %v3547, %v3555
    %v3558 = vpack.c.bf16 %v3557, %v3556
    %3559 = vmatprep.subr.bf16.mxu0 %v1078
    %3560 = vmatpush1.bf16.msra.mxu0 %v1077
    %3561 = vmatprep.subr.bf16.mxu0 %v1074
    %3562 = vmatpush1.bf16.msra.mxu0 %v1073
    %3563 = vmatprep.subr.bf16.mxu0 %v1070
    %3564 = vmatpush1.bf16.msra.mxu0 %v1069
    %3565 = vmatprep.subr.bf16.mxu0 %v1066
    %3566 = vmatpush1.bf16.msra.mxu0 %v1065
    %3567 = vmatprep.subr.bf16.mxu0 %v1062
    %3568 = vmatpush1.bf16.msra.mxu0 %v1061
    %3569 = vmatprep.subr.bf16.mxu0 %v1058
    %3570 = vmatpush1.bf16.msra.mxu0 %v1057
    %3571 = vmatprep.subr.bf16.mxu0 %v1054
    %3572 = vmatpush1.bf16.msra.mxu0 %v1053
    %3573 = vmatprep.subr.bf16.mxu0 %v1050
    %3574 = vmatpush1.bf16.msra.mxu0 %v1049
    %3575 = vmatprep.subr.bf16.mxu0 0
    %3576 = vmatpush2.bf16.msra.mxu0 0
    %3577 = vmatprep.subr.bf16.mxu0 0
    %3578 = vmatpush2.bf16.msra.mxu0 0
    %3579 = vmatprep.subr.bf16.mxu0 0
    %3580 = vmatpush2.bf16.msra.mxu0 0
    %3581 = vmatprep.subr.bf16.mxu0 0
    %3582 = vmatpush2.bf16.msra.mxu0 0
    %3583 = vmatprep.subr.bf16.mxu0 0
    %3584 = vmatpush2.bf16.msra.mxu0 0
    %3585 = vmatprep.subr.bf16.mxu0 0
    %3586 = vmatpush2.bf16.msra.mxu0 0
    %3587 = vmatprep.subr.bf16.mxu0 0
    %3588 = vmatpush2.bf16.msra.mxu0 0
    %3589 = vmatprep.subr.bf16.mxu0 0
    %3590 = vmatpush2.bf16.msra.mxu0 0
    %3591 = vmatprep.mubr.bf16.mxu0 0
    %3592 = vmatmul.mubr.bf16.gmra.mxu0 %v3558
    %v3593 = vpop.f32.mrf.mxu0
    %v3594 = vadd.f32 %v936, %v3593
    %v3595 = vpop.f32.mrf.mxu0
    %v3596 = vadd.f32 %v940, %v3595
    %v3597 = vpop.f32.mrf.mxu0
    %v3598 = vadd.f32 %v936, %v3597
    %v3599 = vpop.f32.mrf.mxu0
    %v3600 = vadd.f32 %v940, %v3599
    %3601 = vdwg.mxu0
    %3602 = vmatprep.subr.bf16.mxu0 %v1080
    %3603 = vmatpush1.bf16.msra.mxu0 %v1079
    %3604 = vmatprep.subr.bf16.mxu0 %v1076
    %3605 = vmatpush1.bf16.msra.mxu0 %v1075
    %3606 = vmatprep.subr.bf16.mxu0 %v1072
    %3607 = vmatpush1.bf16.msra.mxu0 %v1071
    %3608 = vmatprep.subr.bf16.mxu0 %v1068
    %3609 = vmatpush1.bf16.msra.mxu0 %v1067
    %3610 = vmatprep.subr.bf16.mxu0 %v1064
    %3611 = vmatpush1.bf16.msra.mxu0 %v1063
    %3612 = vmatprep.subr.bf16.mxu0 %v1060
    %3613 = vmatpush1.bf16.msra.mxu0 %v1059
    %3614 = vmatprep.subr.bf16.mxu0 %v1056
    %3615 = vmatpush1.bf16.msra.mxu0 %v1055
    %3616 = vmatprep.subr.bf16.mxu0 %v1052
    %3617 = vmatpush1.bf16.msra.mxu0 %v1051
    %3618 = vmatprep.subr.bf16.mxu0 0
    %3619 = vmatpush2.bf16.msra.mxu0 0
    %3620 = vmatprep.subr.bf16.mxu0 0
    %3621 = vmatpush2.bf16.msra.mxu0 0
    %3622 = vmatprep.subr.bf16.mxu0 0
    %3623 = vmatpush2.bf16.msra.mxu0 0
    %3624 = vmatprep.subr.bf16.mxu0 0
    %3625 = vmatpush2.bf16.msra.mxu0 0
    %3626 = vmatprep.subr.bf16.mxu0 0
    %3627 = vmatpush2.bf16.msra.mxu0 0
    %3628 = vmatprep.subr.bf16.mxu0 0
    %3629 = vmatpush2.bf16.msra.mxu0 0
    %3630 = vmatprep.subr.bf16.mxu0 0
    %3631 = vmatpush2.bf16.msra.mxu0 0
    %3632 = vmatprep.subr.bf16.mxu0 0
    %3633 = vmatpush2.bf16.msra.mxu0 0
    %3634 = vmatprep.mubr.bf16.mxu0 0
    %3635 = vmatmul.mubr.bf16.gmra.mxu0 %v3558
    %v3636 = vpop.f32.mrf.mxu0
    %v3637 = vadd.f32 %v944, %v3636
    %v3638 = vpop.f32.mrf.mxu0
    %v3639 = vadd.f32 %v948, %v3638
    %v3640 = vpop.f32.mrf.mxu0
    %v3641 = vadd.f32 %v944, %v3640
    %v3642 = vpop.f32.mrf.mxu0
    %v3643 = vadd.f32 %v948, %v3642
    %3644 = vdwg.mxu0
    %3645 = vmatprep.subr.bf16.mxu0 %v1324
    %3646 = vmatpush1.bf16.msra.mxu0 %v1323
    %3647 = vmatprep.subr.bf16.mxu0 %v1320
    %3648 = vmatpush1.bf16.msra.mxu0 %v1319
    %3649 = vmatprep.subr.bf16.mxu0 %v1316
    %3650 = vmatpush1.bf16.msra.mxu0 %v1315
    %3651 = vmatprep.subr.bf16.mxu0 %v1312
    %3652 = vmatpush1.bf16.msra.mxu0 %v1311
    %3653 = vmatprep.subr.bf16.mxu0 %v1308
    %3654 = vmatpush1.bf16.msra.mxu0 %v1307
    %3655 = vmatprep.subr.bf16.mxu0 %v1304
    %3656 = vmatpush1.bf16.msra.mxu0 %v1303
    %3657 = vmatprep.subr.bf16.mxu0 %v1300
    %3658 = vmatpush1.bf16.msra.mxu0 %v1299
    %3659 = vmatprep.subr.bf16.mxu0 %v1296
    %3660 = vmatpush1.bf16.msra.mxu0 %v1295
    %3661 = vmatprep.subr.bf16.mxu0 0
    %3662 = vmatpush2.bf16.msra.mxu0 0
    %3663 = vmatprep.subr.bf16.mxu0 0
    %3664 = vmatpush2.bf16.msra.mxu0 0
    %3665 = vmatprep.subr.bf16.mxu0 0
    %3666 = vmatpush2.bf16.msra.mxu0 0
    %3667 = vmatprep.subr.bf16.mxu0 0
    %3668 = vmatpush2.bf16.msra.mxu0 0
    %3669 = vmatprep.subr.bf16.mxu0 0
    %3670 = vmatpush2.bf16.msra.mxu0 0
    %3671 = vmatprep.subr.bf16.mxu0 0
    %3672 = vmatpush2.bf16.msra.mxu0 0
    %3673 = vmatprep.subr.bf16.mxu0 0
    %3674 = vmatpush2.bf16.msra.mxu0 0
    %3675 = vmatprep.subr.bf16.mxu0 0
    %3676 = vmatpush2.bf16.msra.mxu0 0
    %3677 = vmatprep.mubr.bf16.mxu0 0
    %3678 = vmatmul.mubr.bf16.gmra.mxu0 %v3406
    %v3679 = vpop.f32.mrf.mxu0
    %v3680 = vadd.f32 0.0, %v3679
    %v3681 = vpop.f32.mrf.mxu0
    %v3682 = vadd.f32 0.0, %v3681
    %v3683 = vpop.f32.mrf.mxu0
    %v3684 = vadd.f32 0.0, %v3683
    %v3685 = vpop.f32.mrf.mxu0
    %v3686 = vadd.f32 0.0, %v3685
    %3687 = vdwg.mxu0
    %3688 = vmatprep.subr.bf16.mxu0 %v1326
    %3689 = vmatpush1.bf16.msra.mxu0 %v1325
    %3690 = vmatprep.subr.bf16.mxu0 %v1322
    %3691 = vmatpush1.bf16.msra.mxu0 %v1321
    %3692 = vmatprep.subr.bf16.mxu0 %v1318
    %3693 = vmatpush1.bf16.msra.mxu0 %v1317
    %3694 = vmatprep.subr.bf16.mxu0 %v1314
    %3695 = vmatpush1.bf16.msra.mxu0 %v1313
    %3696 = vmatprep.subr.bf16.mxu0 %v1310
    %3697 = vmatpush1.bf16.msra.mxu0 %v1309
    %3698 = vmatprep.subr.bf16.mxu0 %v1306
    %3699 = vmatpush1.bf16.msra.mxu0 %v1305
    %3700 = vmatprep.subr.bf16.mxu0 %v1302
    %3701 = vmatpush1.bf16.msra.mxu0 %v1301
    %3702 = vmatprep.subr.bf16.mxu0 %v1298
    %3703 = vmatpush1.bf16.msra.mxu0 %v1297
    %3704 = vmatprep.subr.bf16.mxu0 0
    %3705 = vmatpush2.bf16.msra.mxu0 0
    %3706 = vmatprep.subr.bf16.mxu0 0
    %3707 = vmatpush2.bf16.msra.mxu0 0
    %3708 = vmatprep.subr.bf16.mxu0 0
    %3709 = vmatpush2.bf16.msra.mxu0 0
    %3710 = vmatprep.subr.bf16.mxu0 0
    %3711 = vmatpush2.bf16.msra.mxu0 0
    %3712 = vmatprep.subr.bf16.mxu0 0
    %3713 = vmatpush2.bf16.msra.mxu0 0
    %3714 = vmatprep.subr.bf16.mxu0 0
    %3715 = vmatpush2.bf16.msra.mxu0 0
    %3716 = vmatprep.subr.bf16.mxu0 0
    %3717 = vmatpush2.bf16.msra.mxu0 0
    %3718 = vmatprep.subr.bf16.mxu0 0
    %3719 = vmatpush2.bf16.msra.mxu0 0
    %3720 = vmatprep.mubr.bf16.mxu0 0
    %3721 = vmatmul.mubr.bf16.gmra.mxu0 %v3406
    %v3722 = vpop.f32.mrf.mxu0
    %v3723 = vadd.f32 0.0, %v3722
    %v3724 = vpop.f32.mrf.mxu0
    %v3725 = vadd.f32 0.0, %v3724
    %v3726 = vpop.f32.mrf.mxu0
    %v3727 = vadd.f32 0.0, %v3726
    %v3728 = vpop.f32.mrf.mxu0
    %v3729 = vadd.f32 0.0, %v3728
    %3730 = vdwg.mxu0
    %v3731 = vadd.f32 %v3594, %v3680
    %v3732 = vadd.f32 %v3596, %v3682
    %v3733 = vadd.f32 %v3637, %v3723
    %v3734 = vadd.f32 %v3639, %v3725
    %v3735 = vadd.f32 %v3598, %v3684
    %v3736 = vadd.f32 %v3600, %v3686
    %v3737 = vadd.f32 %v3641, %v3727
    %v3738 = vadd.f32 %v3643, %v3729
    %v3739 = vxor.u32 %v3731, 2147483648
    %v3740 = vxor.u32 %v3735, 2147483648
    %v3741 = vmul.f32 %v3739, 1.442695
    %v3742 = vpow.pop %v3741
    %v3743 = vmul.f32 %v3740, 1.442695
    %v3744 = vpow.pop %v3743
    %v3745 = vadd.f32 %v3742, 1.0
    %v3746 = vadd.f32 %v3744, 1.0
    %v3747 = vrcp.pop %v3745
    %v3748 = vmul.f32 1.0, %v3747
    %v3749 = vrcp.pop %v3746
    %v3750 = vmul.f32 1.0, %v3749
    %v3751 = vxor.u32 %v3732, 2147483648
    %v3752 = vxor.u32 %v3736, 2147483648
    %v3753 = vmul.f32 %v3751, 1.442695
    %v3754 = vpow.pop %v3753
    %v3755 = vmul.f32 %v3752, 1.442695
    %v3756 = vpow.pop %v3755
    %v3757 = vadd.f32 %v3754, 1.0
    %v3758 = vadd.f32 %v3756, 1.0
    %v3759 = vrcp.pop %v3757
    %v3760 = vmul.f32 1.0, %v3759
    %v3761 = vrcp.pop %v3758
    %v3762 = vmul.f32 1.0, %v3761
    %v3763 = vtanh.pop %v3733
    %v3764 = vtanh.pop %v3737
    %v3765 = vxor.u32 %v3734, 2147483648
    %v3766 = vxor.u32 %v3738, 2147483648
    %v3767 = vmul.f32 %v3765, 1.442695
    %v3768 = vpow.pop %v3767
    %v3769 = vmul.f32 %v3766, 1.442695
    %v3770 = vpow.pop %v3769
    %v3771 = vadd.f32 %v3768, 1.0
    %v3772 = vadd.f32 %v3770, 1.0
    %v3773 = vrcp.pop %v3771
    %v3774 = vmul.f32 1.0, %v3773
    %v3775 = vrcp.pop %v3772
    %v3776 = vmul.f32 1.0, %v3775
    %v3777 = vmul.f32 %v3760, %v3400
    %v3778 = vmul.f32 %v3762, %v3401
    %v3779 = vmul.f32 %v3748, %v3763
    %v3780 = vmul.f32 %v3750, %v3764
    %v3781 = vadd.f32 %v3777, %v3779
    %v3782 = vadd.f32 %v3778, %v3780
    %v3783 = vtanh.pop %v3781
    %v3784 = vtanh.pop %v3782
    %v3785 = vmul.f32 %v3774, %v3783
    %v3786 = vmul.f32 %v3776, %v3784
    %v3787 = vpack.c.bf16 %v3786, %v3785
    %v3789 = vunpack.c.l.b16 %v3787
    %v3790 = vunpack.c.h.b16 %v3787
    %v3791 = vpack.c.b16 %v3789, %v3789
    %v3792 = vpack.c.b16 %v3790, %v3790
    %3795 = vst [vmem:[#allocation2 + $0x18] sm:$0xf] %v3791
    %3796 = vst [vmem:[#allocation2 + $0x38] sm:$0xf] %v3792
    %3797 = vmatprep.subr.bf16.mxu0 %v754
    %3798 = vmatpush1.bf16.msra.mxu0 %v753
    %3799 = vmatprep.subr.bf16.mxu0 %v750
    %3800 = vmatpush1.bf16.msra.mxu0 %v749
    %3801 = vmatprep.subr.bf16.mxu0 %v746
    %3802 = vmatpush1.bf16.msra.mxu0 %v745
    %3803 = vmatprep.subr.bf16.mxu0 %v742
    %3804 = vmatpush1.bf16.msra.mxu0 %v741
    %3805 = vmatprep.subr.bf16.mxu0 %v738
    %3806 = vmatpush1.bf16.msra.mxu0 %v737
    %3807 = vmatprep.subr.bf16.mxu0 %v734
    %3808 = vmatpush1.bf16.msra.mxu0 %v733
    %3809 = vmatprep.subr.bf16.mxu0 %v730
    %3810 = vmatpush1.bf16.msra.mxu0 %v729
    %3811 = vmatprep.subr.bf16.mxu0 %v726
    %3812 = vmatpush1.bf16.msra.mxu0 %v725
    %3813 = vmatprep.subr.bf16.mxu0 0
    %3814 = vmatpush2.bf16.msra.mxu0 0
    %3815 = vmatprep.subr.bf16.mxu0 0
    %3816 = vmatpush2.bf16.msra.mxu0 0
    %3817 = vmatprep.subr.bf16.mxu0 0
    %3818 = vmatpush2.bf16.msra.mxu0 0
    %3819 = vmatprep.subr.bf16.mxu0 0
    %3820 = vmatpush2.bf16.msra.mxu0 0
    %3821 = vmatprep.subr.bf16.mxu0 0
    %3822 = vmatpush2.bf16.msra.mxu0 0
    %3823 = vmatprep.subr.bf16.mxu0 0
    %3824 = vmatpush2.bf16.msra.mxu0 0
    %3825 = vmatprep.subr.bf16.mxu0 0
    %3826 = vmatpush2.bf16.msra.mxu0 0
    %3827 = vmatprep.subr.bf16.mxu0 0
    %3828 = vmatpush2.bf16.msra.mxu0 0
    %3829 = vmatprep.mubr.bf16.mxu0 0
    %3830 = vmatmul.mubr.bf16.gmra.mxu0 %v3558
    %v3831 = vpop.f32.mrf.mxu0
    %v3832 = vadd.f32 0.0, %v3831
    %v3833 = vpop.f32.mrf.mxu0
    %v3834 = vadd.f32 0.0, %v3833
    %v3835 = vpop.f32.mrf.mxu0
    %v3836 = vadd.f32 0.0, %v3835
    %v3837 = vpop.f32.mrf.mxu0
    %v3838 = vadd.f32 0.0, %v3837
    %3839 = vdwg.mxu0
    %3840 = vmatprep.subr.bf16.mxu0 %v756
    %3841 = vmatpush1.bf16.msra.mxu0 %v755
    %3842 = vmatprep.subr.bf16.mxu0 %v752
    %3843 = vmatpush1.bf16.msra.mxu0 %v751
    %3844 = vmatprep.subr.bf16.mxu0 %v748
    %3845 = vmatpush1.bf16.msra.mxu0 %v747
    %3846 = vmatprep.subr.bf16.mxu0 %v744
    %3847 = vmatpush1.bf16.msra.mxu0 %v743
    %3848 = vmatprep.subr.bf16.mxu0 %v740
    %3849 = vmatpush1.bf16.msra.mxu0 %v739
    %3850 = vmatprep.subr.bf16.mxu0 %v736
    %3851 = vmatpush1.bf16.msra.mxu0 %v735
    %3852 = vmatprep.subr.bf16.mxu0 %v732
    %3853 = vmatpush1.bf16.msra.mxu0 %v731
    %3854 = vmatprep.subr.bf16.mxu0 %v728
    %3855 = vmatpush1.bf16.msra.mxu0 %v727
    %3856 = vmatprep.subr.bf16.mxu0 0
    %3857 = vmatpush2.bf16.msra.mxu0 0
    %3858 = vmatprep.subr.bf16.mxu0 0
    %3859 = vmatpush2.bf16.msra.mxu0 0
    %3860 = vmatprep.subr.bf16.mxu0 0
    %3861 = vmatpush2.bf16.msra.mxu0 0
    %3862 = vmatprep.subr.bf16.mxu0 0
    %3863 = vmatpush2.bf16.msra.mxu0 0
    %3864 = vmatprep.subr.bf16.mxu0 0
    %3865 = vmatpush2.bf16.msra.mxu0 0
    %3866 = vmatprep.subr.bf16.mxu0 0
    %3867 = vmatpush2.bf16.msra.mxu0 0
    %3868 = vmatprep.subr.bf16.mxu0 0
    %3869 = vmatpush2.bf16.msra.mxu0 0
    %3870 = vmatprep.subr.bf16.mxu0 0
    %3871 = vmatpush2.bf16.msra.mxu0 0
    %3872 = vmatprep.mubr.bf16.mxu0 0
    %3873 = vmatmul.mubr.bf16.gmra.mxu0 %v3558
    %v3874 = vpop.f32.mrf.mxu0
    %v3875 = vadd.f32 0.0, %v3874
    %v3876 = vpop.f32.mrf.mxu0
    %v3877 = vadd.f32 0.0, %v3876
    %v3878 = vpop.f32.mrf.mxu0
    %v3879 = vadd.f32 0.0, %v3878
    %v3880 = vpop.f32.mrf.mxu0
    %v3881 = vadd.f32 0.0, %v3880
    %3882 = vdwg.mxu0
    %v3883 = vadd.f32 %v508, %v3832
    %v3884 = vadd.f32 %v510, %v3834
    %v3885 = vadd.f32 %v621, %v3875
    %v3886 = vadd.f32 %v623, %v3877
    %v3887 = vadd.f32 %v512, %v3836
    %v3888 = vadd.f32 %v514, %v3838
    %v3889 = vadd.f32 %v625, %v3879
    %v3890 = vadd.f32 %v627, %v3881
    %v3891 = vxor.u32 %v3883, 2147483648
    %v3892 = vxor.u32 %v3887, 2147483648
    %v3893 = vmul.f32 %v3891, 1.442695
    %v3894 = vpow.pop %v3893
    %v3895 = vmul.f32 %v3892, 1.442695
    %v3896 = vpow.pop %v3895
    %v3897 = vadd.f32 %v3894, 1.0
    %v3898 = vadd.f32 %v3896, 1.0
    %v3899 = vrcp.pop %v3897
    %v3900 = vmul.f32 1.0, %v3899
    %v3901 = vrcp.pop %v3898
    %v3902 = vmul.f32 1.0, %v3901
    %v3903 = vxor.u32 %v3884, 2147483648
    %v3904 = vxor.u32 %v3888, 2147483648
    %v3905 = vmul.f32 %v3903, 1.442695
    %v3906 = vpow.pop %v3905
    %v3907 = vmul.f32 %v3904, 1.442695
    %v3908 = vpow.pop %v3907
    %v3909 = vadd.f32 %v3906, 1.0
    %v3910 = vadd.f32 %v3908, 1.0
    %v3911 = vrcp.pop %v3909
    %v3912 = vmul.f32 1.0, %v3911
    %v3913 = vrcp.pop %v3910
    %v3914 = vmul.f32 1.0, %v3913
    %v3915 = vtanh.pop %v3885
    %v3916 = vtanh.pop %v3889
    %v3917 = vxor.u32 %v3886, 2147483648
    %v3918 = vxor.u32 %v3890, 2147483648
    %v3919 = vmul.f32 %v3917, 1.442695
    %v3920 = vpow.pop %v3919
    %v3921 = vmul.f32 %v3918, 1.442695
    %v3922 = vpow.pop %v3921
    %v3923 = vadd.f32 %v3920, 1.0
    %v3924 = vadd.f32 %v3922, 1.0
    %v3925 = vrcp.pop %v3923
    %v3926 = vmul.f32 1.0, %v3925
    %v3927 = vrcp.pop %v3924
    %v3928 = vmul.f32 1.0, %v3927
    %v3929 = vmul.f32 %v3912, %v3552
    %v3930 = vmul.f32 %v3914, %v3553
    %v3931 = vmul.f32 %v3900, %v3915
    %v3932 = vmul.f32 %v3902, %v3916
    %v3933 = vadd.f32 %v3929, %v3931
    %v3934 = vadd.f32 %v3930, %v3932
    %v3935 = vtanh.pop %v3933
    %v3936 = vtanh.pop %v3934
    %v3937 = vmul.f32 %v3926, %v3935
    %v3938 = vmul.f32 %v3928, %v3936
    %v3939 = vpack.c.bf16 %v3938, %v3937
    %3940 = vmatprep.subr.bf16.mxu0 %v1078
    %3941 = vmatpush1.bf16.msra.mxu0 %v1077
    %3942 = vmatprep.subr.bf16.mxu0 %v1074
    %3943 = vmatpush1.bf16.msra.mxu0 %v1073
    %3944 = vmatprep.subr.bf16.mxu0 %v1070
    %3945 = vmatpush1.bf16.msra.mxu0 %v1069
    %3946 = vmatprep.subr.bf16.mxu0 %v1066
    %3947 = vmatpush1.bf16.msra.mxu0 %v1065
    %3948 = vmatprep.subr.bf16.mxu0 %v1062
    %3949 = vmatpush1.bf16.msra.mxu0 %v1061
    %3950 = vmatprep.subr.bf16.mxu0 %v1058
    %3951 = vmatpush1.bf16.msra.mxu0 %v1057
    %3952 = vmatprep.subr.bf16.mxu0 %v1054
    %3953 = vmatpush1.bf16.msra.mxu0 %v1053
    %3954 = vmatprep.subr.bf16.mxu0 %v1050
    %3955 = vmatpush1.bf16.msra.mxu0 %v1049
    %3956 = vmatprep.subr.bf16.mxu0 0
    %3957 = vmatpush2.bf16.msra.mxu0 0
    %3958 = vmatprep.subr.bf16.mxu0 0
    %3959 = vmatpush2.bf16.msra.mxu0 0
    %3960 = vmatprep.subr.bf16.mxu0 0
    %3961 = vmatpush2.bf16.msra.mxu0 0
    %3962 = vmatprep.subr.bf16.mxu0 0
    %3963 = vmatpush2.bf16.msra.mxu0 0
    %3964 = vmatprep.subr.bf16.mxu0 0
    %3965 = vmatpush2.bf16.msra.mxu0 0
    %3966 = vmatprep.subr.bf16.mxu0 0
    %3967 = vmatpush2.bf16.msra.mxu0 0
    %3968 = vmatprep.subr.bf16.mxu0 0
    %3969 = vmatpush2.bf16.msra.mxu0 0
    %3970 = vmatprep.subr.bf16.mxu0 0
    %3971 = vmatpush2.bf16.msra.mxu0 0
    %3972 = vmatprep.mubr.bf16.mxu0 0
    %3973 = vmatmul.mubr.bf16.gmra.mxu0 %v3939
    %v3974 = vpop.f32.mrf.mxu0
    %v3975 = vadd.f32 %v936, %v3974
    %v3976 = vpop.f32.mrf.mxu0
    %v3977 = vadd.f32 %v940, %v3976
    %v3978 = vpop.f32.mrf.mxu0
    %v3979 = vadd.f32 %v936, %v3978
    %v3980 = vpop.f32.mrf.mxu0
    %v3981 = vadd.f32 %v940, %v3980
    %3982 = vdwg.mxu0
    %3983 = vmatprep.subr.bf16.mxu0 %v1080
    %3984 = vmatpush1.bf16.msra.mxu0 %v1079
    %3985 = vmatprep.subr.bf16.mxu0 %v1076
    %3986 = vmatpush1.bf16.msra.mxu0 %v1075
    %3987 = vmatprep.subr.bf16.mxu0 %v1072
    %3988 = vmatpush1.bf16.msra.mxu0 %v1071
    %3989 = vmatprep.subr.bf16.mxu0 %v1068
    %3990 = vmatpush1.bf16.msra.mxu0 %v1067
    %3991 = vmatprep.subr.bf16.mxu0 %v1064
    %3992 = vmatpush1.bf16.msra.mxu0 %v1063
    %3993 = vmatprep.subr.bf16.mxu0 %v1060
    %3994 = vmatpush1.bf16.msra.mxu0 %v1059
    %3995 = vmatprep.subr.bf16.mxu0 %v1056
    %3996 = vmatpush1.bf16.msra.mxu0 %v1055
    %3997 = vmatprep.subr.bf16.mxu0 %v1052
    %3998 = vmatpush1.bf16.msra.mxu0 %v1051
    %3999 = vmatprep.subr.bf16.mxu0 0
    %4000 = vmatpush2.bf16.msra.mxu0 0
    %4001 = vmatprep.subr.bf16.mxu0 0
    %4002 = vmatpush2.bf16.msra.mxu0 0
    %4003 = vmatprep.subr.bf16.mxu0 0
    %4004 = vmatpush2.bf16.msra.mxu0 0
    %4005 = vmatprep.subr.bf16.mxu0 0
    %4006 = vmatpush2.bf16.msra.mxu0 0
    %4007 = vmatprep.subr.bf16.mxu0 0
    %4008 = vmatpush2.bf16.msra.mxu0 0
    %4009 = vmatprep.subr.bf16.mxu0 0
    %4010 = vmatpush2.bf16.msra.mxu0 0
    %4011 = vmatprep.subr.bf16.mxu0 0
    %4012 = vmatpush2.bf16.msra.mxu0 0
    %4013 = vmatprep.subr.bf16.mxu0 0
    %4014 = vmatpush2.bf16.msra.mxu0 0
    %4015 = vmatprep.mubr.bf16.mxu0 0
    %4016 = vmatmul.mubr.bf16.gmra.mxu0 %v3939
    %v4017 = vpop.f32.mrf.mxu0
    %v4018 = vadd.f32 %v944, %v4017
    %v4019 = vpop.f32.mrf.mxu0
    %v4020 = vadd.f32 %v948, %v4019
    %v4021 = vpop.f32.mrf.mxu0
    %v4022 = vadd.f32 %v944, %v4021
    %v4023 = vpop.f32.mrf.mxu0
    %v4024 = vadd.f32 %v948, %v4023
    %4025 = vdwg.mxu0
    %4026 = vmatprep.subr.bf16.mxu0 %v1324
    %4027 = vmatpush1.bf16.msra.mxu0 %v1323
    %4028 = vmatprep.subr.bf16.mxu0 %v1320
    %4029 = vmatpush1.bf16.msra.mxu0 %v1319
    %4030 = vmatprep.subr.bf16.mxu0 %v1316
    %4031 = vmatpush1.bf16.msra.mxu0 %v1315
    %4032 = vmatprep.subr.bf16.mxu0 %v1312
    %4033 = vmatpush1.bf16.msra.mxu0 %v1311
    %4034 = vmatprep.subr.bf16.mxu0 %v1308
    %4035 = vmatpush1.bf16.msra.mxu0 %v1307
    %4036 = vmatprep.subr.bf16.mxu0 %v1304
    %4037 = vmatpush1.bf16.msra.mxu0 %v1303
    %4038 = vmatprep.subr.bf16.mxu0 %v1300
    %4039 = vmatpush1.bf16.msra.mxu0 %v1299
    %4040 = vmatprep.subr.bf16.mxu0 %v1296
    %4041 = vmatpush1.bf16.msra.mxu0 %v1295
    %4042 = vmatprep.subr.bf16.mxu0 0
    %4043 = vmatpush2.bf16.msra.mxu0 0
    %4044 = vmatprep.subr.bf16.mxu0 0
    %4045 = vmatpush2.bf16.msra.mxu0 0
    %4046 = vmatprep.subr.bf16.mxu0 0
    %4047 = vmatpush2.bf16.msra.mxu0 0
    %4048 = vmatprep.subr.bf16.mxu0 0
    %4049 = vmatpush2.bf16.msra.mxu0 0
    %4050 = vmatprep.subr.bf16.mxu0 0
    %4051 = vmatpush2.bf16.msra.mxu0 0
    %4052 = vmatprep.subr.bf16.mxu0 0
    %4053 = vmatpush2.bf16.msra.mxu0 0
    %4054 = vmatprep.subr.bf16.mxu0 0
    %4055 = vmatpush2.bf16.msra.mxu0 0
    %4056 = vmatprep.subr.bf16.mxu0 0
    %4057 = vmatpush2.bf16.msra.mxu0 0
    %4058 = vmatprep.mubr.bf16.mxu0 0
    %4059 = vmatmul.mubr.bf16.gmra.mxu0 %v3787
    %v4060 = vpop.f32.mrf.mxu0
    %v4061 = vadd.f32 0.0, %v4060
    %v4062 = vpop.f32.mrf.mxu0
    %v4063 = vadd.f32 0.0, %v4062
    %v4064 = vpop.f32.mrf.mxu0
    %v4065 = vadd.f32 0.0, %v4064
    %v4066 = vpop.f32.mrf.mxu0
    %v4067 = vadd.f32 0.0, %v4066
    %4068 = vdwg.mxu0
    %4069 = vmatprep.subr.bf16.mxu0 %v1326
    %4070 = vmatpush1.bf16.msra.mxu0 %v1325
    %4071 = vmatprep.subr.bf16.mxu0 %v1322
    %4072 = vmatpush1.bf16.msra.mxu0 %v1321
    %4073 = vmatprep.subr.bf16.mxu0 %v1318
    %4074 = vmatpush1.bf16.msra.mxu0 %v1317
    %4075 = vmatprep.subr.bf16.mxu0 %v1314
    %4076 = vmatpush1.bf16.msra.mxu0 %v1313
    %4077 = vmatprep.subr.bf16.mxu0 %v1310
    %4078 = vmatpush1.bf16.msra.mxu0 %v1309
    %4079 = vmatprep.subr.bf16.mxu0 %v1306
    %4080 = vmatpush1.bf16.msra.mxu0 %v1305
    %4081 = vmatprep.subr.bf16.mxu0 %v1302
    %4082 = vmatpush1.bf16.msra.mxu0 %v1301
    %4083 = vmatprep.subr.bf16.mxu0 %v1298
    %4084 = vmatpush1.bf16.msra.mxu0 %v1297
    %4085 = vmatprep.subr.bf16.mxu0 0
    %4086 = vmatpush2.bf16.msra.mxu0 0
    %4087 = vmatprep.subr.bf16.mxu0 0
    %4088 = vmatpush2.bf16.msra.mxu0 0
    %4089 = vmatprep.subr.bf16.mxu0 0
    %4090 = vmatpush2.bf16.msra.mxu0 0
    %4091 = vmatprep.subr.bf16.mxu0 0
    %4092 = vmatpush2.bf16.msra.mxu0 0
    %4093 = vmatprep.subr.bf16.mxu0 0
    %4094 = vmatpush2.bf16.msra.mxu0 0
    %4095 = vmatprep.subr.bf16.mxu0 0
    %4096 = vmatpush2.bf16.msra.mxu0 0
    %4097 = vmatprep.subr.bf16.mxu0 0
    %4098 = vmatpush2.bf16.msra.mxu0 0
    %4099 = vmatprep.subr.bf16.mxu0 0
    %4100 = vmatpush2.bf16.msra.mxu0 0
    %4101 = vmatprep.mubr.bf16.mxu0 0
    %4102 = vmatmul.mubr.bf16.gmra.mxu0 %v3787
    %v4103 = vpop.f32.mrf.mxu0
    %v4104 = vadd.f32 0.0, %v4103
    %v4105 = vpop.f32.mrf.mxu0
    %v4106 = vadd.f32 0.0, %v4105
    %v4107 = vpop.f32.mrf.mxu0
    %v4108 = vadd.f32 0.0, %v4107
    %v4109 = vpop.f32.mrf.mxu0
    %v4110 = vadd.f32 0.0, %v4109
    %4111 = vdwg.mxu0
    %v4112 = vadd.f32 %v3975, %v4061
    %v4113 = vadd.f32 %v3977, %v4063
    %v4114 = vadd.f32 %v4018, %v4104
    %v4115 = vadd.f32 %v4020, %v4106
    %v4116 = vadd.f32 %v3979, %v4065
    %v4117 = vadd.f32 %v3981, %v4067
    %v4118 = vadd.f32 %v4022, %v4108
    %v4119 = vadd.f32 %v4024, %v4110
    %v4120 = vxor.u32 %v4112, 2147483648
    %v4121 = vxor.u32 %v4116, 2147483648
    %v4122 = vmul.f32 %v4120, 1.442695
    %v4123 = vpow.pop %v4122
    %v4124 = vmul.f32 %v4121, 1.442695
    %v4125 = vpow.pop %v4124
    %v4126 = vadd.f32 %v4123, 1.0
    %v4127 = vadd.f32 %v4125, 1.0
    %v4128 = vrcp.pop %v4126
    %v4129 = vmul.f32 1.0, %v4128
    %v4130 = vrcp.pop %v4127
    %v4131 = vmul.f32 1.0, %v4130
    %v4132 = vxor.u32 %v4113, 2147483648
    %v4133 = vxor.u32 %v4117, 2147483648
    %v4134 = vmul.f32 %v4132, 1.442695
    %v4135 = vpow.pop %v4134
    %v4136 = vmul.f32 %v4133, 1.442695
    %v4137 = vpow.pop %v4136
    %v4138 = vadd.f32 %v4135, 1.0
    %v4139 = vadd.f32 %v4137, 1.0
    %v4140 = vrcp.pop %v4138
    %v4141 = vmul.f32 1.0, %v4140
    %v4142 = vrcp.pop %v4139
    %v4143 = vmul.f32 1.0, %v4142
    %v4144 = vtanh.pop %v4114
    %v4145 = vtanh.pop %v4118
    %v4146 = vxor.u32 %v4115, 2147483648
    %v4147 = vxor.u32 %v4119, 2147483648
    %v4148 = vmul.f32 %v4146, 1.442695
    %v4149 = vpow.pop %v4148
    %v4150 = vmul.f32 %v4147, 1.442695
    %v4151 = vpow.pop %v4150
    %v4152 = vadd.f32 %v4149, 1.0
    %v4153 = vadd.f32 %v4151, 1.0
    %v4154 = vrcp.pop %v4152
    %v4155 = vmul.f32 1.0, %v4154
    %v4156 = vrcp.pop %v4153
    %v4157 = vmul.f32 1.0, %v4156
    %v4158 = vmul.f32 %v4141, %v3781
    %v4159 = vmul.f32 %v4143, %v3782
    %v4160 = vmul.f32 %v4129, %v4144
    %v4161 = vmul.f32 %v4131, %v4145
    %v4162 = vadd.f32 %v4158, %v4160
    %v4163 = vadd.f32 %v4159, %v4161
    %v4164 = vtanh.pop %v4162
    %v4165 = vtanh.pop %v4163
    %v4166 = vmul.f32 %v4155, %v4164
    %v4167 = vmul.f32 %v4157, %v4165
    %v4168 = vpack.c.bf16 %v4167, %v4166
    %v4170 = vunpack.c.l.b16 %v4168
    %v4171 = vunpack.c.h.b16 %v4168
    %v4172 = vpack.c.b16 %v4170, %v4170
    %v4173 = vpack.c.b16 %v4171, %v4171
    %4176 = vst [vmem:[#allocation2 + $0x1c] sm:$0xf] %v4172
    %4177 = vst [vmem:[#allocation2 + $0x3c] sm:$0xf] %v4173
    %v4178 = vld [vmem:[#allocation2] sm:$0xff]
    %v4179 = vld [vmem:[#allocation2 + $0x8] sm:$0xff]
    %v4180 = vld [vmem:[#allocation2 + $0x10] sm:$0xff]
    %v4181 = vld [vmem:[#allocation2 + $0x18] sm:$0xff]
    %v4182 = vld [vmem:[#allocation2 + $0x20] sm:$0xff]
    %v4183 = vld [vmem:[#allocation2 + $0x28] sm:$0xff]
    %v4184 = vld [vmem:[#allocation2 + $0x30] sm:$0xff]
    %v4185 = vld [vmem:[#allocation2 + $0x38] sm:$0xff]
    %v4186 = vld [vmem:[#allocation9] sm:$0xff]
    %v4187 = vld [vmem:[#allocation9 + $0x8] sm:$0xff]
    %v4188 = vld [vmem:[#allocation9 + $0x10] sm:$0xff]
    %v4189 = vld [vmem:[#allocation9 + $0x18] sm:$0xff]
    %v4190 = vld [vmem:[#allocation9 + $0x20] sm:$0xff]
    %v4191 = vld [vmem:[#allocation9 + $0x28] sm:$0xff]
    %v4192 = vld [vmem:[#allocation9 + $0x30] sm:$0xff]
    %v4193 = vld [vmem:[#allocation9 + $0x38] sm:$0xff]
    %v4194 = vld [vmem:[#allocation9 + $0x40] sm:$0xff]
    %v4195 = vld [vmem:[#allocation9 + $0x48] sm:$0xff]
    %v4196 = vld [vmem:[#allocation9 + $0x50] sm:$0xff]
    %v4197 = vld [vmem:[#allocation9 + $0x58] sm:$0xff]
    %v4198 = vld [vmem:[#allocation9 + $0x60] sm:$0xff]
    %v4199 = vld [vmem:[#allocation9 + $0x68] sm:$0xff]
    %v4200 = vld [vmem:[#allocation9 + $0x70] sm:$0xff]
    %v4201 = vld [vmem:[#allocation9 + $0x78] sm:$0xff]
    %v4202 = vld [vmem:[#allocation9 + $0x80] sm:$0xff]
    %v4203 = vld [vmem:[#allocation9 + $0x88] sm:$0xff]
    %v4204 = vld [vmem:[#allocation9 + $0x90] sm:$0xff]
    %v4205 = vld [vmem:[#allocation9 + $0x98] sm:$0xff]
    %v4206 = vld [vmem:[#allocation9 + $0xa0] sm:$0xff]
    %v4207 = vld [vmem:[#allocation9 + $0xa8] sm:$0xff]
    %v4208 = vld [vmem:[#allocation9 + $0xb0] sm:$0xff]
    %v4209 = vld [vmem:[#allocation9 + $0xb8] sm:$0xff]
    %v4210 = vld [vmem:[#allocation9 + $0xc0] sm:$0xff]
    %v4211 = vld [vmem:[#allocation9 + $0xc8] sm:$0xff]
    %v4212 = vld [vmem:[#allocation9 + $0xd0] sm:$0xff]
    %v4213 = vld [vmem:[#allocation9 + $0xd8] sm:$0xff]
    %v4214 = vld [vmem:[#allocation9 + $0xe0] sm:$0xff]
    %v4215 = vld [vmem:[#allocation9 + $0xe8] sm:$0xff]
    %v4216 = vld [vmem:[#allocation9 + $0xf0] sm:$0xff]
    %v4217 = vld [vmem:[#allocation9 + $0xf8] sm:$0xff]
    %v4218 = vld [vmem:[#allocation9 + $0x100] sm:$0xff]
    %v4219 = vld [vmem:[#allocation9 + $0x108] sm:$0xff]
    %v4220 = vld [vmem:[#allocation9 + $0x110] sm:$0xff]
    %v4221 = vld [vmem:[#allocation9 + $0x118] sm:$0xff]
    %v4222 = vld [vmem:[#allocation9 + $0x120] sm:$0xff]
    %v4223 = vld [vmem:[#allocation9 + $0x128] sm:$0xff]
    %v4224 = vld [vmem:[#allocation9 + $0x130] sm:$0xff]
    %v4225 = vld [vmem:[#allocation9 + $0x138] sm:$0xff]
    %v4226 = vld [vmem:[#allocation9 + $0x140] sm:$0xff]
    %v4227 = vld [vmem:[#allocation9 + $0x148] sm:$0xff]
    %v4228 = vld [vmem:[#allocation9 + $0x150] sm:$0xff]
    %v4229 = vld [vmem:[#allocation9 + $0x158] sm:$0xff]
    %v4230 = vld [vmem:[#allocation9 + $0x160] sm:$0xff]
    %v4231 = vld [vmem:[#allocation9 + $0x168] sm:$0xff]
    %v4232 = vld [vmem:[#allocation9 + $0x170] sm:$0xff]
    %v4233 = vld [vmem:[#allocation9 + $0x178] sm:$0xff]
    %v4234 = vld [vmem:[#allocation9 + $0x180] sm:$0xff]
    %v4235 = vld [vmem:[#allocation9 + $0x188] sm:$0xff]
    %v4236 = vld [vmem:[#allocation9 + $0x190] sm:$0xff]
    %v4237 = vld [vmem:[#allocation9 + $0x198] sm:$0xff]
    %v4238 = vld [vmem:[#allocation9 + $0x1a0] sm:$0xff]
    %v4239 = vld [vmem:[#allocation9 + $0x1a8] sm:$0xff]
    %v4240 = vld [vmem:[#allocation9 + $0x1b0] sm:$0xff]
    %v4241 = vld [vmem:[#allocation9 + $0x1b8] sm:$0xff]
    %v4242 = vld [vmem:[#allocation9 + $0x1c0] sm:$0xff]
    %v4243 = vld [vmem:[#allocation9 + $0x1c8] sm:$0xff]
    %v4244 = vld [vmem:[#allocation9 + $0x1d0] sm:$0xff]
    %v4245 = vld [vmem:[#allocation9 + $0x1d8] sm:$0xff]
    %v4246 = vld [vmem:[#allocation9 + $0x1e0] sm:$0xff]
    %v4247 = vld [vmem:[#allocation9 + $0x1e8] sm:$0xff]
    %v4248 = vld [vmem:[#allocation9 + $0x1f0] sm:$0xff]
    %v4249 = vld [vmem:[#allocation9 + $0x1f8] sm:$0xff]
    %v4250 = vld [vmem:[#allocation9 + $0x200] sm:$0xff]
    %v4251 = vld [vmem:[#allocation9 + $0x208] sm:$0xff]
    %v4252 = vld [vmem:[#allocation9 + $0x210] sm:$0xff]
    %v4253 = vld [vmem:[#allocation9 + $0x218] sm:$0xff]
    %v4254 = vld [vmem:[#allocation9 + $0x220] sm:$0xff]
    %v4255 = vld [vmem:[#allocation9 + $0x228] sm:$0xff]
    %v4256 = vld [vmem:[#allocation9 + $0x230] sm:$0xff]
    %v4257 = vld [vmem:[#allocation9 + $0x238] sm:$0xff]
    %v4258 = vld [vmem:[#allocation9 + $0x240] sm:$0xff]
    %v4259 = vld [vmem:[#allocation9 + $0x248] sm:$0xff]
    %v4260 = vld [vmem:[#allocation9 + $0x250] sm:$0xff]
    %v4261 = vld [vmem:[#allocation9 + $0x258] sm:$0xff]
    %v4262 = vld [vmem:[#allocation9 + $0x260] sm:$0xff]
    %v4263 = vld [vmem:[#allocation9 + $0x268] sm:$0xff]
    %v4264 = vld [vmem:[#allocation9 + $0x270] sm:$0xff]
    %v4265 = vld [vmem:[#allocation9 + $0x278] sm:$0xff]
    %v4266 = vld [vmem:[#allocation9 + $0x280] sm:$0xff]
    %v4267 = vld [vmem:[#allocation9 + $0x288] sm:$0xff]
    %v4268 = vld [vmem:[#allocation9 + $0x290] sm:$0xff]
    %v4269 = vld [vmem:[#allocation9 + $0x298] sm:$0xff]
    %v4270 = vld [vmem:[#allocation9 + $0x2a0] sm:$0xff]
    %v4271 = vld [vmem:[#allocation9 + $0x2a8] sm:$0xff]
    %v4272 = vld [vmem:[#allocation9 + $0x2b0] sm:$0xff]
    %v4273 = vld [vmem:[#allocation9 + $0x2b8] sm:$0xff]
    %v4274 = vld [vmem:[#allocation9 + $0x2c0] sm:$0xff]
    %v4275 = vld [vmem:[#allocation9 + $0x2c8] sm:$0xff]
    %v4276 = vld [vmem:[#allocation9 + $0x2d0] sm:$0xff]
    %v4277 = vld [vmem:[#allocation9 + $0x2d8] sm:$0xff]
    %v4278 = vld [vmem:[#allocation9 + $0x2e0] sm:$0xff]
    %v4279 = vld [vmem:[#allocation9 + $0x2e8] sm:$0xff]
    %v4280 = vld [vmem:[#allocation9 + $0x2f0] sm:$0xff]
    %v4281 = vld [vmem:[#allocation9 + $0x2f8] sm:$0xff]
    %v4282 = vld [vmem:[#allocation9 + $0x300] sm:$0xff]
    %v4283 = vld [vmem:[#allocation9 + $0x308] sm:$0xff]
    %v4284 = vld [vmem:[#allocation9 + $0x310] sm:$0xff]
    %v4285 = vld [vmem:[#allocation9 + $0x318] sm:$0xff]
    %v4286 = vld [vmem:[#allocation9 + $0x320] sm:$0xff]
    %v4287 = vld [vmem:[#allocation9 + $0x328] sm:$0xff]
    %v4288 = vld [vmem:[#allocation9 + $0x330] sm:$0xff]
    %v4289 = vld [vmem:[#allocation9 + $0x338] sm:$0xff]
    %v4290 = vld [vmem:[#allocation9 + $0x340] sm:$0xff]
    %v4291 = vld [vmem:[#allocation9 + $0x348] sm:$0xff]
    %v4292 = vld [vmem:[#allocation9 + $0x350] sm:$0xff]
    %v4293 = vld [vmem:[#allocation9 + $0x358] sm:$0xff]
    %v4294 = vld [vmem:[#allocation9 + $0x360] sm:$0xff]
    %v4295 = vld [vmem:[#allocation9 + $0x368] sm:$0xff]
    %v4296 = vld [vmem:[#allocation9 + $0x370] sm:$0xff]
    %v4297 = vld [vmem:[#allocation9 + $0x378] sm:$0xff]
    %v4298 = vld [vmem:[#allocation9 + $0x380] sm:$0xff]
    %v4299 = vld [vmem:[#allocation9 + $0x388] sm:$0xff]
    %v4300 = vld [vmem:[#allocation9 + $0x390] sm:$0xff]
    %v4301 = vld [vmem:[#allocation9 + $0x398] sm:$0xff]
    %v4302 = vld [vmem:[#allocation9 + $0x3a0] sm:$0xff]
    %v4303 = vld [vmem:[#allocation9 + $0x3a8] sm:$0xff]
    %v4304 = vld [vmem:[#allocation9 + $0x3b0] sm:$0xff]
    %v4305 = vld [vmem:[#allocation9 + $0x3b8] sm:$0xff]
    %v4306 = vld [vmem:[#allocation9 + $0x3c0] sm:$0xff]
    %v4307 = vld [vmem:[#allocation9 + $0x3c8] sm:$0xff]
    %v4308 = vld [vmem:[#allocation9 + $0x3d0] sm:$0xff]
    %v4309 = vld [vmem:[#allocation9 + $0x3d8] sm:$0xff]
    %v4310 = vld [vmem:[#allocation9 + $0x3e0] sm:$0xff]
    %v4311 = vld [vmem:[#allocation9 + $0x3e8] sm:$0xff]
    %v4312 = vld [vmem:[#allocation9 + $0x3f0] sm:$0xff]
    %v4313 = vld [vmem:[#allocation9 + $0x3f8] sm:$0xff]
    %v4314 = vld [vmem:[%s8] sm:$0x3]
    %v4316 = vlaneseq
    %v4317 = vshrl.u32 %v4316, 7
    %v4318 = vsub.s32 0, %v4317
    %v4319 = vrot.slane %v4314, %v4318
    %v4320 = vlaneseq
    %v4321 = vshrl.u32 %v4320, 7
    %v4322 = vsub.s32 1, %v4321
    %v4323 = vrot.slane %v4314, %v4322
    %v4334 = vunpack.c.l.b16 %v4178
    %v4335 = vunpack.c.h.b16 %v4178
    %v4336 = vunpack.c.l.b16 %v4179
    %v4337 = vunpack.c.h.b16 %v4179
    %v4338 = vunpack.c.l.b16 %v4180
    %v4339 = vunpack.c.h.b16 %v4180
    %v4340 = vunpack.c.l.b16 %v4181
    %v4341 = vunpack.c.h.b16 %v4181
    %v4342 = vunpack.c.l.b16 %v4182
    %v4343 = vunpack.c.h.b16 %v4182
    %v4344 = vunpack.c.l.b16 %v4183
    %v4345 = vunpack.c.h.b16 %v4183
    %v4346 = vunpack.c.l.b16 %v4184
    %v4347 = vunpack.c.h.b16 %v4184
    %v4348 = vunpack.c.l.b16 %v4185
    %v4349 = vunpack.c.h.b16 %v4185
    %v4350 = vpack.c.b16 %v4342, %v4334
    %v4351 = vpack.c.b16 %v4343, %v4335
    %v4352 = vpack.c.b16 %v4344, %v4336
    %v4353 = vpack.c.b16 %v4345, %v4337
    %v4354 = vpack.c.b16 %v4346, %v4338
    %v4355 = vpack.c.b16 %v4347, %v4339
    %v4356 = vpack.c.b16 %v4348, %v4340
    %v4357 = vpack.c.b16 %v4349, %v4341
    %v4494 = vunpack.c.l.b16 %v4186
    %v4495 = vunpack.c.h.b16 %v4186
    %v4496 = vunpack.c.l.b16 %v4187
    %v4497 = vunpack.c.h.b16 %v4187
    %v4498 = vunpack.c.l.b16 %v4188
    %v4499 = vunpack.c.h.b16 %v4188
    %v4500 = vunpack.c.l.b16 %v4189
    %v4501 = vunpack.c.h.b16 %v4189
    %v4502 = vunpack.c.l.b16 %v4190
    %v4503 = vunpack.c.h.b16 %v4190
    %v4504 = vunpack.c.l.b16 %v4191
    %v4505 = vunpack.c.h.b16 %v4191
    %v4506 = vunpack.c.l.b16 %v4192
    %v4507 = vunpack.c.h.b16 %v4192
    %v4508 = vunpack.c.l.b16 %v4193
    %v4509 = vunpack.c.h.b16 %v4193
    %v4510 = vunpack.c.l.b16 %v4194
    %v4511 = vunpack.c.h.b16 %v4194
    %v4512 = vunpack.c.l.b16 %v4195
    %v4513 = vunpack.c.h.b16 %v4195
    %v4514 = vunpack.c.l.b16 %v4196
    %v4515 = vunpack.c.h.b16 %v4196
    %v4516 = vunpack.c.l.b16 %v4197
    %v4517 = vunpack.c.h.b16 %v4197
    %v4518 = vunpack.c.l.b16 %v4198
    %v4519 = vunpack.c.h.b16 %v4198
    %v4520 = vunpack.c.l.b16 %v4199
    %v4521 = vunpack.c.h.b16 %v4199
    %v4522 = vunpack.c.l.b16 %v4200
    %v4523 = vunpack.c.h.b16 %v4200
    %v4524 = vunpack.c.l.b16 %v4201
    %v4525 = vunpack.c.h.b16 %v4201
    %v4526 = vunpack.c.l.b16 %v4202
    %v4527 = vunpack.c.h.b16 %v4202
    %v4528 = vunpack.c.l.b16 %v4203
    %v4529 = vunpack.c.h.b16 %v4203
    %v4530 = vunpack.c.l.b16 %v4204
    %v4531 = vunpack.c.h.b16 %v4204
    %v4532 = vunpack.c.l.b16 %v4205
    %v4533 = vunpack.c.h.b16 %v4205
    %v4534 = vunpack.c.l.b16 %v4206
    %v4535 = vunpack.c.h.b16 %v4206
    %v4536 = vunpack.c.l.b16 %v4207
    %v4537 = vunpack.c.h.b16 %v4207
    %v4538 = vunpack.c.l.b16 %v4208
    %v4539 = vunpack.c.h.b16 %v4208
    %v4540 = vunpack.c.l.b16 %v4209
    %v4541 = vunpack.c.h.b16 %v4209
    %v4542 = vunpack.c.l.b16 %v4210
    %v4543 = vunpack.c.h.b16 %v4210
    %v4544 = vunpack.c.l.b16 %v4211
    %v4545 = vunpack.c.h.b16 %v4211
    %v4546 = vunpack.c.l.b16 %v4212
    %v4547 = vunpack.c.h.b16 %v4212
    %v4548 = vunpack.c.l.b16 %v4213
    %v4549 = vunpack.c.h.b16 %v4213
    %v4550 = vunpack.c.l.b16 %v4214
    %v4551 = vunpack.c.h.b16 %v4214
    %v4552 = vunpack.c.l.b16 %v4215
    %v4553 = vunpack.c.h.b16 %v4215
    %v4554 = vunpack.c.l.b16 %v4216
    %v4555 = vunpack.c.h.b16 %v4216
    %v4556 = vunpack.c.l.b16 %v4217
    %v4557 = vunpack.c.h.b16 %v4217
    %v4558 = vunpack.c.l.b16 %v4218
    %v4559 = vunpack.c.h.b16 %v4218
    %v4560 = vunpack.c.l.b16 %v4219
    %v4561 = vunpack.c.h.b16 %v4219
    %v4562 = vunpack.c.l.b16 %v4220
    %v4563 = vunpack.c.h.b16 %v4220
    %v4564 = vunpack.c.l.b16 %v4221
    %v4565 = vunpack.c.h.b16 %v4221
    %v4566 = vunpack.c.l.b16 %v4222
    %v4567 = vunpack.c.h.b16 %v4222
    %v4568 = vunpack.c.l.b16 %v4223
    %v4569 = vunpack.c.h.b16 %v4223
    %v4570 = vunpack.c.l.b16 %v4224
    %v4571 = vunpack.c.h.b16 %v4224
    %v4572 = vunpack.c.l.b16 %v4225
    %v4573 = vunpack.c.h.b16 %v4225
    %v4574 = vunpack.c.l.b16 %v4226
    %v4575 = vunpack.c.h.b16 %v4226
    %v4576 = vunpack.c.l.b16 %v4227
    %v4577 = vunpack.c.h.b16 %v4227
    %v4578 = vunpack.c.l.b16 %v4228
    %v4579 = vunpack.c.h.b16 %v4228
    %v4580 = vunpack.c.l.b16 %v4229
    %v4581 = vunpack.c.h.b16 %v4229
    %v4582 = vunpack.c.l.b16 %v4230
    %v4583 = vunpack.c.h.b16 %v4230
    %v4584 = vunpack.c.l.b16 %v4231
    %v4585 = vunpack.c.h.b16 %v4231
    %v4586 = vunpack.c.l.b16 %v4232
    %v4587 = vunpack.c.h.b16 %v4232
    %v4588 = vunpack.c.l.b16 %v4233
    %v4589 = vunpack.c.h.b16 %v4233
    %v4590 = vunpack.c.l.b16 %v4234
    %v4591 = vunpack.c.h.b16 %v4234
    %v4592 = vunpack.c.l.b16 %v4235
    %v4593 = vunpack.c.h.b16 %v4235
    %v4594 = vunpack.c.l.b16 %v4236
    %v4595 = vunpack.c.h.b16 %v4236
    %v4596 = vunpack.c.l.b16 %v4237
    %v4597 = vunpack.c.h.b16 %v4237
    %v4598 = vunpack.c.l.b16 %v4238
    %v4599 = vunpack.c.h.b16 %v4238
    %v4600 = vunpack.c.l.b16 %v4239
    %v4601 = vunpack.c.h.b16 %v4239
    %v4602 = vunpack.c.l.b16 %v4240
    %v4603 = vunpack.c.h.b16 %v4240
    %v4604 = vunpack.c.l.b16 %v4241
    %v4605 = vunpack.c.h.b16 %v4241
    %v4606 = vunpack.c.l.b16 %v4242
    %v4607 = vunpack.c.h.b16 %v4242
    %v4608 = vunpack.c.l.b16 %v4243
    %v4609 = vunpack.c.h.b16 %v4243
    %v4610 = vunpack.c.l.b16 %v4244
    %v4611 = vunpack.c.h.b16 %v4244
    %v4612 = vunpack.c.l.b16 %v4245
    %v4613 = vunpack.c.h.b16 %v4245
    %v4614 = vunpack.c.l.b16 %v4246
    %v4615 = vunpack.c.h.b16 %v4246
    %v4616 = vunpack.c.l.b16 %v4247
    %v4617 = vunpack.c.h.b16 %v4247
    %v4618 = vunpack.c.l.b16 %v4248
    %v4619 = vunpack.c.h.b16 %v4248
    %v4620 = vunpack.c.l.b16 %v4249
    %v4621 = vunpack.c.h.b16 %v4249
    %v4622 = vunpack.c.l.b16 %v4250
    %v4623 = vunpack.c.h.b16 %v4250
    %v4624 = vunpack.c.l.b16 %v4251
    %v4625 = vunpack.c.h.b16 %v4251
    %v4626 = vunpack.c.l.b16 %v4252
    %v4627 = vunpack.c.h.b16 %v4252
    %v4628 = vunpack.c.l.b16 %v4253
    %v4629 = vunpack.c.h.b16 %v4253
    %v4630 = vunpack.c.l.b16 %v4254
    %v4631 = vunpack.c.h.b16 %v4254
    %v4632 = vunpack.c.l.b16 %v4255
    %v4633 = vunpack.c.h.b16 %v4255
    %v4634 = vunpack.c.l.b16 %v4256
    %v4635 = vunpack.c.h.b16 %v4256
    %v4636 = vunpack.c.l.b16 %v4257
    %v4637 = vunpack.c.h.b16 %v4257
    %v4638 = vunpack.c.l.b16 %v4258
    %v4639 = vunpack.c.h.b16 %v4258
    %v4640 = vunpack.c.l.b16 %v4259
    %v4641 = vunpack.c.h.b16 %v4259
    %v4642 = vunpack.c.l.b16 %v4260
    %v4643 = vunpack.c.h.b16 %v4260
    %v4644 = vunpack.c.l.b16 %v4261
    %v4645 = vunpack.c.h.b16 %v4261
    %v4646 = vunpack.c.l.b16 %v4262
    %v4647 = vunpack.c.h.b16 %v4262
    %v4648 = vunpack.c.l.b16 %v4263
    %v4649 = vunpack.c.h.b16 %v4263
    %v4650 = vunpack.c.l.b16 %v4264
    %v4651 = vunpack.c.h.b16 %v4264
    %v4652 = vunpack.c.l.b16 %v4265
    %v4653 = vunpack.c.h.b16 %v4265
    %v4654 = vunpack.c.l.b16 %v4266
    %v4655 = vunpack.c.h.b16 %v4266
    %v4656 = vunpack.c.l.b16 %v4267
    %v4657 = vunpack.c.h.b16 %v4267
    %v4658 = vunpack.c.l.b16 %v4268
    %v4659 = vunpack.c.h.b16 %v4268
    %v4660 = vunpack.c.l.b16 %v4269
    %v4661 = vunpack.c.h.b16 %v4269
    %v4662 = vunpack.c.l.b16 %v4270
    %v4663 = vunpack.c.h.b16 %v4270
    %v4664 = vunpack.c.l.b16 %v4271
    %v4665 = vunpack.c.h.b16 %v4271
    %v4666 = vunpack.c.l.b16 %v4272
    %v4667 = vunpack.c.h.b16 %v4272
    %v4668 = vunpack.c.l.b16 %v4273
    %v4669 = vunpack.c.h.b16 %v4273
    %v4670 = vunpack.c.l.b16 %v4274
    %v4671 = vunpack.c.h.b16 %v4274
    %v4672 = vunpack.c.l.b16 %v4275
    %v4673 = vunpack.c.h.b16 %v4275
    %v4674 = vunpack.c.l.b16 %v4276
    %v4675 = vunpack.c.h.b16 %v4276
    %v4676 = vunpack.c.l.b16 %v4277
    %v4677 = vunpack.c.h.b16 %v4277
    %v4678 = vunpack.c.l.b16 %v4278
    %v4679 = vunpack.c.h.b16 %v4278
    %v4680 = vunpack.c.l.b16 %v4279
    %v4681 = vunpack.c.h.b16 %v4279
    %v4682 = vunpack.c.l.b16 %v4280
    %v4683 = vunpack.c.h.b16 %v4280
    %v4684 = vunpack.c.l.b16 %v4281
    %v4685 = vunpack.c.h.b16 %v4281
    %v4686 = vunpack.c.l.b16 %v4282
    %v4687 = vunpack.c.h.b16 %v4282
    %v4688 = vunpack.c.l.b16 %v4283
    %v4689 = vunpack.c.h.b16 %v4283
    %v4690 = vunpack.c.l.b16 %v4284
    %v4691 = vunpack.c.h.b16 %v4284
    %v4692 = vunpack.c.l.b16 %v4285
    %v4693 = vunpack.c.h.b16 %v4285
    %v4694 = vunpack.c.l.b16 %v4286
    %v4695 = vunpack.c.h.b16 %v4286
    %v4696 = vunpack.c.l.b16 %v4287
    %v4697 = vunpack.c.h.b16 %v4287
    %v4698 = vunpack.c.l.b16 %v4288
    %v4699 = vunpack.c.h.b16 %v4288
    %v4700 = vunpack.c.l.b16 %v4289
    %v4701 = vunpack.c.h.b16 %v4289
    %v4702 = vunpack.c.l.b16 %v4290
    %v4703 = vunpack.c.h.b16 %v4290
    %v4704 = vunpack.c.l.b16 %v4291
    %v4705 = vunpack.c.h.b16 %v4291
    %v4706 = vunpack.c.l.b16 %v4292
    %v4707 = vunpack.c.h.b16 %v4292
    %v4708 = vunpack.c.l.b16 %v4293
    %v4709 = vunpack.c.h.b16 %v4293
    %v4710 = vunpack.c.l.b16 %v4294
    %v4711 = vunpack.c.h.b16 %v4294
    %v4712 = vunpack.c.l.b16 %v4295
    %v4713 = vunpack.c.h.b16 %v4295
    %v4714 = vunpack.c.l.b16 %v4296
    %v4715 = vunpack.c.h.b16 %v4296
    %v4716 = vunpack.c.l.b16 %v4297
    %v4717 = vunpack.c.h.b16 %v4297
    %v4718 = vunpack.c.l.b16 %v4298
    %v4719 = vunpack.c.h.b16 %v4298
    %v4720 = vunpack.c.l.b16 %v4299
    %v4721 = vunpack.c.h.b16 %v4299
    %v4722 = vunpack.c.l.b16 %v4300
    %v4723 = vunpack.c.h.b16 %v4300
    %v4724 = vunpack.c.l.b16 %v4301
    %v4725 = vunpack.c.h.b16 %v4301
    %v4726 = vunpack.c.l.b16 %v4302
    %v4727 = vunpack.c.h.b16 %v4302
    %v4728 = vunpack.c.l.b16 %v4303
    %v4729 = vunpack.c.h.b16 %v4303
    %v4730 = vunpack.c.l.b16 %v4304
    %v4731 = vunpack.c.h.b16 %v4304
    %v4732 = vunpack.c.l.b16 %v4305
    %v4733 = vunpack.c.h.b16 %v4305
    %v4734 = vunpack.c.l.b16 %v4306
    %v4735 = vunpack.c.h.b16 %v4306
    %v4736 = vunpack.c.l.b16 %v4307
    %v4737 = vunpack.c.h.b16 %v4307
    %v4738 = vunpack.c.l.b16 %v4308
    %v4739 = vunpack.c.h.b16 %v4308
    %v4740 = vunpack.c.l.b16 %v4309
    %v4741 = vunpack.c.h.b16 %v4309
    %v4742 = vunpack.c.l.b16 %v4310
    %v4743 = vunpack.c.h.b16 %v4310
    %v4744 = vunpack.c.l.b16 %v4311
    %v4745 = vunpack.c.h.b16 %v4311
    %v4746 = vunpack.c.l.b16 %v4312
    %v4747 = vunpack.c.h.b16 %v4312
    %v4748 = vunpack.c.l.b16 %v4313
    %v4749 = vunpack.c.h.b16 %v4313
    %v4750 = vpack.c.b16 %v4496, %v4494
    %v4751 = vpack.c.b16 %v4497, %v4495
    %v4752 = vpack.c.b16 %v4500, %v4498
    %v4753 = vpack.c.b16 %v4501, %v4499
    %v4754 = vpack.c.b16 %v4504, %v4502
    %v4755 = vpack.c.b16 %v4505, %v4503
    %v4756 = vpack.c.b16 %v4508, %v4506
    %v4757 = vpack.c.b16 %v4509, %v4507
    %v4758 = vpack.c.b16 %v4512, %v4510
    %v4759 = vpack.c.b16 %v4513, %v4511
    %v4760 = vpack.c.b16 %v4516, %v4514
    %v4761 = vpack.c.b16 %v4517, %v4515
    %v4762 = vpack.c.b16 %v4520, %v4518
    %v4763 = vpack.c.b16 %v4521, %v4519
    %v4764 = vpack.c.b16 %v4524, %v4522
    %v4765 = vpack.c.b16 %v4525, %v4523
    %v4766 = vpack.c.b16 %v4528, %v4526
    %v4767 = vpack.c.b16 %v4529, %v4527
    %v4768 = vpack.c.b16 %v4532, %v4530
    %v4769 = vpack.c.b16 %v4533, %v4531
    %v4770 = vpack.c.b16 %v4536, %v4534
    %v4771 = vpack.c.b16 %v4537, %v4535
    %v4772 = vpack.c.b16 %v4540, %v4538
    %v4773 = vpack.c.b16 %v4541, %v4539
    %v4774 = vpack.c.b16 %v4544, %v4542
    %v4775 = vpack.c.b16 %v4545, %v4543
    %v4776 = vpack.c.b16 %v4548, %v4546
    %v4777 = vpack.c.b16 %v4549, %v4547
    %v4778 = vpack.c.b16 %v4552, %v4550
    %v4779 = vpack.c.b16 %v4553, %v4551
    %v4780 = vpack.c.b16 %v4556, %v4554
    %v4781 = vpack.c.b16 %v4557, %v4555
    %v4782 = vpack.c.b16 %v4560, %v4558
    %v4783 = vpack.c.b16 %v4561, %v4559
    %v4784 = vpack.c.b16 %v4564, %v4562
    %v4785 = vpack.c.b16 %v4565, %v4563
    %v4786 = vpack.c.b16 %v4568, %v4566
    %v4787 = vpack.c.b16 %v4569, %v4567
    %v4788 = vpack.c.b16 %v4572, %v4570
    %v4789 = vpack.c.b16 %v4573, %v4571
    %v4790 = vpack.c.b16 %v4576, %v4574
    %v4791 = vpack.c.b16 %v4577, %v4575
    %v4792 = vpack.c.b16 %v4580, %v4578
    %v4793 = vpack.c.b16 %v4581, %v4579
    %v4794 = vpack.c.b16 %v4584, %v4582
    %v4795 = vpack.c.b16 %v4585, %v4583
    %v4796 = vpack.c.b16 %v4588, %v4586
    %v4797 = vpack.c.b16 %v4589, %v4587
    %v4798 = vpack.c.b16 %v4592, %v4590
    %v4799 = vpack.c.b16 %v4593, %v4591
    %v4800 = vpack.c.b16 %v4596, %v4594
    %v4801 = vpack.c.b16 %v4597, %v4595
    %v4802 = vpack.c.b16 %v4600, %v4598
    %v4803 = vpack.c.b16 %v4601, %v4599
    %v4804 = vpack.c.b16 %v4604, %v4602
    %v4805 = vpack.c.b16 %v4605, %v4603
    %v4806 = vpack.c.b16 %v4608, %v4606
    %v4807 = vpack.c.b16 %v4609, %v4607
    %v4808 = vpack.c.b16 %v4612, %v4610
    %v4809 = vpack.c.b16 %v4613, %v4611
    %v4810 = vpack.c.b16 %v4616, %v4614
    %v4811 = vpack.c.b16 %v4617, %v4615
    %v4812 = vpack.c.b16 %v4620, %v4618
    %v4813 = vpack.c.b16 %v4621, %v4619
    %v4814 = vpack.c.b16 %v4624, %v4622
    %v4815 = vpack.c.b16 %v4625, %v4623
    %v4816 = vpack.c.b16 %v4628, %v4626
    %v4817 = vpack.c.b16 %v4629, %v4627
    %v4818 = vpack.c.b16 %v4632, %v4630
    %v4819 = vpack.c.b16 %v4633, %v4631
    %v4820 = vpack.c.b16 %v4636, %v4634
    %v4821 = vpack.c.b16 %v4637, %v4635
    %v4822 = vpack.c.b16 %v4640, %v4638
    %v4823 = vpack.c.b16 %v4641, %v4639
    %v4824 = vpack.c.b16 %v4644, %v4642
    %v4825 = vpack.c.b16 %v4645, %v4643
    %v4826 = vpack.c.b16 %v4648, %v4646
    %v4827 = vpack.c.b16 %v4649, %v4647
    %v4828 = vpack.c.b16 %v4652, %v4650
    %v4829 = vpack.c.b16 %v4653, %v4651
    %v4830 = vpack.c.b16 %v4656, %v4654
    %v4831 = vpack.c.b16 %v4657, %v4655
    %v4832 = vpack.c.b16 %v4660, %v4658
    %v4833 = vpack.c.b16 %v4661, %v4659
    %v4834 = vpack.c.b16 %v4664, %v4662
    %v4835 = vpack.c.b16 %v4665, %v4663
    %v4836 = vpack.c.b16 %v4668, %v4666
    %v4837 = vpack.c.b16 %v4669, %v4667
    %v4838 = vpack.c.b16 %v4672, %v4670
    %v4839 = vpack.c.b16 %v4673, %v4671
    %v4840 = vpack.c.b16 %v4676, %v4674
    %v4841 = vpack.c.b16 %v4677, %v4675
    %v4842 = vpack.c.b16 %v4680, %v4678
    %v4843 = vpack.c.b16 %v4681, %v4679
    %v4844 = vpack.c.b16 %v4684, %v4682
    %v4845 = vpack.c.b16 %v4685, %v4683
    %v4846 = vpack.c.b16 %v4688, %v4686
    %v4847 = vpack.c.b16 %v4689, %v4687
    %v4848 = vpack.c.b16 %v4692, %v4690
    %v4849 = vpack.c.b16 %v4693, %v4691
    %v4850 = vpack.c.b16 %v4696, %v4694
    %v4851 = vpack.c.b16 %v4697, %v4695
    %v4852 = vpack.c.b16 %v4700, %v4698
    %v4853 = vpack.c.b16 %v4701, %v4699
    %v4854 = vpack.c.b16 %v4704, %v4702
    %v4855 = vpack.c.b16 %v4705, %v4703
    %v4856 = vpack.c.b16 %v4708, %v4706
    %v4857 = vpack.c.b16 %v4709, %v4707
    %v4858 = vpack.c.b16 %v4712, %v4710
    %v4859 = vpack.c.b16 %v4713, %v4711
    %v4860 = vpack.c.b16 %v4716, %v4714
    %v4861 = vpack.c.b16 %v4717, %v4715
    %v4862 = vpack.c.b16 %v4720, %v4718
    %v4863 = vpack.c.b16 %v4721, %v4719
    %v4864 = vpack.c.b16 %v4724, %v4722
    %v4865 = vpack.c.b16 %v4725, %v4723
    %v4866 = vpack.c.b16 %v4728, %v4726
    %v4867 = vpack.c.b16 %v4729, %v4727
    %v4868 = vpack.c.b16 %v4732, %v4730
    %v4869 = vpack.c.b16 %v4733, %v4731
    %v4870 = vpack.c.b16 %v4736, %v4734
    %v4871 = vpack.c.b16 %v4737, %v4735
    %v4872 = vpack.c.b16 %v4740, %v4738
    %v4873 = vpack.c.b16 %v4741, %v4739
    %v4874 = vpack.c.b16 %v4744, %v4742
    %v4875 = vpack.c.b16 %v4745, %v4743
    %v4876 = vpack.c.b16 %v4748, %v4746
    %v4877 = vpack.c.b16 %v4749, %v4747
    %5006 = vmatprep.subr.bf16.mxu0 %v4765
    %5007 = vmatpush1.bf16.msra.mxu0 %v4764
    %5008 = vmatprep.subr.bf16.mxu0 %v4763
    %5009 = vmatpush1.bf16.msra.mxu0 %v4762
    %5010 = vmatprep.subr.bf16.mxu0 %v4761
    %5011 = vmatpush1.bf16.msra.mxu0 %v4760
    %5012 = vmatprep.subr.bf16.mxu0 %v4759
    %5013 = vmatpush1.bf16.msra.mxu0 %v4758
    %5014 = vmatprep.subr.bf16.mxu0 %v4757
    %5015 = vmatpush1.bf16.msra.mxu0 %v4756
    %5016 = vmatprep.subr.bf16.mxu0 %v4755
    %5017 = vmatpush1.bf16.msra.mxu0 %v4754
    %5018 = vmatprep.subr.bf16.mxu0 %v4753
    %5019 = vmatpush1.bf16.msra.mxu0 %v4752
    %5020 = vmatprep.subr.bf16.mxu0 %v4751
    %5021 = vmatpush1.bf16.msra.mxu0 %v4750
    %5022 = vmatprep.subr.bf16.mxu0 %v4781
    %5023 = vmatpush2.bf16.msra.mxu0 %v4780
    %5024 = vmatprep.subr.bf16.mxu0 %v4779
    %5025 = vmatpush2.bf16.msra.mxu0 %v4778
    %5026 = vmatprep.subr.bf16.mxu0 %v4777
    %5027 = vmatpush2.bf16.msra.mxu0 %v4776
    %5028 = vmatprep.subr.bf16.mxu0 %v4775
    %5029 = vmatpush2.bf16.msra.mxu0 %v4774
    %5030 = vmatprep.subr.bf16.mxu0 %v4773
    %5031 = vmatpush2.bf16.msra.mxu0 %v4772
    %5032 = vmatprep.subr.bf16.mxu0 %v4771
    %5033 = vmatpush2.bf16.msra.mxu0 %v4770
    %5034 = vmatprep.subr.bf16.mxu0 %v4769
    %5035 = vmatpush2.bf16.msra.mxu0 %v4768
    %5036 = vmatprep.subr.bf16.mxu0 %v4767
    %5037 = vmatpush2.bf16.msra.mxu0 %v4766
    %5038 = vmatprep.mubr.bf16.mxu0 %v4351
    %5039 = vmatmul.mubr.bf16.gmra.mxu0 %v4350
    %v5040 = vpop.f32.mrf.mxu0
    %v5041 = vadd.f32 %v4319, %v5040
    %v5042 = vpop.f32.mrf.mxu0
    %v5043 = vadd.f32 %v4323, %v5042
    %v5044 = vpop.f32.mrf.mxu0
    %v5045 = vadd.f32 %v4319, %v5044
    %v5046 = vpop.f32.mrf.mxu0
    %v5047 = vadd.f32 %v4323, %v5046
    %5048 = vdwg.mxu0
    %5049 = vmatprep.subr.bf16.mxu0 %v4797
    %5050 = vmatpush1.bf16.msra.mxu0 %v4796
    %5051 = vmatprep.subr.bf16.mxu0 %v4795
    %5052 = vmatpush1.bf16.msra.mxu0 %v4794
    %5053 = vmatprep.subr.bf16.mxu0 %v4793
    %5054 = vmatpush1.bf16.msra.mxu0 %v4792
    %5055 = vmatprep.subr.bf16.mxu0 %v4791
    %5056 = vmatpush1.bf16.msra.mxu0 %v4790
    %5057 = vmatprep.subr.bf16.mxu0 %v4789
    %5058 = vmatpush1.bf16.msra.mxu0 %v4788
    %5059 = vmatprep.subr.bf16.mxu0 %v4787
    %5060 = vmatpush1.bf16.msra.mxu0 %v4786
    %5061 = vmatprep.subr.bf16.mxu0 %v4785
    %5062 = vmatpush1.bf16.msra.mxu0 %v4784
    %5063 = vmatprep.subr.bf16.mxu0 %v4783
    %5064 = vmatpush1.bf16.msra.mxu0 %v4782
    %5065 = vmatprep.subr.bf16.mxu0 %v4813
    %5066 = vmatpush2.bf16.msra.mxu0 %v4812
    %5067 = vmatprep.subr.bf16.mxu0 %v4811
    %5068 = vmatpush2.bf16.msra.mxu0 %v4810
    %5069 = vmatprep.subr.bf16.mxu0 %v4809
    %5070 = vmatpush2.bf16.msra.mxu0 %v4808
    %5071 = vmatprep.subr.bf16.mxu0 %v4807
    %5072 = vmatpush2.bf16.msra.mxu0 %v4806
    %5073 = vmatprep.subr.bf16.mxu0 %v4805
    %5074 = vmatpush2.bf16.msra.mxu0 %v4804
    %5075 = vmatprep.subr.bf16.mxu0 %v4803
    %5076 = vmatpush2.bf16.msra.mxu0 %v4802
    %5077 = vmatprep.subr.bf16.mxu0 %v4801
    %5078 = vmatpush2.bf16.msra.mxu0 %v4800
    %5079 = vmatprep.subr.bf16.mxu0 %v4799
    %5080 = vmatpush2.bf16.msra.mxu0 %v4798
    %5081 = vmatprep.mubr.bf16.mxu0 %v4353
    %5082 = vmatmul.mubr.bf16.gmra.mxu0 %v4352
    %v5083 = vpop.f32.mrf.mxu0
    %v5084 = vadd.f32 %v5041, %v5083
    %v5085 = vpop.f32.mrf.mxu0
    %v5086 = vadd.f32 %v5043, %v5085
    %v5087 = vpop.f32.mrf.mxu0
    %v5088 = vadd.f32 %v5045, %v5087
    %v5089 = vpop.f32.mrf.mxu0
    %v5090 = vadd.f32 %v5047, %v5089
    %5091 = vdwg.mxu0
    %5092 = vmatprep.subr.bf16.mxu0 %v4829
    %5093 = vmatpush1.bf16.msra.mxu0 %v4828
    %5094 = vmatprep.subr.bf16.mxu0 %v4827
    %5095 = vmatpush1.bf16.msra.mxu0 %v4826
    %5096 = vmatprep.subr.bf16.mxu0 %v4825
    %5097 = vmatpush1.bf16.msra.mxu0 %v4824
    %5098 = vmatprep.subr.bf16.mxu0 %v4823
    %5099 = vmatpush1.bf16.msra.mxu0 %v4822
    %5100 = vmatprep.subr.bf16.mxu0 %v4821
    %5101 = vmatpush1.bf16.msra.mxu0 %v4820
    %5102 = vmatprep.subr.bf16.mxu0 %v4819
    %5103 = vmatpush1.bf16.msra.mxu0 %v4818
    %5104 = vmatprep.subr.bf16.mxu0 %v4817
    %5105 = vmatpush1.bf16.msra.mxu0 %v4816
    %5106 = vmatprep.subr.bf16.mxu0 %v4815
    %5107 = vmatpush1.bf16.msra.mxu0 %v4814
    %5108 = vmatprep.subr.bf16.mxu0 %v4845
    %5109 = vmatpush2.bf16.msra.mxu0 %v4844
    %5110 = vmatprep.subr.bf16.mxu0 %v4843
    %5111 = vmatpush2.bf16.msra.mxu0 %v4842
    %5112 = vmatprep.subr.bf16.mxu0 %v4841
    %5113 = vmatpush2.bf16.msra.mxu0 %v4840
    %5114 = vmatprep.subr.bf16.mxu0 %v4839
    %5115 = vmatpush2.bf16.msra.mxu0 %v4838
    %5116 = vmatprep.subr.bf16.mxu0 %v4837
    %5117 = vmatpush2.bf16.msra.mxu0 %v4836
    %5118 = vmatprep.subr.bf16.mxu0 %v4835
    %5119 = vmatpush2.bf16.msra.mxu0 %v4834
    %5120 = vmatprep.subr.bf16.mxu0 %v4833
    %5121 = vmatpush2.bf16.msra.mxu0 %v4832
    %5122 = vmatprep.subr.bf16.mxu0 %v4831
    %5123 = vmatpush2.bf16.msra.mxu0 %v4830
    %5124 = vmatprep.mubr.bf16.mxu0 %v4355
    %5125 = vmatmul.mubr.bf16.gmra.mxu0 %v4354
    %v5126 = vpop.f32.mrf.mxu0
    %v5127 = vadd.f32 %v5084, %v5126
    %v5128 = vpop.f32.mrf.mxu0
    %v5129 = vadd.f32 %v5086, %v5128
    %v5130 = vpop.f32.mrf.mxu0
    %v5131 = vadd.f32 %v5088, %v5130
    %v5132 = vpop.f32.mrf.mxu0
    %v5133 = vadd.f32 %v5090, %v5132
    %5134 = vdwg.mxu0
    %5135 = vmatprep.subr.bf16.mxu0 %v4861
    %5136 = vmatpush1.bf16.msra.mxu0 %v4860
    %5137 = vmatprep.subr.bf16.mxu0 %v4859
    %5138 = vmatpush1.bf16.msra.mxu0 %v4858
    %5139 = vmatprep.subr.bf16.mxu0 %v4857
    %5140 = vmatpush1.bf16.msra.mxu0 %v4856
    %5141 = vmatprep.subr.bf16.mxu0 %v4855
    %5142 = vmatpush1.bf16.msra.mxu0 %v4854
    %5143 = vmatprep.subr.bf16.mxu0 %v4853
    %5144 = vmatpush1.bf16.msra.mxu0 %v4852
    %5145 = vmatprep.subr.bf16.mxu0 %v4851
    %5146 = vmatpush1.bf16.msra.mxu0 %v4850
    %5147 = vmatprep.subr.bf16.mxu0 %v4849
    %5148 = vmatpush1.bf16.msra.mxu0 %v4848
    %5149 = vmatprep.subr.bf16.mxu0 %v4847
    %5150 = vmatpush1.bf16.msra.mxu0 %v4846
    %5151 = vmatprep.subr.bf16.mxu0 %v4877
    %5152 = vmatpush2.bf16.msra.mxu0 %v4876
    %5153 = vmatprep.subr.bf16.mxu0 %v4875
    %5154 = vmatpush2.bf16.msra.mxu0 %v4874
    %5155 = vmatprep.subr.bf16.mxu0 %v4873
    %5156 = vmatpush2.bf16.msra.mxu0 %v4872
    %5157 = vmatprep.subr.bf16.mxu0 %v4871
    %5158 = vmatpush2.bf16.msra.mxu0 %v4870
    %5159 = vmatprep.subr.bf16.mxu0 %v4869
    %5160 = vmatpush2.bf16.msra.mxu0 %v4868
    %5161 = vmatprep.subr.bf16.mxu0 %v4867
    %5162 = vmatpush2.bf16.msra.mxu0 %v4866
    %5163 = vmatprep.subr.bf16.mxu0 %v4865
    %5164 = vmatpush2.bf16.msra.mxu0 %v4864
    %5165 = vmatprep.subr.bf16.mxu0 %v4863
    %5166 = vmatpush2.bf16.msra.mxu0 %v4862
    %5167 = vmatprep.mubr.bf16.mxu0 %v4357
    %5168 = vmatmul.mubr.bf16.gmra.mxu0 %v4356
    %v5169 = vpop.f32.mrf.mxu0
    %v5170 = vadd.f32 %v5127, %v5169
    %v5171 = vpop.f32.mrf.mxu0
    %v5172 = vadd.f32 %v5129, %v5171
    %v5173 = vpop.f32.mrf.mxu0
    %v5174 = vadd.f32 %v5131, %v5173
    %v5175 = vpop.f32.mrf.mxu0
    %v5176 = vadd.f32 %v5133, %v5175
    %5177 = vdwg.mxu0
    %5178 = vst [vmem:[#allocation11] sm:$0xff] %v5170
    %5179 = vst [vmem:[#allocation11 + $0x8] sm:$0xff] %v5172
    %5180 = vst [vmem:[#allocation11 + $0x10] sm:$0xff] %v5174
    %5181 = vst [vmem:[#allocation11 + $0x18] sm:$0xff] %v5176
    // Predicated region
    $region54: #{tpu_custom_call.1} parent=1 // pred_check
      _
    $region55: #{tpu_custom_call.1} parent=1 // pred_check_branch
      %5183 = sbr.rel (0) target = $region57
    $region56: #{tpu_custom_call.1} parent=1 // pred_region
      %s5185 = ssub.s32 512, 512
      %5186 = vsyncadd [#allocation5], %s5185
      %s5187 = sshll.u32 [#allocation11], 4
      %s5188 = int_to_ptr.vmem [resolvable:$true] %s5187
      %5193 = dma.vmem_to_hbm [thread:$0]  %s5188, 512, %s9, [#allocation5], 256, 256, 16
    $region57: #{tpu_custom_call.1} parent=1 // pred_fallthru
      _
    // Predicated region
    $region58: #{tpu_custom_call.1} parent=1 // pred_check
      _
    $region59: #{tpu_custom_call.1} parent=1 // pred_check_branch
      %5195 = sbr.rel (0) target = $region61
    $region60: #{tpu_custom_call.1} parent=1 // pred_region
      %5196 = dma.done [#allocation5], 512
    $region61: #{tpu_custom_call.1} parent=1 // pred_fallthru
      _
    %5197 = vsyncpa [#allocation4], 1
    %5198 = vsyncpa [#allocation7], 1
    %5199 = vsyncpa [#allocation10], 1
    %5200 = vsyncpa [#allocation5], 1

</llo_original>
